<compile_context>
chip_gen: v5e
topology: v5e:2x2
jax: 0.10.0
libtpu: 0.0.40
codegen_flags: <defaults>
</compile_context>

<pallas_src>
import functools

import jax
import jax.numpy as jnp
from jax import lax
from jax.experimental import pallas as pl
from jax.experimental.pallas import tpu as pltpu

_K = 5        # conv kernel size (both convs)
_POOL_P = 32  # conv2 pooled positions (25) padded to 32


# ------------------------------ Pallas kernels -------------------------------

def _conv1_relu_pool_kernel(a_ref, w_ref, b_ref, o_ref, *, np_lanes):
    """o = relu(b + max_s(W @ A_s))  ==  2x2/2-maxpool(relu(conv1 + b)).

    a: (CKK, 4*np_lanes) bf16 -- the four pool-corner im2col slabs concatenated
       along lanes, so one wide MXU matmul covers all corners.
    w: (8, CKK) bf16 (Cout padded 6->8), b: (8, 1) f32, o: (8, np_lanes) bf16.
    """
    acc = jnp.dot(w_ref[...], a_ref[...], preferred_element_type=jnp.float32)
    n = np_lanes  # 128-aligned, so the corner slices below stay pure VPU.
    m = jnp.maximum(jnp.maximum(acc[:, 0:n], acc[:, n:2 * n]),
                    jnp.maximum(acc[:, 2 * n:3 * n], acc[:, 3 * n:4 * n]))
    o_ref[...] = jnp.maximum(m + b_ref[...], 0.0).astype(o_ref.dtype)


def _conv2_fc_tail_kernel(a_ref, w2_ref, b2_ref, wf1_ref, bf1_ref, wf2_ref,
                          bf2_ref, wf3_ref, bf3_ref, o_ref, *, bp):
    """conv2+bias+ReLU+pool -> flatten+fc1+ReLU -> fc2+ReLU -> fc3 in VMEM.

    a  : (4*32*bp, CKK2) bf16, rows ordered (corner, pooled-pos, padded-batch)
    w2 : (CKK2, 16) bf16        b2 : (1, 1, 16) f32
    wf1: (32, 120, 16) f32 -- fc1 weight as (pos, out, chan); rows for the 7
         padded positions are zero, so the padded pool grid needs no masking.
    """
    # conv2 for all corners / positions / batches as ONE wide MXU matmul.
    y = jnp.dot(a_ref[...], w2_ref[...], preferred_element_type=jnp.float32)
    # (4*32*bp, 16) -> (128, bp, 16): leading-dim split only (lane dim kept),
    # bp is a multiple of 8 so this is a tile-aligned no-op regrouping.
    y3 = y.reshape(4 * 32, bp, 16)
    # 2x2 max-pool == elementwise max of the four corner groups (aligned).
    m = jnp.maximum(jnp.maximum(y3[0:32], y3[32:64]),
                    jnp.maximum(y3[64:96], y3[96:128]))
    pooled = jnp.maximum(m + b2_ref[...], 0.0)            # (32, bp, 16)

    # Flatten + fc1 as a position-batched MXU contraction (no relayout stores):
    # h1[b,j] = sum_p sum_c pooled[p,b,c] * wf1[p,j,c].
    t = jnp.einsum("pbc,pjc->pbj", pooled, wf1_ref[...],
                   preferred_element_type=jnp.float32)     # (32, bp, 120)
    h = jnp.maximum(jnp.sum(t, axis=0) + bf1_ref[...], 0.0)

    h = jnp.maximum(
        jnp.dot(h, wf2_ref[...], preferred_element_type=jnp.float32)
        + bf2_ref[...], 0.0)
    o_ref[...] = (jnp.dot(h, wf3_ref[...], preferred_element_type=jnp.float32)
                  + bf3_ref[...]).astype(o_ref.dtype)


# ------------------------------ XLA-side glue ---------------------------------

def _conv1_slabs(x):
    """x: (B, 3, 32, 32) bf16 -> (75, 4*Np) im2col, one 128-aligned lane group
    per pool corner; rows (cin, kh, kw), lanes (b, i, j)."""
    B, C, H, _ = x.shape
    hp = (H - _K + 1) // 2
    n = B * hp * hp
    np_lanes = ((n + 127) // 128) * 128
    blocks = []
    for dy in range(2):
        for dx in range(2):
            cols = [x[:, :, dy + kh:dy + kh + 2 * hp:2,
                      dx + kw:dx + kw + 2 * hp:2]
                    for kh in range(_K) for kw in range(_K)]   # (B, C, hp, hp)
            p = jnp.stack(cols, axis=2)                        # (B, C, 25, hp, hp)
            p = p.transpose(1, 2, 0, 3, 4).reshape(C * _K * _K, n)
            blocks.append(jnp.pad(p, ((0, 0), (0, np_lanes - n))))
    return jnp.concatenate(blocks, axis=1), hp, np_lanes


def _conv2_slabs(y1, bp):
    """y1: (6, B, 14, 14) bf16 -> (4*32*bp, 150) im2col with rows ordered
    (corner, pooled-pos padded to 32, batch padded to bp); cols (cin, kh, kw)."""
    C, B, H, _ = y1.shape
    hp = (H - _K + 1) // 2                                     # 5
    blocks = []
    for dy in range(2):
        for dx in range(2):
            cols = [y1[:, :, dy + kh:dy + kh + 2 * hp:2,
                       dx + kw:dx + kw + 2 * hp:2]
                    for kh in range(_K) for kw in range(_K)]   # (C, B, hp, hp)
            p = jnp.stack(cols, axis=1)                        # (C, 25, B, hp, hp)
            p = p.transpose(3, 4, 2, 0, 1).reshape(hp * hp, B, C * _K * _K)
            p = jnp.pad(p, ((0, _POOL_P - hp * hp), (0, bp - B), (0, 0)))
            blocks.append(p)                                   # (32, bp, 150)
    return jnp.stack(blocks, axis=0).reshape(4 * _POOL_P * bp, C * _K * _K)


def conv1_relu_pool(x, w1p, b1p):
    """Fused conv1 (5x5 valid) + bias + ReLU + 2x2/2 max-pool. Returns the
    activation in channel-major (6, B, 14, 14) layout (no NCHW transpose)."""
    B = x.shape[0]
    slabs, hp, np_lanes = _conv1_slabs(x)
    ckk = slabs.shape[0]

    out = pl.pallas_call(
        functools.partial(_conv1_relu_pool_kernel, np_lanes=np_lanes),
        grid=(1,),  # single 512-lane block at small batch (launch-bound)
        out_shape=jax.ShapeDtypeStruct((8, np_lanes), jnp.bfloat16),
        in_specs=[
            pl.BlockSpec((ckk, 4 * np_lanes), lambda i: (0, 0)),
            pl.BlockSpec((8, ckk), lambda i: (0, 0)),
            pl.BlockSpec((8, 1), lambda i: (0, 0)),
        ],
        out_specs=pl.BlockSpec((8, np_lanes), lambda i: (0, 0)),
        compiler_params=pltpu.CompilerParams(
            dimension_semantics=("arbitrary",)),
    )(slabs, w1p, b1p)

    n = B * hp * hp
    return out[:6, :n].reshape(6, B, hp, hp)       # drop Cout/lane padding


def conv2_fc_tail(y1, prep):
    """Fused conv2 + ReLU + pool + flatten + fc1/fc2/fc3. Returns (B, 10)."""
    B = y1.shape[1]
    bp = ((B + 7) // 8) * 8                         # batch padded to sublane tile
    slabs = _conv2_slabs(y1, bp)

    operands = (slabs, prep["w2t"], prep["b2"], prep["wf1r"], prep["bf1"],
                prep["wf2t"], prep["bf2"], prep["wf3t"], prep["bf3"])

    def _full(a):
        nd = a.ndim
        return pl.BlockSpec(a.shape, lambda i, _nd=nd: (0,) * _nd)

    out = pl.pallas_call(
        functools.partial(_conv2_fc_tail_kernel, bp=bp),
        grid=(1,),
        out_shape=jax.ShapeDtypeStruct((bp, 10), jnp.float32),
        in_specs=[_full(a) for a in operands],
        out_specs=pl.BlockSpec((bp, 10), lambda i: (0, 0)),
        compiler_params=pltpu.CompilerParams(
            dimension_semantics=("arbitrary",)),
    )(*operands)
    return out[:B]


# -------------------------------- parameters ----------------------------------

def prepare_params(p):
    """One-time weight relayouts/casts, hoisted out of the jitted forward."""
    ckk1 = 3 * _K * _K
    w1p = jnp.pad(p["w1"].reshape(6, ckk1), ((0, 2), (0, 0))).astype(jnp.bfloat16)
    b1p = jnp.pad(p["b1"], (0, 2)).reshape(8, 1).astype(jnp.float32)
    w2t = p["w2"].reshape(16, 6 * _K * _K).T.astype(jnp.bfloat16)   # (150, 16)
    b2 = p["b2"].reshape(1, 1, 16).astype(jnp.float32)
    wf1r = p["wf1"].astype(jnp.float32).reshape(120, 16, 25)        # (j, c, p)
    wf1r = jnp.pad(wf1r, ((0, 0), (0, 0), (0, _POOL_P - 25)))       # zero rows p>=25
    wf1r = wf1r.transpose(2, 0, 1)                                  # (p, j, c)
    return {
        "w1p": w1p, "b1p": b1p, "w2t": w2t, "b2": b2, "wf1r": wf1r,
        "bf1": p["bf1"].reshape(1, 120).astype(jnp.float32),
        "wf2t": p["wf2"].T.astype(jnp.float32),
        "bf2": p["bf2"].reshape(1, 84).astype(jnp.float32),
        "wf3t": p["wf3"].T.astype(jnp.float32),
        "bf3": p["bf3"].reshape(1, 10).astype(jnp.float32),
    }


def init_params(key):
    ks = jax.random.split(key, 10)

    def u(k, shape, fan_in):
        bound = float(fan_in) ** -0.5
        return jax.random.uniform(k, shape, jnp.float32, -bound, bound)

    return {
        "w1": u(ks[0], (6, 3, 5, 5), 3 * 5 * 5),
        "b1": u(ks[1], (6,), 3 * 5 * 5),
        "w2": u(ks[2], (16, 6, 5, 5), 6 * 5 * 5),
        "b2": u(ks[3], (16,), 6 * 5 * 5),
        "wf1": u(ks[4], (120, 400), 400),
        "bf1": u(ks[5], (120,), 400),
        "wf2": u(ks[6], (84, 120), 120),
        "bf2": u(ks[7], (84,), 120),
        "wf3": u(ks[8], (10, 84), 84),
        "bf3": u(ks[9], (10,), 84),
    }


# -------------------------------- Net forward ---------------------------------

@jax.jit
def net_forward(x, prep):
    xb = x.astype(jnp.bfloat16)                      # bf16 slabs, f32 accumulate
    y1 = conv1_relu_pool(xb, prep["w1p"], prep["b1p"])   # (6, B, 14, 14) bf16
    return conv2_fc_tail(y1, prep)                   # (B, 10) f32


@jax.jit
def ref_forward(x, p):
    """Pure-JAX f32 reference reproducing the PyTorch forward for validation."""
    def conv(x, w, b):
        y = lax.conv_general_dilated(x, w, (1, 1), "VALID",
                                     dimension_numbers=("NCHW", "OIHW", "NCHW"))
        return y + b[None, :, None, None]

    def pool(x):
        return lax.reduce_window(x, -jnp.inf, lax.max,
                                 (1, 1, 2, 2), (1, 1, 2, 2), "VALID")

    y = pool(jnp.maximum(conv(x, p["w1"], p["b1"]), 0.0))
    y = pool(jnp.maximum(conv(y, p["w2"], p["b2"]), 0.0))
    y = y.reshape(y.shape[0], -1)
    y = jnp.maximum(y @ p["wf1"].T + p["bf1"], 0.0)
    y = jnp.maximum(y @ p["wf2"].T + p["bf2"], 0.0)
    return y @ p["wf3"].T + p["bf3"]


if __name__ == "__main__":
    key = jax.random.PRNGKey(0)
    kx, kp = jax.random.split(key)
    # Net's fc1 (16*5*5 inputs) implies 32x32 spatial input with 3 channels.
    x = jax.random.normal(kx, (2, 3, 32, 32), dtype=jnp.float32)
    params = init_params(kp)
    prep = prepare_params(params)

    out = jax.block_until_ready(net_forward(x, prep))
    assert out.shape == (2, 10) and out.dtype == jnp.float32

    ref = jax.block_until_ready(ref_forward(x, params))
    max_err = float(jnp.max(jnp.abs(out - ref)))
    # bf16 conv operands (f32 accumulation) -> slightly relaxed tolerance.
    if max_err > 2e-2:
        raise AssertionError(f"Pallas output mismatch vs reference: {max_err}")

    print("KERNEL_OK")
</pallas_src>

<mosaic_0001>
module attributes {stable_mosaic.version = 11 : i64} {
  func.func @_conv1_relu_pool_kernel(%arg0: i32, %arg1: memref<75x2048xbf16, #tpu.memory_space<vmem>>, %arg2: memref<8x75xbf16, #tpu.memory_space<vmem>>, %arg3: memref<8x1xf32, #tpu.memory_space<vmem>>, %arg4: memref<8x512xbf16, #tpu.memory_space<vmem>>) attributes {dimension_semantics = [#tpu.dimension_semantics<arbitrary>], iteration_bounds = array<i64: 1>, scalar_prefetch = 0 : i64, scratch_operands = 0 : i64, tpu.core_type = #tpu.core_type<tc>, window_params = [{pipeline_mode = #tpu.pipeline_mode<synchronous>, transform_indices = @transform_0, window_bounds = array<i64: 75, 2048>}, {pipeline_mode = #tpu.pipeline_mode<synchronous>, transform_indices = @transform_1, window_bounds = array<i64: 8, 75>}, {pipeline_mode = #tpu.pipeline_mode<synchronous>, transform_indices = @transform_2, window_bounds = array<i64: 8, 1>}, {pipeline_mode = #tpu.pipeline_mode<synchronous>, transform_indices = @transform_3, window_bounds = array<i64: 8, 512>}]} {
    %c0 = arith.constant 0 : index
    %c0_0 = arith.constant 0 : index
    %0 = vector.load %arg2[%c0, %c0_0] : memref<8x75xbf16, #tpu.memory_space<vmem>>, vector<8x75xbf16>
    %c0_1 = arith.constant 0 : index
    %c0_2 = arith.constant 0 : index
    %1 = vector.load %arg1[%c0_1, %c0_2] : memref<75x2048xbf16, #tpu.memory_space<vmem>>, vector<75x2048xbf16>
    %cst = arith.constant dense<0.000000e+00> : vector<8x2048xf32>
    %2 = tpu.matmul %0, %1, %cst {dimension_numbers = #tpu.dot_dimension_numbers<[1], [0], [0], [1], [0, 0, 1, 1], [], []>} : vector<8x75xbf16>, vector<75x2048xbf16>, vector<8x2048xf32> -> vector<8x2048xf32>
    %3 = vector.extract_strided_slice %2 {offsets = [0, 0], sizes = [8, 512], strides = [1, 1]} : vector<8x2048xf32> to vector<8x512xf32>
    %4 = vector.extract_strided_slice %2 {offsets = [0, 512], sizes = [8, 512], strides = [1, 1]} : vector<8x2048xf32> to vector<8x512xf32>
    %5 = arith.maximumf %3, %4 : vector<8x512xf32>
    %6 = vector.extract_strided_slice %2 {offsets = [0, 1024], sizes = [8, 512], strides = [1, 1]} : vector<8x2048xf32> to vector<8x512xf32>
    %7 = vector.extract_strided_slice %2 {offsets = [0, 1536], sizes = [8, 512], strides = [1, 1]} : vector<8x2048xf32> to vector<8x512xf32>
    %8 = arith.maximumf %6, %7 : vector<8x512xf32>
    %9 = arith.maximumf %5, %8 : vector<8x512xf32>
    %c0_3 = arith.constant 0 : index
    %c0_4 = arith.constant 0 : index
    %10 = vector.load %arg3[%c0_3, %c0_4] : memref<8x1xf32, #tpu.memory_space<vmem>>, vector<8x1xf32>
    %11 = vector.broadcast %10 : vector<8x1xf32> to vector<8x512xf32>
    %12 = arith.addf %9, %11 : vector<8x512xf32>
    %cst_5 = arith.constant 0.000000e+00 : f32
    %13 = vector.broadcast %cst_5 : f32 to vector<8x512xf32>
    %14 = arith.maximumf %12, %13 : vector<8x512xf32>
    %15 = arith.truncf %14 : vector<8x512xf32> to vector<8x512xbf16>
    %c0_6 = arith.constant 0 : index
    %c0_7 = arith.constant 0 : index
    %16 = vector.load %arg4[%c0_6, %c0_7] : memref<8x512xbf16, #tpu.memory_space<vmem>>, vector<8x512xbf16>
    tpu.vector_store %arg4[%c0_6, %c0_7], %15 {strides = array<i32>} : memref<8x512xbf16, #tpu.memory_space<vmem>>, vector<8x512xbf16>,
    return
  }
  func.func @transform_0(%arg0: i32) -> (i32, i32) {
    %c0_i32 = arith.constant 0 : i32
    %c0_i32_0 = arith.constant 0 : i32
    %c0_i32_1 = arith.constant 0 : i32
    return %c0_i32, %c0_i32_0 : i32, i32
  }
  func.func @transform_1(%arg0: i32) -> (i32, i32) {
    %c0_i32 = arith.constant 0 : i32
    %c0_i32_0 = arith.constant 0 : i32
    %c0_i32_1 = arith.constant 0 : i32
    return %c0_i32, %c0_i32_0 : i32, i32
  }
  func.func @transform_2(%arg0: i32) -> (i32, i32) {
    %c0_i32 = arith.constant 0 : i32
    %c0_i32_0 = arith.constant 0 : i32
    %c0_i32_1 = arith.constant 0 : i32
    return %c0_i32, %c0_i32_0 : i32, i32
  }
  func.func @transform_3(%arg0: i32) -> (i32, i32) {
    %c0_i32 = arith.constant 0 : i32
    %c0_i32_0 = arith.constant 0 : i32
    %c0_i32_1 = arith.constant 0 : i32
    return %c0_i32, %c0_i32_0 : i32, i32
  }
}

module attributes {stable_mosaic.version = 11 : i64} {
  func.func @_conv2_fc_tail_kernel(%arg0: i32, %arg1: memref<1024x150xbf16, #tpu.memory_space<vmem>>, %arg2: memref<150x16xbf16, #tpu.memory_space<vmem>>, %arg3: memref<1x1x16xf32, #tpu.memory_space<vmem>>, %arg4: memref<32x120x16xf32, #tpu.memory_space<vmem>>, %arg5: memref<1x120xf32, #tpu.memory_space<vmem>>, %arg6: memref<120x84xf32, #tpu.memory_space<vmem>>, %arg7: memref<1x84xf32, #tpu.memory_space<vmem>>, %arg8: memref<84x10xf32, #tpu.memory_space<vmem>>, %arg9: memref<1x10xf32, #tpu.memory_space<vmem>>, %arg10: memref<8x10xf32, #tpu.memory_space<vmem>>) attributes {dimension_semantics = [#tpu.dimension_semantics<arbitrary>], iteration_bounds = array<i64: 1>, scalar_prefetch = 0 : i64, scratch_operands = 0 : i64, tpu.core_type = #tpu.core_type<tc>, window_params = [{pipeline_mode = #tpu.pipeline_mode<synchronous>, transform_indices = @transform_0, window_bounds = array<i64: 1024, 150>}, {pipeline_mode = #tpu.pipeline_mode<synchronous>, transform_indices = @transform_1, window_bounds = array<i64: 150, 16>}, {pipeline_mode = #tpu.pipeline_mode<synchronous>, transform_indices = @transform_2, window_bounds = array<i64: 1, 1, 16>}, {pipeline_mode = #tpu.pipeline_mode<synchronous>, transform_indices = @transform_3, window_bounds = array<i64: 32, 120, 16>}, {pipeline_mode = #tpu.pipeline_mode<synchronous>, transform_indices = @transform_4, window_bounds = array<i64: 1, 120>}, {pipeline_mode = #tpu.pipeline_mode<synchronous>, transform_indices = @transform_5, window_bounds = array<i64: 120, 84>}, {pipeline_mode = #tpu.pipeline_mode<synchronous>, transform_indices = @transform_6, window_bounds = array<i64: 1, 84>}, {pipeline_mode = #tpu.pipeline_mode<synchronous>, transform_indices = @transform_7, window_bounds = array<i64: 84, 10>}, {pipeline_mode = #tpu.pipeline_mode<synchronous>, transform_indices = @transform_8, window_bounds = array<i64: 1, 10>}, {pipeline_mode = #tpu.pipeline_mode<synchronous>, transform_indices = @transform_9, window_bounds = array<i64: 8, 10>}]} {
    %c0 = arith.constant 0 : index
    %c0_0 = arith.constant 0 : index
    %0 = vector.load %arg1[%c0, %c0_0] : memref<1024x150xbf16, #tpu.memory_space<vmem>>, vector<1024x150xbf16>
    %c0_1 = arith.constant 0 : index
    %c0_2 = arith.constant 0 : index
    %1 = vector.load %arg2[%c0_1, %c0_2] : memref<150x16xbf16, #tpu.memory_space<vmem>>, vector<150x16xbf16>
    %cst = arith.constant dense<0.000000e+00> : vector<1024x16xf32>
    %2 = tpu.matmul %0, %1, %cst {dimension_numbers = #tpu.dot_dimension_numbers<[1], [0], [0], [1], [0, 0, 1, 1], [], []>} : vector<1024x150xbf16>, vector<150x16xbf16>, vector<1024x16xf32> -> vector<1024x16xf32>
    %3 = vector.shape_cast %2 : vector<1024x16xf32> to vector<128x8x16xf32>
    %4 = vector.extract_strided_slice %3 {offsets = [0, 0, 0], sizes = [32, 8, 16], strides = [1, 1, 1]} : vector<128x8x16xf32> to vector<32x8x16xf32>
    %5 = vector.extract_strided_slice %3 {offsets = [32, 0, 0], sizes = [32, 8, 16], strides = [1, 1, 1]} : vector<128x8x16xf32> to vector<32x8x16xf32>
    %6 = arith.maximumf %4, %5 : vector<32x8x16xf32>
    %7 = vector.extract_strided_slice %3 {offsets = [64, 0, 0], sizes = [32, 8, 16], strides = [1, 1, 1]} : vector<128x8x16xf32> to vector<32x8x16xf32>
    %8 = vector.extract_strided_slice %3 {offsets = [96, 0, 0], sizes = [32, 8, 16], strides = [1, 1, 1]} : vector<128x8x16xf32> to vector<32x8x16xf32>
    %9 = arith.maximumf %7, %8 : vector<32x8x16xf32>
    %10 = arith.maximumf %6, %9 : vector<32x8x16xf32>
    %c0_3 = arith.constant 0 : index
    %c0_4 = arith.constant 0 : index
    %c0_5 = arith.constant 0 : index
    %11 = vector.load %arg3[%c0_3, %c0_4, %c0_5] : memref<1x1x16xf32, #tpu.memory_space<vmem>>, vector<1x1x16xf32>
    %12 = vector.broadcast %11 : vector<1x1x16xf32> to vector<32x8x16xf32>
    %13 = arith.addf %10, %12 : vector<32x8x16xf32>
    %cst_6 = arith.constant 0.000000e+00 : f32
    %14 = vector.broadcast %cst_6 : f32 to vector<32x8x16xf32>
    %15 = arith.maximumf %13, %14 : vector<32x8x16xf32>
    %c0_7 = arith.constant 0 : index
    %c0_8 = arith.constant 0 : index
    %c0_9 = arith.constant 0 : index
    %16 = vector.load %arg4[%c0_7, %c0_8, %c0_9] : memref<32x120x16xf32, #tpu.memory_space<vmem>>, vector<32x120x16xf32>
    "tpu.trace_start"() <{level = 10 : i32, message = "pbc,pjc->pbj"}> : () -> ()
    %cst_10 = arith.constant dense<0.000000e+00> : vector<32x8x120xf32>
    %17 = tpu.matmul %15, %16, %cst_10 {dimension_numbers = #tpu.dot_dimension_numbers<[2], [2], [1], [1], [0, 0, 0, 1, 1, 1], [0], [0]>} : vector<32x8x16xf32>, vector<32x120x16xf32>, vector<32x8x120xf32> -> vector<32x8x120xf32>
    "tpu.trace_stop"() : () -> ()
    %cst_11 = arith.constant dense<0.000000e+00> : vector<8x120xf32>
    %18 = vector.multi_reduction <add>, %17, %cst_11 [0] : vector<32x8x120xf32> to vector<8x120xf32>
    %c0_12 = arith.constant 0 : index
    %c0_13 = arith.constant 0 : index
    %19 = vector.load %arg5[%c0_12, %c0_13] : memref<1x120xf32, #tpu.memory_space<vmem>>, vector<1x120xf32>
    %20 = vector.broadcast %19 : vector<1x120xf32> to vector<8x120xf32>
    %21 = arith.addf %18, %20 : vector<8x120xf32>
    %cst_14 = arith.constant 0.000000e+00 : f32
    %22 = vector.broadcast %cst_14 : f32 to vector<8x120xf32>
    %23 = arith.maximumf %21, %22 : vector<8x120xf32>
    %c0_15 = arith.constant 0 : index
    %c0_16 = arith.constant 0 : index
    %24 = vector.load %arg6[%c0_15, %c0_16] : memref<120x84xf32, #tpu.memory_space<vmem>>, vector<120x84xf32>
    %cst_17 = arith.constant dense<0.000000e+00> : vector<8x84xf32>
    %25 = tpu.matmul %23, %24, %cst_17 {dimension_numbers = #tpu.dot_dimension_numbers<[1], [0], [0], [1], [0, 0, 1, 1], [], []>} : vector<8x120xf32>, vector<120x84xf32>, vector<8x84xf32> -> vector<8x84xf32>
    %c0_18 = arith.constant 0 : index
    %c0_19 = arith.constant 0 : index
    %26 = vector.load %arg7[%c0_18, %c0_19] : memref<1x84xf32, #tpu.memory_space<vmem>>, vector<1x84xf32>
    %27 = vector.broadcast %26 : vector<1x84xf32> to vector<8x84xf32>
    %28 = arith.addf %25, %27 : vector<8x84xf32>
    %cst_20 = arith.constant 0.000000e+00 : f32
    %29 = vector.broadcast %cst_20 : f32 to vector<8x84xf32>
    %30 = arith.maximumf %28, %29 : vector<8x84xf32>
    %c0_21 = arith.constant 0 : index
    %c0_22 = arith.constant 0 : index
    %31 = vector.load %arg8[%c0_21, %c0_22] : memref<84x10xf32, #tpu.memory_space<vmem>>, vector<84x10xf32>
    %cst_23 = arith.constant dense<0.000000e+00> : vector<8x10xf32>
    %32 = tpu.matmul %30, %31, %cst_23 {dimension_numbers = #tpu.dot_dimension_numbers<[1], [0], [0], [1], [0, 0, 1, 1], [], []>} : vector<8x84xf32>, vector<84x10xf32>, vector<8x10xf32> -> vector<8x10xf32>
    %c0_24 = arith.constant 0 : index
    %c0_25 = arith.constant 0 : index
    %33 = vector.load %arg9[%c0_24, %c0_25] : memref<1x10xf32, #tpu.memory_space<vmem>>, vector<1x10xf32>
    %34 = vector.broadcast %33 : vector<1x10xf32> to vector<8x10xf32>
    %35 = arith.addf %32, %34 : vector<8x10xf32>
    %c0_26 = arith.constant 0 : index
    %c0_27 = arith.constant 0 : index
    %36 = vector.load %arg10[%c0_26, %c0_27] : memref<8x10xf32, #tpu.memory_space<vmem>>, vector<8x10xf32>
    tpu.vector_store %arg10[%c0_26, %c0_27], %35 {strides = array<i32>} : memref<8x10xf32, #tpu.memory_space<vmem>>, vector<8x10xf32>,
    return
  }
  func.func @transform_0(%arg0: i32) -> (i32, i32) {
    %c0_i32 = arith.constant 0 : i32
    %c0_i32_0 = arith.constant 0 : i32
    %c0_i32_1 = arith.constant 0 : i32
    return %c0_i32, %c0_i32_0 : i32, i32
  }
  func.func @transform_1(%arg0: i32) -> (i32, i32) {
    %c0_i32 = arith.constant 0 : i32
    %c0_i32_0 = arith.constant 0 : i32
    %c0_i32_1 = arith.constant 0 : i32
    return %c0_i32, %c0_i32_0 : i32, i32
  }
  func.func @transform_2(%arg0: i32) -> (i32, i32, i32) {
    %c0_i32 = arith.constant 0 : i32
    %c0_i32_0 = arith.constant 0 : i32
    %c0_i32_1 = arith.constant 0 : i32
    %c0_i32_2 = arith.constant 0 : i32
    return %c0_i32, %c0_i32_0, %c0_i32_1 : i32, i32, i32
  }
  func.func @transform_3(%arg0: i32) -> (i32, i32, i32) {
    %c0_i32 = arith.constant 0 : i32
    %c0_i32_0 = arith.constant 0 : i32
    %c0_i32_1 = arith.constant 0 : i32
    %c0_i32_2 = arith.constant 0 : i32
    return %c0_i32, %c0_i32_0, %c0_i32_1 : i32, i32, i32
  }
  func.func @transform_4(%arg0: i32) -> (i32, i32) {
    %c0_i32 = arith.constant 0 : i32
    %c0_i32_0 = arith.constant 0 : i32
    %c0_i32_1 = arith.constant 0 : i32
    return %c0_i32, %c0_i32_0 : i32, i32
  }
  func.func @transform_5(%arg0: i32) -> (i32, i32) {
    %c0_i32 = arith.constant 0 : i32
    %c0_i32_0 = arith.constant 0 : i32
    %c0_i32_1 = arith.constant 0 : i32
    return %c0_i32, %c0_i32_0 : i32, i32
  }
  func.func @transform_6(%arg0: i32) -> (i32, i32) {
    %c0_i32 = arith.constant 0 : i32
    %c0_i32_0 = arith.constant 0 : i32
    %c0_i32_1 = arith.constant 0 : i32
    return %c0_i32, %c0_i32_0 : i32, i32
  }
  func.func @transform_7(%arg0: i32) -> (i32, i32) {
    %c0_i32 = arith.constant 0 : i32
    %c0_i32_0 = arith.constant 0 : i32
    %c0_i32_1 = arith.constant 0 : i32
    return %c0_i32, %c0_i32_0 : i32, i32
  }
  func.func @transform_8(%arg0: i32) -> (i32, i32) {
    %c0_i32 = arith.constant 0 : i32
    %c0_i32_0 = arith.constant 0 : i32
    %c0_i32_1 = arith.constant 0 : i32
    return %c0_i32, %c0_i32_0 : i32, i32
  }
  func.func @transform_9(%arg0: i32) -> (i32, i32) {
    %c0_i32 = arith.constant 0 : i32
    %c0_i32_0 = arith.constant 0 : i32
    %c0_i32_1 = arith.constant 0 : i32
    return %c0_i32, %c0_i32_0 : i32, i32
  }
}

</mosaic_0001>

<llo_original>
// kernel: net_forward.2
$region0: #{net_forward.2}
  #allocation0 [shape = 'u32[]', space=smem, size = 0x4, offset = 0x4, fixed_abs, tag = 'smem constant byte address 0x4 - core index']
  #allocation1 [shape = 'u32[72,128]{1,0:T(1,128)}', space=vmem, size = 0x9000, scoped, tag = 'internal scratch']
  %s0 = inlined_call_operand.vmem [shape: bf16[75,2048], index: 0, kind: input, shape index: {}]
  %s1 = inlined_call_operand.vmem [shape: bf16[8,75], index: 1, kind: input, shape index: {}]
  %s2 = inlined_call_operand.vmem [shape: f32[8,1], index: 2, kind: input, shape index: {}]
  %s3 = inlined_call_operand.vmem [shape: bf16[8,512], index: 3, kind: output, shape index: {}]
  %s4 = sld [smem:[#allocation0]]
  $region22: #{net_forward.2} parent=0
    _
  %s6 = ssub.s32 1, %s4
  %s7 = scalar_select 0, %s6, %s4
  // Predicated region
  $region2: #{net_forward.2} parent=0 // pred_check
    _
  $region3: #{net_forward.2} parent=0 // pred_check_branch
    %9 = sbr.rel (0) target = $region5
  $region4: #{net_forward.2} parent=0 // pred_region
    _
  $region5: #{net_forward.2} parent=0 // pred_fallthru
    _
  // Predicated region
  $region6: #{net_forward.2} parent=0 // pred_check
    _
  $region7: #{net_forward.2} parent=0 // pred_check_branch
    %11 = sbr.rel (0) target = $region9
  $region8: #{net_forward.2} parent=0 // pred_region
    _
  $region9: #{net_forward.2} parent=0 // pred_fallthru
    _
  // Predicated region
  $region10: #{net_forward.2} parent=0 // pred_check
    _
  $region11: #{net_forward.2} parent=0 // pred_check_branch
    %13 = sbr.rel (0) target = $region13
  $region12: #{net_forward.2} parent=0 // pred_region
    _
  $region13: #{net_forward.2} parent=0 // pred_fallthru
    _
  %v15 = vld [vmem:[%s1] sm:$0xf]
  %v16 = vld [vmem:[%s0] sm:$0xff]
  %v17 = vld [vmem:[%s0 + $0x8] sm:$0xff]
  %v18 = vld [vmem:[%s0 + $0x10] sm:$0xff]
  %v19 = vld [vmem:[%s0 + $0x18] sm:$0xff]
  %v20 = vld [vmem:[%s0 + $0x20] sm:$0xff]
  %v21 = vld [vmem:[%s0 + $0x28] sm:$0xff]
  %v22 = vld [vmem:[%s0 + $0x30] sm:$0xff]
  %v23 = vld [vmem:[%s0 + $0x38] sm:$0xff]
  %v24 = vld [vmem:[%s0 + $0x40] sm:$0xff]
  %v25 = vld [vmem:[%s0 + $0x48] sm:$0xff]
  %v26 = vld [vmem:[%s0 + $0x50] sm:$0xff]
  %v27 = vld [vmem:[%s0 + $0x58] sm:$0xff]
  %v28 = vld [vmem:[%s0 + $0x60] sm:$0xff]
  %v29 = vld [vmem:[%s0 + $0x68] sm:$0xff]
  %v30 = vld [vmem:[%s0 + $0x70] sm:$0xff]
  %v31 = vld [vmem:[%s0 + $0x78] sm:$0xff]
  %v32 = vld [vmem:[%s0 + $0x80] sm:$0xff]
  %v33 = vld [vmem:[%s0 + $0x88] sm:$0xff]
  %v34 = vld [vmem:[%s0 + $0x90] sm:$0xff]
  %v35 = vld [vmem:[%s0 + $0x98] sm:$0xff]
  %v36 = vld [vmem:[%s0 + $0xa0] sm:$0xff]
  %v37 = vld [vmem:[%s0 + $0xa8] sm:$0xff]
  %v38 = vld [vmem:[%s0 + $0xb0] sm:$0xff]
  %v39 = vld [vmem:[%s0 + $0xb8] sm:$0xff]
  %v40 = vld [vmem:[%s0 + $0xc0] sm:$0xff]
  %v41 = vld [vmem:[%s0 + $0xc8] sm:$0xff]
  %v42 = vld [vmem:[%s0 + $0xd0] sm:$0xff]
  %v43 = vld [vmem:[%s0 + $0xd8] sm:$0xff]
  %v44 = vld [vmem:[%s0 + $0xe0] sm:$0xff]
  %v45 = vld [vmem:[%s0 + $0xe8] sm:$0xff]
  %v46 = vld [vmem:[%s0 + $0xf0] sm:$0xff]
  %v47 = vld [vmem:[%s0 + $0xf8] sm:$0xff]
  %v48 = vld [vmem:[%s0 + $0x100] sm:$0xff]
  %v49 = vld [vmem:[%s0 + $0x108] sm:$0xff]
  %v50 = vld [vmem:[%s0 + $0x110] sm:$0xff]
  %v51 = vld [vmem:[%s0 + $0x118] sm:$0xff]
  %v52 = vld [vmem:[%s0 + $0x120] sm:$0xff]
  %v53 = vld [vmem:[%s0 + $0x128] sm:$0xff]
  %v54 = vld [vmem:[%s0 + $0x130] sm:$0xff]
  %v55 = vld [vmem:[%s0 + $0x138] sm:$0xff]
  %v56 = vld [vmem:[%s0 + $0x140] sm:$0xff]
  %v57 = vld [vmem:[%s0 + $0x148] sm:$0xff]
  %v58 = vld [vmem:[%s0 + $0x150] sm:$0xff]
  %v59 = vld [vmem:[%s0 + $0x158] sm:$0xff]
  %v60 = vld [vmem:[%s0 + $0x160] sm:$0xff]
  %v61 = vld [vmem:[%s0 + $0x168] sm:$0xff]
  %v62 = vld [vmem:[%s0 + $0x170] sm:$0xff]
  %v63 = vld [vmem:[%s0 + $0x178] sm:$0xff]
  %v64 = vld [vmem:[%s0 + $0x180] sm:$0xff]
  %v65 = vld [vmem:[%s0 + $0x188] sm:$0xff]
  %v66 = vld [vmem:[%s0 + $0x190] sm:$0xff]
  %v67 = vld [vmem:[%s0 + $0x198] sm:$0xff]
  %v68 = vld [vmem:[%s0 + $0x1a0] sm:$0xff]
  %v69 = vld [vmem:[%s0 + $0x1a8] sm:$0xff]
  %v70 = vld [vmem:[%s0 + $0x1b0] sm:$0xff]
  %v71 = vld [vmem:[%s0 + $0x1b8] sm:$0xff]
  %v72 = vld [vmem:[%s0 + $0x1c0] sm:$0xff]
  %v73 = vld [vmem:[%s0 + $0x1c8] sm:$0xff]
  %v74 = vld [vmem:[%s0 + $0x1d0] sm:$0xff]
  %v75 = vld [vmem:[%s0 + $0x1d8] sm:$0xff]
  %v76 = vld [vmem:[%s0 + $0x1e0] sm:$0xff]
  %v77 = vld [vmem:[%s0 + $0x1e8] sm:$0xff]
  %v78 = vld [vmem:[%s0 + $0x1f0] sm:$0xff]
  %v79 = vld [vmem:[%s0 + $0x1f8] sm:$0xff]
  %v80 = vld [vmem:[%s0 + $0x200] sm:$0xff]
  %v81 = vld [vmem:[%s0 + $0x208] sm:$0xff]
  %v82 = vld [vmem:[%s0 + $0x210] sm:$0xff]
  %v83 = vld [vmem:[%s0 + $0x218] sm:$0xff]
  %v84 = vld [vmem:[%s0 + $0x220] sm:$0xff]
  %v85 = vld [vmem:[%s0 + $0x228] sm:$0xff]
  %v86 = vld [vmem:[%s0 + $0x230] sm:$0xff]
  %v87 = vld [vmem:[%s0 + $0x238] sm:$0xff]
  %v88 = vld [vmem:[%s0 + $0x240] sm:$0x33]
  %v89 = vld [vmem:[%s0 + $0x248] sm:$0x33]
  %v90 = vld [vmem:[%s0 + $0x250] sm:$0x33]
  %v91 = vld [vmem:[%s0 + $0x258] sm:$0x33]
  %v92 = vld [vmem:[%s0 + $0x260] sm:$0x33]
  %v93 = vld [vmem:[%s0 + $0x268] sm:$0x33]
  %v94 = vld [vmem:[%s0 + $0x270] sm:$0x33]
  %v95 = vld [vmem:[%s0 + $0x278] sm:$0x33]
  %v176 = vunpack.c.l.b16 %v16
  %v177 = vunpack.c.h.b16 %v16
  %v178 = vunpack.c.l.b16 %v17
  %v179 = vunpack.c.h.b16 %v17
  %v180 = vunpack.c.l.b16 %v18
  %v181 = vunpack.c.h.b16 %v18
  %v182 = vunpack.c.l.b16 %v19
  %v183 = vunpack.c.h.b16 %v19
  %v184 = vunpack.c.l.b16 %v20
  %v185 = vunpack.c.h.b16 %v20
  %v186 = vunpack.c.l.b16 %v21
  %v187 = vunpack.c.h.b16 %v21
  %v188 = vunpack.c.l.b16 %v22
  %v189 = vunpack.c.h.b16 %v22
  %v190 = vunpack.c.l.b16 %v23
  %v191 = vunpack.c.h.b16 %v23
  %v192 = vunpack.c.l.b16 %v24
  %v193 = vunpack.c.h.b16 %v24
  %v194 = vunpack.c.l.b16 %v25
  %v195 = vunpack.c.h.b16 %v25
  %v196 = vunpack.c.l.b16 %v26
  %v197 = vunpack.c.h.b16 %v26
  %v198 = vunpack.c.l.b16 %v27
  %v199 = vunpack.c.h.b16 %v27
  %v200 = vunpack.c.l.b16 %v28
  %v201 = vunpack.c.h.b16 %v28
  %v202 = vunpack.c.l.b16 %v29
  %v203 = vunpack.c.h.b16 %v29
  %v204 = vunpack.c.l.b16 %v30
  %v205 = vunpack.c.h.b16 %v30
  %v206 = vunpack.c.l.b16 %v31
  %v207 = vunpack.c.h.b16 %v31
  %v208 = vunpack.c.l.b16 %v32
  %v209 = vunpack.c.h.b16 %v32
  %v210 = vunpack.c.l.b16 %v33
  %v211 = vunpack.c.h.b16 %v33
  %v212 = vunpack.c.l.b16 %v34
  %v213 = vunpack.c.h.b16 %v34
  %v214 = vunpack.c.l.b16 %v35
  %v215 = vunpack.c.h.b16 %v35
  %v216 = vunpack.c.l.b16 %v36
  %v217 = vunpack.c.h.b16 %v36
  %v218 = vunpack.c.l.b16 %v37
  %v219 = vunpack.c.h.b16 %v37
  %v220 = vunpack.c.l.b16 %v38
  %v221 = vunpack.c.h.b16 %v38
  %v222 = vunpack.c.l.b16 %v39
  %v223 = vunpack.c.h.b16 %v39
  %v224 = vunpack.c.l.b16 %v40
  %v225 = vunpack.c.h.b16 %v40
  %v226 = vunpack.c.l.b16 %v41
  %v227 = vunpack.c.h.b16 %v41
  %v228 = vunpack.c.l.b16 %v42
  %v229 = vunpack.c.h.b16 %v42
  %v230 = vunpack.c.l.b16 %v43
  %v231 = vunpack.c.h.b16 %v43
  %v232 = vunpack.c.l.b16 %v44
  %v233 = vunpack.c.h.b16 %v44
  %v234 = vunpack.c.l.b16 %v45
  %v235 = vunpack.c.h.b16 %v45
  %v236 = vunpack.c.l.b16 %v46
  %v237 = vunpack.c.h.b16 %v46
  %v238 = vunpack.c.l.b16 %v47
  %v239 = vunpack.c.h.b16 %v47
  %v240 = vunpack.c.l.b16 %v48
  %v241 = vunpack.c.h.b16 %v48
  %v242 = vunpack.c.l.b16 %v49
  %v243 = vunpack.c.h.b16 %v49
  %v244 = vunpack.c.l.b16 %v50
  %v245 = vunpack.c.h.b16 %v50
  %v246 = vunpack.c.l.b16 %v51
  %v247 = vunpack.c.h.b16 %v51
  %v248 = vunpack.c.l.b16 %v52
  %v249 = vunpack.c.h.b16 %v52
  %v250 = vunpack.c.l.b16 %v53
  %v251 = vunpack.c.h.b16 %v53
  %v252 = vunpack.c.l.b16 %v54
  %v253 = vunpack.c.h.b16 %v54
  %v254 = vunpack.c.l.b16 %v55
  %v255 = vunpack.c.h.b16 %v55
  %v256 = vunpack.c.l.b16 %v56
  %v257 = vunpack.c.h.b16 %v56
  %v258 = vunpack.c.l.b16 %v57
  %v259 = vunpack.c.h.b16 %v57
  %v260 = vunpack.c.l.b16 %v58
  %v261 = vunpack.c.h.b16 %v58
  %v262 = vunpack.c.l.b16 %v59
  %v263 = vunpack.c.h.b16 %v59
  %v264 = vunpack.c.l.b16 %v60
  %v265 = vunpack.c.h.b16 %v60
  %v266 = vunpack.c.l.b16 %v61
  %v267 = vunpack.c.h.b16 %v61
  %v268 = vunpack.c.l.b16 %v62
  %v269 = vunpack.c.h.b16 %v62
  %v270 = vunpack.c.l.b16 %v63
  %v271 = vunpack.c.h.b16 %v63
  %v272 = vunpack.c.l.b16 %v64
  %v273 = vunpack.c.h.b16 %v64
  %v274 = vunpack.c.l.b16 %v65
  %v275 = vunpack.c.h.b16 %v65
  %v276 = vunpack.c.l.b16 %v66
  %v277 = vunpack.c.h.b16 %v66
  %v278 = vunpack.c.l.b16 %v67
  %v279 = vunpack.c.h.b16 %v67
  %v280 = vunpack.c.l.b16 %v68
  %v281 = vunpack.c.h.b16 %v68
  %v282 = vunpack.c.l.b16 %v69
  %v283 = vunpack.c.h.b16 %v69
  %v284 = vunpack.c.l.b16 %v70
  %v285 = vunpack.c.h.b16 %v70
  %v286 = vunpack.c.l.b16 %v71
  %v287 = vunpack.c.h.b16 %v71
  %v288 = vunpack.c.l.b16 %v72
  %v289 = vunpack.c.h.b16 %v72
  %v290 = vunpack.c.l.b16 %v73
  %v291 = vunpack.c.h.b16 %v73
  %v292 = vunpack.c.l.b16 %v74
  %v293 = vunpack.c.h.b16 %v74
  %v294 = vunpack.c.l.b16 %v75
  %v295 = vunpack.c.h.b16 %v75
  %v296 = vunpack.c.l.b16 %v76
  %v297 = vunpack.c.h.b16 %v76
  %v298 = vunpack.c.l.b16 %v77
  %v299 = vunpack.c.h.b16 %v77
  %v300 = vunpack.c.l.b16 %v78
  %v301 = vunpack.c.h.b16 %v78
  %v302 = vunpack.c.l.b16 %v79
  %v303 = vunpack.c.h.b16 %v79
  %v304 = vunpack.c.l.b16 %v80
  %v305 = vunpack.c.h.b16 %v80
  %v306 = vunpack.c.l.b16 %v81
  %v307 = vunpack.c.h.b16 %v81
  %v308 = vunpack.c.l.b16 %v82
  %v309 = vunpack.c.h.b16 %v82
  %v310 = vunpack.c.l.b16 %v83
  %v311 = vunpack.c.h.b16 %v83
  %v312 = vunpack.c.l.b16 %v84
  %v313 = vunpack.c.h.b16 %v84
  %v314 = vunpack.c.l.b16 %v85
  %v315 = vunpack.c.h.b16 %v85
  %v316 = vunpack.c.l.b16 %v86
  %v317 = vunpack.c.h.b16 %v86
  %v318 = vunpack.c.l.b16 %v87
  %v319 = vunpack.c.h.b16 %v87
  %v320 = vunpack.c.l.b16 %v88
  %v321 = vunpack.c.h.b16 %v88
  %v322 = vunpack.c.l.b16 %v89
  %v323 = vunpack.c.h.b16 %v89
  %v324 = vunpack.c.l.b16 %v90
  %v325 = vunpack.c.h.b16 %v90
  %v326 = vunpack.c.l.b16 %v91
  %v327 = vunpack.c.h.b16 %v91
  %v328 = vunpack.c.l.b16 %v92
  %v329 = vunpack.c.h.b16 %v92
  %v330 = vunpack.c.l.b16 %v93
  %v331 = vunpack.c.h.b16 %v93
  %v332 = vunpack.c.l.b16 %v94
  %v333 = vunpack.c.h.b16 %v94
  %v334 = vunpack.c.l.b16 %v95
  %v335 = vunpack.c.h.b16 %v95
  %v336 = vpack.c.b16 %v192, %v176
  %v337 = vpack.c.b16 %v193, %v177
  %v338 = vpack.c.b16 %v194, %v178
  %v339 = vpack.c.b16 %v195, %v179
  %v340 = vpack.c.b16 %v196, %v180
  %v341 = vpack.c.b16 %v197, %v181
  %v342 = vpack.c.b16 %v198, %v182
  %v343 = vpack.c.b16 %v199, %v183
  %v344 = vpack.c.b16 %v200, %v184
  %v345 = vpack.c.b16 %v201, %v185
  %v346 = vpack.c.b16 %v202, %v186
  %v347 = vpack.c.b16 %v203, %v187
  %v348 = vpack.c.b16 %v204, %v188
  %v349 = vpack.c.b16 %v205, %v189
  %v350 = vpack.c.b16 %v206, %v190
  %v351 = vpack.c.b16 %v207, %v191
  %v352 = vpack.c.b16 %v224, %v208
  %v353 = vpack.c.b16 %v225, %v209
  %v354 = vpack.c.b16 %v226, %v210
  %v355 = vpack.c.b16 %v227, %v211
  %v356 = vpack.c.b16 %v228, %v212
  %v357 = vpack.c.b16 %v229, %v213
  %v358 = vpack.c.b16 %v230, %v214
  %v359 = vpack.c.b16 %v231, %v215
  %v360 = vpack.c.b16 %v232, %v216
  %v361 = vpack.c.b16 %v233, %v217
  %v362 = vpack.c.b16 %v234, %v218
  %v363 = vpack.c.b16 %v235, %v219
  %v364 = vpack.c.b16 %v236, %v220
  %v365 = vpack.c.b16 %v237, %v221
  %v366 = vpack.c.b16 %v238, %v222
  %v367 = vpack.c.b16 %v239, %v223
  %v368 = vpack.c.b16 %v256, %v240
  %v369 = vpack.c.b16 %v257, %v241
  %v370 = vpack.c.b16 %v258, %v242
  %v371 = vpack.c.b16 %v259, %v243
  %v372 = vpack.c.b16 %v260, %v244
  %v373 = vpack.c.b16 %v261, %v245
  %v374 = vpack.c.b16 %v262, %v246
  %v375 = vpack.c.b16 %v263, %v247
  %v376 = vpack.c.b16 %v264, %v248
  %v377 = vpack.c.b16 %v265, %v249
  %v378 = vpack.c.b16 %v266, %v250
  %v379 = vpack.c.b16 %v267, %v251
  %v380 = vpack.c.b16 %v268, %v252
  %v381 = vpack.c.b16 %v269, %v253
  %v382 = vpack.c.b16 %v270, %v254
  %v383 = vpack.c.b16 %v271, %v255
  %v384 = vpack.c.b16 %v288, %v272
  %v385 = vpack.c.b16 %v289, %v273
  %v386 = vpack.c.b16 %v290, %v274
  %v387 = vpack.c.b16 %v291, %v275
  %v388 = vpack.c.b16 %v292, %v276
  %v389 = vpack.c.b16 %v293, %v277
  %v390 = vpack.c.b16 %v294, %v278
  %v391 = vpack.c.b16 %v295, %v279
  %v392 = vpack.c.b16 %v296, %v280
  %v393 = vpack.c.b16 %v297, %v281
  %v394 = vpack.c.b16 %v298, %v282
  %v395 = vpack.c.b16 %v299, %v283
  %v396 = vpack.c.b16 %v300, %v284
  %v397 = vpack.c.b16 %v301, %v285
  %v398 = vpack.c.b16 %v302, %v286
  %v399 = vpack.c.b16 %v303, %v287
  %v400 = vpack.c.b16 %v320, %v304
  %v401 = vpack.c.b16 %v321, %v305
  %v402 = vpack.c.b16 %v322, %v306
  %v403 = vpack.c.b16 %v323, %v307
  %v404 = vpack.c.b16 %v324, %v308
  %v405 = vpack.c.b16 %v325, %v309
  %v406 = vpack.c.b16 %v326, %v310
  %v407 = vpack.c.b16 %v327, %v311
  %v408 = vpack.c.b16 %v328, %v312
  %v409 = vpack.c.b16 %v329, %v313
  %v410 = vpack.c.b16 %v330, %v314
  %v411 = vpack.c.b16 %v331, %v315
  %v412 = vpack.c.b16 %v332, %v316
  %v413 = vpack.c.b16 %v333, %v317
  %v414 = vpack.c.b16 %v334, %v318
  %v415 = vpack.c.b16 %v335, %v319
  %vm480 = vcmask 613376
  %v482 = vsel %vm480, %v15, 0
  %vm484 = vcmask 1044480
  %vm485 = vcmask 1045504
  %v486 = vsel %vm484, 4294967295, 65535
  %v487 = vsel %vm485, %v486, 0
  %v489 = vand.u32 %v400, %v487
  %v492 = vand.u32 %v401, %v487
  %v495 = vand.u32 %v402, %v487
  %v498 = vand.u32 %v403, %v487
  %v501 = vand.u32 %v404, %v487
  %v504 = vand.u32 %v405, %v487
  %v507 = vand.u32 %v406, %v487
  %v510 = vand.u32 %v407, %v487
  %v513 = vand.u32 %v408, %v487
  %v516 = vand.u32 %v409, %v487
  %v519 = vand.u32 %v410, %v487
  %v522 = vand.u32 %v411, %v487
  %v525 = vand.u32 %v412, %v487
  %v528 = vand.u32 %v413, %v487
  %v531 = vand.u32 %v414, %v487
  %v534 = vand.u32 %v415, %v487
  %536 = vmatpush.bf16.msra.mxu0 0
  %537 = vmatpush.bf16.msra.mxu0 0
  %538 = vmatpush.bf16.msra.mxu0 0
  %539 = vmatpush.bf16.msra.mxu0 %v489
  %540 = vmatpush.bf16.msra.mxu0 %v384
  %541 = vmatpush.bf16.msra.mxu0 %v368
  %542 = vmatpush.bf16.msra.mxu0 %v352
  %543 = vmatpush.bf16.msra.mxu0 %v336
  %544 = vmatmul.bf16.gmra.mxu0 %v482
  %v545 = vpop.f32.mrf.mxu0
  %v546 = vadd.f32 0.0, %v545
  %v547 = vpop.f32.mrf.mxu0
  %548 = vdwg.mxu0
  %549 = vmatpush.bf16.msra.mxu0 0
  %550 = vmatpush.bf16.msra.mxu0 0
  %551 = vmatpush.bf16.msra.mxu0 0
  %552 = vmatpush.bf16.msra.mxu0 %v492
  %553 = vmatpush.bf16.msra.mxu0 %v385
  %554 = vmatpush.bf16.msra.mxu0 %v369
  %555 = vmatpush.bf16.msra.mxu0 %v353
  %556 = vmatpush.bf16.msra.mxu0 %v337
  %557 = vmatmul.bf16.gmra.mxu0 %v482
  %v558 = vpop.f32.mrf.mxu0
  %v559 = vadd.f32 0.0, %v558
  %v560 = vpop.f32.mrf.mxu0
  %561 = vdwg.mxu0
  %562 = vmatpush.bf16.msra.mxu0 0
  %563 = vmatpush.bf16.msra.mxu0 0
  %564 = vmatpush.bf16.msra.mxu0 0
  %565 = vmatpush.bf16.msra.mxu0 %v495
  %566 = vmatpush.bf16.msra.mxu0 %v386
  %567 = vmatpush.bf16.msra.mxu0 %v370
  %568 = vmatpush.bf16.msra.mxu0 %v354
  %569 = vmatpush.bf16.msra.mxu0 %v338
  %570 = vmatmul.bf16.gmra.mxu0 %v482
  %v571 = vpop.f32.mrf.mxu0
  %v572 = vadd.f32 0.0, %v571
  %v573 = vpop.f32.mrf.mxu0
  %574 = vdwg.mxu0
  %575 = vmatpush.bf16.msra.mxu0 0
  %576 = vmatpush.bf16.msra.mxu0 0
  %577 = vmatpush.bf16.msra.mxu0 0
  %578 = vmatpush.bf16.msra.mxu0 %v498
  %579 = vmatpush.bf16.msra.mxu0 %v387
  %580 = vmatpush.bf16.msra.mxu0 %v371
  %581 = vmatpush.bf16.msra.mxu0 %v355
  %582 = vmatpush.bf16.msra.mxu0 %v339
  %583 = vmatmul.bf16.gmra.mxu0 %v482
  %v584 = vpop.f32.mrf.mxu0
  %v585 = vadd.f32 0.0, %v584
  %v586 = vpop.f32.mrf.mxu0
  %587 = vdwg.mxu0
  %588 = vmatpush.bf16.msra.mxu0 0
  %589 = vmatpush.bf16.msra.mxu0 0
  %590 = vmatpush.bf16.msra.mxu0 0
  %591 = vmatpush.bf16.msra.mxu0 %v501
  %592 = vmatpush.bf16.msra.mxu0 %v388
  %593 = vmatpush.bf16.msra.mxu0 %v372
  %594 = vmatpush.bf16.msra.mxu0 %v356
  %595 = vmatpush.bf16.msra.mxu0 %v340
  %596 = vmatmul.bf16.gmra.mxu0 %v482
  %v597 = vpop.f32.mrf.mxu0
  %v598 = vadd.f32 0.0, %v597
  %v599 = vpop.f32.mrf.mxu0
  %600 = vdwg.mxu0
  %601 = vmatpush.bf16.msra.mxu0 0
  %602 = vmatpush.bf16.msra.mxu0 0
  %603 = vmatpush.bf16.msra.mxu0 0
  %604 = vmatpush.bf16.msra.mxu0 %v504
  %605 = vmatpush.bf16.msra.mxu0 %v389
  %606 = vmatpush.bf16.msra.mxu0 %v373
  %607 = vmatpush.bf16.msra.mxu0 %v357
  %608 = vmatpush.bf16.msra.mxu0 %v341
  %609 = vmatmul.bf16.gmra.mxu0 %v482
  %v610 = vpop.f32.mrf.mxu0
  %v611 = vadd.f32 0.0, %v610
  %v612 = vpop.f32.mrf.mxu0
  %613 = vdwg.mxu0
  %614 = vmatpush.bf16.msra.mxu0 0
  %615 = vmatpush.bf16.msra.mxu0 0
  %616 = vmatpush.bf16.msra.mxu0 0
  %617 = vmatpush.bf16.msra.mxu0 %v507
  %618 = vmatpush.bf16.msra.mxu0 %v390
  %619 = vmatpush.bf16.msra.mxu0 %v374
  %620 = vmatpush.bf16.msra.mxu0 %v358
  %621 = vmatpush.bf16.msra.mxu0 %v342
  %622 = vmatmul.bf16.gmra.mxu0 %v482
  %v623 = vpop.f32.mrf.mxu0
  %v624 = vadd.f32 0.0, %v623
  %v625 = vpop.f32.mrf.mxu0
  %626 = vdwg.mxu0
  %627 = vmatpush.bf16.msra.mxu0 0
  %628 = vmatpush.bf16.msra.mxu0 0
  %629 = vmatpush.bf16.msra.mxu0 0
  %630 = vmatpush.bf16.msra.mxu0 %v510
  %631 = vmatpush.bf16.msra.mxu0 %v391
  %632 = vmatpush.bf16.msra.mxu0 %v375
  %633 = vmatpush.bf16.msra.mxu0 %v359
  %634 = vmatpush.bf16.msra.mxu0 %v343
  %635 = vmatmul.bf16.gmra.mxu0 %v482
  %v636 = vpop.f32.mrf.mxu0
  %v637 = vadd.f32 0.0, %v636
  %v638 = vpop.f32.mrf.mxu0
  %639 = vdwg.mxu0
  %640 = vmatpush.bf16.msra.mxu0 0
  %641 = vmatpush.bf16.msra.mxu0 0
  %642 = vmatpush.bf16.msra.mxu0 0
  %643 = vmatpush.bf16.msra.mxu0 %v513
  %644 = vmatpush.bf16.msra.mxu0 %v392
  %645 = vmatpush.bf16.msra.mxu0 %v376
  %646 = vmatpush.bf16.msra.mxu0 %v360
  %647 = vmatpush.bf16.msra.mxu0 %v344
  %648 = vmatmul.bf16.gmra.mxu0 %v482
  %v649 = vpop.f32.mrf.mxu0
  %v650 = vadd.f32 0.0, %v649
  %v651 = vpop.f32.mrf.mxu0
  %652 = vdwg.mxu0
  %653 = vmatpush.bf16.msra.mxu0 0
  %654 = vmatpush.bf16.msra.mxu0 0
  %655 = vmatpush.bf16.msra.mxu0 0
  %656 = vmatpush.bf16.msra.mxu0 %v516
  %657 = vmatpush.bf16.msra.mxu0 %v393
  %658 = vmatpush.bf16.msra.mxu0 %v377
  %659 = vmatpush.bf16.msra.mxu0 %v361
  %660 = vmatpush.bf16.msra.mxu0 %v345
  %661 = vmatmul.bf16.gmra.mxu0 %v482
  %v662 = vpop.f32.mrf.mxu0
  %v663 = vadd.f32 0.0, %v662
  %v664 = vpop.f32.mrf.mxu0
  %665 = vdwg.mxu0
  %666 = vmatpush.bf16.msra.mxu0 0
  %667 = vmatpush.bf16.msra.mxu0 0
  %668 = vmatpush.bf16.msra.mxu0 0
  %669 = vmatpush.bf16.msra.mxu0 %v519
  %670 = vmatpush.bf16.msra.mxu0 %v394
  %671 = vmatpush.bf16.msra.mxu0 %v378
  %672 = vmatpush.bf16.msra.mxu0 %v362
  %673 = vmatpush.bf16.msra.mxu0 %v346
  %674 = vmatmul.bf16.gmra.mxu0 %v482
  %v675 = vpop.f32.mrf.mxu0
  %v676 = vadd.f32 0.0, %v675
  %v677 = vpop.f32.mrf.mxu0
  %678 = vdwg.mxu0
  %679 = vmatpush.bf16.msra.mxu0 0
  %680 = vmatpush.bf16.msra.mxu0 0
  %681 = vmatpush.bf16.msra.mxu0 0
  %682 = vmatpush.bf16.msra.mxu0 %v522
  %683 = vmatpush.bf16.msra.mxu0 %v395
  %684 = vmatpush.bf16.msra.mxu0 %v379
  %685 = vmatpush.bf16.msra.mxu0 %v363
  %686 = vmatpush.bf16.msra.mxu0 %v347
  %687 = vmatmul.bf16.gmra.mxu0 %v482
  %v688 = vpop.f32.mrf.mxu0
  %v689 = vadd.f32 0.0, %v688
  %v690 = vpop.f32.mrf.mxu0
  %691 = vdwg.mxu0
  %692 = vmatpush.bf16.msra.mxu0 0
  %693 = vmatpush.bf16.msra.mxu0 0
  %694 = vmatpush.bf16.msra.mxu0 0
  %695 = vmatpush.bf16.msra.mxu0 %v525
  %696 = vmatpush.bf16.msra.mxu0 %v396
  %697 = vmatpush.bf16.msra.mxu0 %v380
  %698 = vmatpush.bf16.msra.mxu0 %v364
  %699 = vmatpush.bf16.msra.mxu0 %v348
  %700 = vmatmul.bf16.gmra.mxu0 %v482
  %v701 = vpop.f32.mrf.mxu0
  %v702 = vadd.f32 0.0, %v701
  %v703 = vpop.f32.mrf.mxu0
  %704 = vdwg.mxu0
  %705 = vmatpush.bf16.msra.mxu0 0
  %706 = vmatpush.bf16.msra.mxu0 0
  %707 = vmatpush.bf16.msra.mxu0 0
  %708 = vmatpush.bf16.msra.mxu0 %v528
  %709 = vmatpush.bf16.msra.mxu0 %v397
  %710 = vmatpush.bf16.msra.mxu0 %v381
  %711 = vmatpush.bf16.msra.mxu0 %v365
  %712 = vmatpush.bf16.msra.mxu0 %v349
  %713 = vmatmul.bf16.gmra.mxu0 %v482
  %v714 = vpop.f32.mrf.mxu0
  %v715 = vadd.f32 0.0, %v714
  %v716 = vpop.f32.mrf.mxu0
  %717 = vdwg.mxu0
  %718 = vmatpush.bf16.msra.mxu0 0
  %719 = vmatpush.bf16.msra.mxu0 0
  %720 = vmatpush.bf16.msra.mxu0 0
  %721 = vmatpush.bf16.msra.mxu0 %v531
  %722 = vmatpush.bf16.msra.mxu0 %v398
  %723 = vmatpush.bf16.msra.mxu0 %v382
  %724 = vmatpush.bf16.msra.mxu0 %v366
  %725 = vmatpush.bf16.msra.mxu0 %v350
  %726 = vmatmul.bf16.gmra.mxu0 %v482
  %v727 = vpop.f32.mrf.mxu0
  %v728 = vadd.f32 0.0, %v727
  %v729 = vpop.f32.mrf.mxu0
  %730 = vdwg.mxu0
  %731 = vmatpush.bf16.msra.mxu0 0
  %732 = vmatpush.bf16.msra.mxu0 0
  %733 = vmatpush.bf16.msra.mxu0 0
  %734 = vmatpush.bf16.msra.mxu0 %v534
  %735 = vmatpush.bf16.msra.mxu0 %v399
  %736 = vmatpush.bf16.msra.mxu0 %v383
  %737 = vmatpush.bf16.msra.mxu0 %v367
  %738 = vmatpush.bf16.msra.mxu0 %v351
  %739 = vmatmul.bf16.gmra.mxu0 %v482
  %v740 = vpop.f32.mrf.mxu0
  %v741 = vadd.f32 0.0, %v740
  %v742 = vpop.f32.mrf.mxu0
  %743 = vdwg.mxu0
  %v744 = vmax.f32 %v546, %v598
  %v745 = vmax.f32 %v559, %v611
  %v746 = vmax.f32 %v572, %v624
  %v747 = vmax.f32 %v585, %v637
  %v748 = vmax.f32 %v650, %v702
  %v749 = vmax.f32 %v663, %v715
  %v750 = vmax.f32 %v676, %v728
  %v751 = vmax.f32 %v689, %v741
  %v752 = vmax.f32 %v744, %v748
  %v753 = vmax.f32 %v745, %v749
  %v754 = vmax.f32 %v746, %v750
  %v755 = vmax.f32 %v747, %v751
  %v756 = vld [vmem:[%s2] sm:$0xff]
  %758 = vset.pattern.permute.xlu0 0
  %759 = vperm.xlu0 %758, %v756
  %v760 = vpop.permute.xlu0 %759
  %v762 = vadd.f32 %v752, %v760
  %v763 = vadd.f32 %v753, %v760
  %v764 = vadd.f32 %v754, %v760
  %v765 = vadd.f32 %v755, %v760
  %v766 = vmax.f32 %v762, 0.0
  %v767 = vmax.f32 %v763, 0.0
  %v768 = vmax.f32 %v764, 0.0
  %v769 = vmax.f32 %v765, 0.0
  %v770 = vpack.c.bf16 %v767, %v766
  %v771 = vpack.c.bf16 %v769, %v768
  %772 = vst [vmem:[%s3] sm:$0xff] %v770
  %773 = vst [vmem:[%s3 + $0x8] sm:$0xff] %v771
  // Predicated region
  $region14: #{net_forward.2} parent=0 // pred_check
    _
  $region15: #{net_forward.2} parent=0 // pred_check_branch
    %775 = sbr.rel (0) target = $region17
  $region16: #{net_forward.2} parent=0 // pred_region
    _
  $region17: #{net_forward.2} parent=0 // pred_fallthru
    _
  // Predicated region
  $region18: #{net_forward.2} parent=0 // pred_check
    _
  $region19: #{net_forward.2} parent=0 // pred_check_branch
    %777 = sbr.rel (0) target = $region21
  $region20: #{net_forward.2} parent=0 // pred_region
    _
  $region21: #{net_forward.2} parent=0 // pred_fallthru
    _

// kernel: net_forward.3
$region0: #{net_forward.3}
  #allocation0 [shape = 'u32[]', space=smem, size = 0x4, offset = 0x4, fixed_abs, tag = 'smem constant byte address 0x4 - core index']
  #allocation1 [shape = 'u32[72,128]{1,0:T(1,128)}', space=vmem, size = 0x9000, scoped, tag = 'internal scratch']
  %s0 = inlined_call_operand.vmem [shape: bf16[1024,150], index: 0, kind: input, shape index: {}]
  %s1 = inlined_call_operand.vmem [shape: bf16[150,16], index: 1, kind: input, shape index: {}]
  %s2 = inlined_call_operand.vmem [shape: f32[1,1,16], index: 2, kind: input, shape index: {}]
  %s3 = inlined_call_operand.vmem [shape: f32[32,120,16], index: 3, kind: input, shape index: {}]
  %s4 = inlined_call_operand.vmem [shape: f32[1,120], index: 4, kind: input, shape index: {}]
  %s5 = inlined_call_operand.vmem [shape: f32[120,84], index: 5, kind: input, shape index: {}]
  %s6 = inlined_call_operand.vmem [shape: f32[1,84], index: 6, kind: input, shape index: {}]
  %s7 = inlined_call_operand.vmem [shape: f32[84,10], index: 7, kind: input, shape index: {}]
  %s8 = inlined_call_operand.vmem [shape: f32[1,10], index: 8, kind: input, shape index: {}]
  %s9 = inlined_call_operand.vmem [shape: f32[8,10], index: 9, kind: output, shape index: {}]
  %s10 = sld [smem:[#allocation0]]
  $region46: #{net_forward.3} parent=0
    _
  %s12 = ssub.s32 1, %s10
  %s13 = scalar_select 0, %s12, %s10
  // Predicated region
  $region2: #{net_forward.3} parent=0 // pred_check
    _
  $region3: #{net_forward.3} parent=0 // pred_check_branch
    %15 = sbr.rel (0) target = $region5
  $region4: #{net_forward.3} parent=0 // pred_region
    _
  $region5: #{net_forward.3} parent=0 // pred_fallthru
    _
  // Predicated region
  $region6: #{net_forward.3} parent=0 // pred_check
    _
  $region7: #{net_forward.3} parent=0 // pred_check_branch
    %17 = sbr.rel (0) target = $region9
  $region8: #{net_forward.3} parent=0 // pred_region
    _
  $region9: #{net_forward.3} parent=0 // pred_fallthru
    _
  // Predicated region
  $region10: #{net_forward.3} parent=0 // pred_check
    _
  $region11: #{net_forward.3} parent=0 // pred_check_branch
    %19 = sbr.rel (0) target = $region13
  $region12: #{net_forward.3} parent=0 // pred_region
    _
  $region13: #{net_forward.3} parent=0 // pred_fallthru
    _
  // Predicated region
  $region14: #{net_forward.3} parent=0 // pred_check
    _
  $region15: #{net_forward.3} parent=0 // pred_check_branch
    %21 = sbr.rel (0) target = $region17
  $region16: #{net_forward.3} parent=0 // pred_region
    _
  $region17: #{net_forward.3} parent=0 // pred_fallthru
    _
  // Predicated region
  $region18: #{net_forward.3} parent=0 // pred_check
    _
  $region19: #{net_forward.3} parent=0 // pred_check_branch
    %23 = sbr.rel (0) target = $region21
  $region20: #{net_forward.3} parent=0 // pred_region
    _
  $region21: #{net_forward.3} parent=0 // pred_fallthru
    _
  // Predicated region
  $region22: #{net_forward.3} parent=0 // pred_check
    _
  $region23: #{net_forward.3} parent=0 // pred_check_branch
    %25 = sbr.rel (0) target = $region25
  $region24: #{net_forward.3} parent=0 // pred_region
    _
  $region25: #{net_forward.3} parent=0 // pred_fallthru
    _
  // Predicated region
  $region26: #{net_forward.3} parent=0 // pred_check
    _
  $region27: #{net_forward.3} parent=0 // pred_check_branch
    %27 = sbr.rel (0) target = $region29
  $region28: #{net_forward.3} parent=0 // pred_region
    _
  $region29: #{net_forward.3} parent=0 // pred_fallthru
    _
  // Predicated region
  $region30: #{net_forward.3} parent=0 // pred_check
    _
  $region31: #{net_forward.3} parent=0 // pred_check_branch
    %29 = sbr.rel (0) target = $region33
  $region32: #{net_forward.3} parent=0 // pred_region
    _
  $region33: #{net_forward.3} parent=0 // pred_fallthru
    _
  // Predicated region
  $region34: #{net_forward.3} parent=0 // pred_check
    _
  $region35: #{net_forward.3} parent=0 // pred_check_branch
    %31 = sbr.rel (0) target = $region37
  $region36: #{net_forward.3} parent=0 // pred_region
    _
  $region37: #{net_forward.3} parent=0 // pred_fallthru
    _
  %v33 = vld [vmem:[%s0] sm:$0xff]
  %v34 = vld [vmem:[%s0 + $0x8] sm:$0xff]
  %v35 = vld [vmem:[%s0 + $0x10] sm:$0xff]
  %v36 = vld [vmem:[%s0 + $0x18] sm:$0xff]
  %v37 = vld [vmem:[%s0 + $0x20] sm:$0xff]
  %v38 = vld [vmem:[%s0 + $0x28] sm:$0xff]
  %v39 = vld [vmem:[%s0 + $0x30] sm:$0xff]
  %v40 = vld [vmem:[%s0 + $0x38] sm:$0xff]
  %v41 = vld [vmem:[%s0 + $0x40] sm:$0xff]
  %v42 = vld [vmem:[%s0 + $0x48] sm:$0xff]
  %v43 = vld [vmem:[%s0 + $0x50] sm:$0xff]
  %v44 = vld [vmem:[%s0 + $0x58] sm:$0xff]
  %v45 = vld [vmem:[%s0 + $0x60] sm:$0xff]
  %v46 = vld [vmem:[%s0 + $0x68] sm:$0xff]
  %v47 = vld [vmem:[%s0 + $0x70] sm:$0xff]
  %v48 = vld [vmem:[%s0 + $0x78] sm:$0xff]
  %v49 = vld [vmem:[%s0 + $0x80] sm:$0xff]
  %v50 = vld [vmem:[%s0 + $0x88] sm:$0xff]
  %v51 = vld [vmem:[%s0 + $0x90] sm:$0xff]
  %v52 = vld [vmem:[%s0 + $0x98] sm:$0xff]
  %v53 = vld [vmem:[%s0 + $0xa0] sm:$0xff]
  %v54 = vld [vmem:[%s0 + $0xa8] sm:$0xff]
  %v55 = vld [vmem:[%s0 + $0xb0] sm:$0xff]
  %v56 = vld [vmem:[%s0 + $0xb8] sm:$0xff]
  %v57 = vld [vmem:[%s0 + $0xc0] sm:$0xff]
  %v58 = vld [vmem:[%s0 + $0xc8] sm:$0xff]
  %v59 = vld [vmem:[%s0 + $0xd0] sm:$0xff]
  %v60 = vld [vmem:[%s0 + $0xd8] sm:$0xff]
  %v61 = vld [vmem:[%s0 + $0xe0] sm:$0xff]
  %v62 = vld [vmem:[%s0 + $0xe8] sm:$0xff]
  %v63 = vld [vmem:[%s0 + $0xf0] sm:$0xff]
  %v64 = vld [vmem:[%s0 + $0xf8] sm:$0xff]
  %v65 = vld [vmem:[%s0 + $0x100] sm:$0xff]
  %v66 = vld [vmem:[%s0 + $0x108] sm:$0xff]
  %v67 = vld [vmem:[%s0 + $0x110] sm:$0xff]
  %v68 = vld [vmem:[%s0 + $0x118] sm:$0xff]
  %v69 = vld [vmem:[%s0 + $0x120] sm:$0xff]
  %v70 = vld [vmem:[%s0 + $0x128] sm:$0xff]
  %v71 = vld [vmem:[%s0 + $0x130] sm:$0xff]
  %v72 = vld [vmem:[%s0 + $0x138] sm:$0xff]
  %v73 = vld [vmem:[%s0 + $0x140] sm:$0xff]
  %v74 = vld [vmem:[%s0 + $0x148] sm:$0xff]
  %v75 = vld [vmem:[%s0 + $0x150] sm:$0xff]
  %v76 = vld [vmem:[%s0 + $0x158] sm:$0xff]
  %v77 = vld [vmem:[%s0 + $0x160] sm:$0xff]
  %v78 = vld [vmem:[%s0 + $0x168] sm:$0xff]
  %v79 = vld [vmem:[%s0 + $0x170] sm:$0xff]
  %v80 = vld [vmem:[%s0 + $0x178] sm:$0xff]
  %v81 = vld [vmem:[%s0 + $0x180] sm:$0xff]
  %v82 = vld [vmem:[%s0 + $0x188] sm:$0xff]
  %v83 = vld [vmem:[%s0 + $0x190] sm:$0xff]
  %v84 = vld [vmem:[%s0 + $0x198] sm:$0xff]
  %v85 = vld [vmem:[%s0 + $0x1a0] sm:$0xff]
  %v86 = vld [vmem:[%s0 + $0x1a8] sm:$0xff]
  %v87 = vld [vmem:[%s0 + $0x1b0] sm:$0xff]
  %v88 = vld [vmem:[%s0 + $0x1b8] sm:$0xff]
  %v89 = vld [vmem:[%s0 + $0x1c0] sm:$0xff]
  %v90 = vld [vmem:[%s0 + $0x1c8] sm:$0xff]
  %v91 = vld [vmem:[%s0 + $0x1d0] sm:$0xff]
  %v92 = vld [vmem:[%s0 + $0x1d8] sm:$0xff]
  %v93 = vld [vmem:[%s0 + $0x1e0] sm:$0xff]
  %v94 = vld [vmem:[%s0 + $0x1e8] sm:$0xff]
  %v95 = vld [vmem:[%s0 + $0x1f0] sm:$0xff]
  %v96 = vld [vmem:[%s0 + $0x1f8] sm:$0xff]
  %v97 = vld [vmem:[%s0 + $0x200] sm:$0xff]
  %v98 = vld [vmem:[%s0 + $0x208] sm:$0xff]
  %v99 = vld [vmem:[%s0 + $0x210] sm:$0xff]
  %v100 = vld [vmem:[%s0 + $0x218] sm:$0xff]
  %v101 = vld [vmem:[%s0 + $0x220] sm:$0xff]
  %v102 = vld [vmem:[%s0 + $0x228] sm:$0xff]
  %v103 = vld [vmem:[%s0 + $0x230] sm:$0xff]
  %v104 = vld [vmem:[%s0 + $0x238] sm:$0xff]
  %v105 = vld [vmem:[%s0 + $0x240] sm:$0xff]
  %v106 = vld [vmem:[%s0 + $0x248] sm:$0xff]
  %v107 = vld [vmem:[%s0 + $0x250] sm:$0xff]
  %v108 = vld [vmem:[%s0 + $0x258] sm:$0xff]
  %v109 = vld [vmem:[%s0 + $0x260] sm:$0xff]
  %v110 = vld [vmem:[%s0 + $0x268] sm:$0xff]
  %v111 = vld [vmem:[%s0 + $0x270] sm:$0xff]
  %v112 = vld [vmem:[%s0 + $0x278] sm:$0xff]
  %v113 = vld [vmem:[%s0 + $0x280] sm:$0xff]
  %v114 = vld [vmem:[%s0 + $0x288] sm:$0xff]
  %v115 = vld [vmem:[%s0 + $0x290] sm:$0xff]
  %v116 = vld [vmem:[%s0 + $0x298] sm:$0xff]
  %v117 = vld [vmem:[%s0 + $0x2a0] sm:$0xff]
  %v118 = vld [vmem:[%s0 + $0x2a8] sm:$0xff]
  %v119 = vld [vmem:[%s0 + $0x2b0] sm:$0xff]
  %v120 = vld [vmem:[%s0 + $0x2b8] sm:$0xff]
  %v121 = vld [vmem:[%s0 + $0x2c0] sm:$0xff]
  %v122 = vld [vmem:[%s0 + $0x2c8] sm:$0xff]
  %v123 = vld [vmem:[%s0 + $0x2d0] sm:$0xff]
  %v124 = vld [vmem:[%s0 + $0x2d8] sm:$0xff]
  %v125 = vld [vmem:[%s0 + $0x2e0] sm:$0xff]
  %v126 = vld [vmem:[%s0 + $0x2e8] sm:$0xff]
  %v127 = vld [vmem:[%s0 + $0x2f0] sm:$0xff]
  %v128 = vld [vmem:[%s0 + $0x2f8] sm:$0xff]
  %v129 = vld [vmem:[%s0 + $0x300] sm:$0xff]
  %v130 = vld [vmem:[%s0 + $0x308] sm:$0xff]
  %v131 = vld [vmem:[%s0 + $0x310] sm:$0xff]
  %v132 = vld [vmem:[%s0 + $0x318] sm:$0xff]
  %v133 = vld [vmem:[%s0 + $0x320] sm:$0xff]
  %v134 = vld [vmem:[%s0 + $0x328] sm:$0xff]
  %v135 = vld [vmem:[%s0 + $0x330] sm:$0xff]
  %v136 = vld [vmem:[%s0 + $0x338] sm:$0xff]
  %v137 = vld [vmem:[%s0 + $0x340] sm:$0xff]
  %v138 = vld [vmem:[%s0 + $0x348] sm:$0xff]
  %v139 = vld [vmem:[%s0 + $0x350] sm:$0xff]
  %v140 = vld [vmem:[%s0 + $0x358] sm:$0xff]
  %v141 = vld [vmem:[%s0 + $0x360] sm:$0xff]
  %v142 = vld [vmem:[%s0 + $0x368] sm:$0xff]
  %v143 = vld [vmem:[%s0 + $0x370] sm:$0xff]
  %v144 = vld [vmem:[%s0 + $0x378] sm:$0xff]
  %v145 = vld [vmem:[%s0 + $0x380] sm:$0xff]
  %v146 = vld [vmem:[%s0 + $0x388] sm:$0xff]
  %v147 = vld [vmem:[%s0 + $0x390] sm:$0xff]
  %v148 = vld [vmem:[%s0 + $0x398] sm:$0xff]
  %v149 = vld [vmem:[%s0 + $0x3a0] sm:$0xff]
  %v150 = vld [vmem:[%s0 + $0x3a8] sm:$0xff]
  %v151 = vld [vmem:[%s0 + $0x3b0] sm:$0xff]
  %v152 = vld [vmem:[%s0 + $0x3b8] sm:$0xff]
  %v153 = vld [vmem:[%s0 + $0x3c0] sm:$0xff]
  %v154 = vld [vmem:[%s0 + $0x3c8] sm:$0xff]
  %v155 = vld [vmem:[%s0 + $0x3d0] sm:$0xff]
  %v156 = vld [vmem:[%s0 + $0x3d8] sm:$0xff]
  %v157 = vld [vmem:[%s0 + $0x3e0] sm:$0xff]
  %v158 = vld [vmem:[%s0 + $0x3e8] sm:$0xff]
  %v159 = vld [vmem:[%s0 + $0x3f0] sm:$0xff]
  %v160 = vld [vmem:[%s0 + $0x3f8] sm:$0xff]
  %v161 = vld [vmem:[%s1] sm:$0xf]
  %v162 = vld [vmem:[%s1 + $0x4] sm:$0xf]
  %v163 = vld [vmem:[%s1 + $0x8] sm:$0xf]
  %v164 = vld [vmem:[%s1 + $0xc] sm:$0xf]
  %v165 = vld [vmem:[%s1 + $0x10] sm:$0xf]
  %v166 = vld [vmem:[%s1 + $0x14] sm:$0xf]
  %v167 = vld [vmem:[%s1 + $0x18] sm:$0xf]
  %v168 = vld [vmem:[%s1 + $0x1c] sm:$0xf]
  %v169 = vld [vmem:[%s1 + $0x20] sm:$0xf]
  %v170 = vld [vmem:[%s1 + $0x24] sm:$0xf]
  %v171 = vld [vmem:[%s1 + $0x28] sm:$0xf]
  %v172 = vld [vmem:[%s1 + $0x2c] sm:$0xf]
  %v173 = vld [vmem:[%s1 + $0x30] sm:$0xf]
  %v174 = vld [vmem:[%s1 + $0x34] sm:$0xf]
  %v175 = vld [vmem:[%s1 + $0x38] sm:$0xf]
  %v176 = vld [vmem:[%s1 + $0x3c] sm:$0xf]
  %v177 = vld [vmem:[%s1 + $0x40] sm:$0xf]
  %v178 = vld [vmem:[%s1 + $0x44] sm:$0xf]
  %v179 = vld [vmem:[%s1 + $0x48] sm:$0x7]
  %v308 = vunpack.c.l.b16 %v33
  %v309 = vunpack.c.h.b16 %v33
  %v310 = vunpack.c.l.b16 %v34
  %v311 = vunpack.c.h.b16 %v34
  %v312 = vunpack.c.l.b16 %v35
  %v313 = vunpack.c.h.b16 %v35
  %v314 = vunpack.c.l.b16 %v36
  %v315 = vunpack.c.h.b16 %v36
  %v316 = vunpack.c.l.b16 %v37
  %v317 = vunpack.c.h.b16 %v37
  %v318 = vunpack.c.l.b16 %v38
  %v319 = vunpack.c.h.b16 %v38
  %v320 = vunpack.c.l.b16 %v39
  %v321 = vunpack.c.h.b16 %v39
  %v322 = vunpack.c.l.b16 %v40
  %v323 = vunpack.c.h.b16 %v40
  %v324 = vunpack.c.l.b16 %v41
  %v325 = vunpack.c.h.b16 %v41
  %v326 = vunpack.c.l.b16 %v42
  %v327 = vunpack.c.h.b16 %v42
  %v328 = vunpack.c.l.b16 %v43
  %v329 = vunpack.c.h.b16 %v43
  %v330 = vunpack.c.l.b16 %v44
  %v331 = vunpack.c.h.b16 %v44
  %v332 = vunpack.c.l.b16 %v45
  %v333 = vunpack.c.h.b16 %v45
  %v334 = vunpack.c.l.b16 %v46
  %v335 = vunpack.c.h.b16 %v46
  %v336 = vunpack.c.l.b16 %v47
  %v337 = vunpack.c.h.b16 %v47
  %v338 = vunpack.c.l.b16 %v48
  %v339 = vunpack.c.h.b16 %v48
  %v340 = vunpack.c.l.b16 %v49
  %v341 = vunpack.c.h.b16 %v49
  %v342 = vunpack.c.l.b16 %v50
  %v343 = vunpack.c.h.b16 %v50
  %v344 = vunpack.c.l.b16 %v51
  %v345 = vunpack.c.h.b16 %v51
  %v346 = vunpack.c.l.b16 %v52
  %v347 = vunpack.c.h.b16 %v52
  %v348 = vunpack.c.l.b16 %v53
  %v349 = vunpack.c.h.b16 %v53
  %v350 = vunpack.c.l.b16 %v54
  %v351 = vunpack.c.h.b16 %v54
  %v352 = vunpack.c.l.b16 %v55
  %v353 = vunpack.c.h.b16 %v55
  %v354 = vunpack.c.l.b16 %v56
  %v355 = vunpack.c.h.b16 %v56
  %v356 = vunpack.c.l.b16 %v57
  %v357 = vunpack.c.h.b16 %v57
  %v358 = vunpack.c.l.b16 %v58
  %v359 = vunpack.c.h.b16 %v58
  %v360 = vunpack.c.l.b16 %v59
  %v361 = vunpack.c.h.b16 %v59
  %v362 = vunpack.c.l.b16 %v60
  %v363 = vunpack.c.h.b16 %v60
  %v364 = vunpack.c.l.b16 %v61
  %v365 = vunpack.c.h.b16 %v61
  %v366 = vunpack.c.l.b16 %v62
  %v367 = vunpack.c.h.b16 %v62
  %v368 = vunpack.c.l.b16 %v63
  %v369 = vunpack.c.h.b16 %v63
  %v370 = vunpack.c.l.b16 %v64
  %v371 = vunpack.c.h.b16 %v64
  %v372 = vunpack.c.l.b16 %v65
  %v373 = vunpack.c.h.b16 %v65
  %v374 = vunpack.c.l.b16 %v66
  %v375 = vunpack.c.h.b16 %v66
  %v376 = vunpack.c.l.b16 %v67
  %v377 = vunpack.c.h.b16 %v67
  %v378 = vunpack.c.l.b16 %v68
  %v379 = vunpack.c.h.b16 %v68
  %v380 = vunpack.c.l.b16 %v69
  %v381 = vunpack.c.h.b16 %v69
  %v382 = vunpack.c.l.b16 %v70
  %v383 = vunpack.c.h.b16 %v70
  %v384 = vunpack.c.l.b16 %v71
  %v385 = vunpack.c.h.b16 %v71
  %v386 = vunpack.c.l.b16 %v72
  %v387 = vunpack.c.h.b16 %v72
  %v388 = vunpack.c.l.b16 %v73
  %v389 = vunpack.c.h.b16 %v73
  %v390 = vunpack.c.l.b16 %v74
  %v391 = vunpack.c.h.b16 %v74
  %v392 = vunpack.c.l.b16 %v75
  %v393 = vunpack.c.h.b16 %v75
  %v394 = vunpack.c.l.b16 %v76
  %v395 = vunpack.c.h.b16 %v76
  %v396 = vunpack.c.l.b16 %v77
  %v397 = vunpack.c.h.b16 %v77
  %v398 = vunpack.c.l.b16 %v78
  %v399 = vunpack.c.h.b16 %v78
  %v400 = vunpack.c.l.b16 %v79
  %v401 = vunpack.c.h.b16 %v79
  %v402 = vunpack.c.l.b16 %v80
  %v403 = vunpack.c.h.b16 %v80
  %v404 = vunpack.c.l.b16 %v81
  %v405 = vunpack.c.h.b16 %v81
  %v406 = vunpack.c.l.b16 %v82
  %v407 = vunpack.c.h.b16 %v82
  %v408 = vunpack.c.l.b16 %v83
  %v409 = vunpack.c.h.b16 %v83
  %v410 = vunpack.c.l.b16 %v84
  %v411 = vunpack.c.h.b16 %v84
  %v412 = vunpack.c.l.b16 %v85
  %v413 = vunpack.c.h.b16 %v85
  %v414 = vunpack.c.l.b16 %v86
  %v415 = vunpack.c.h.b16 %v86
  %v416 = vunpack.c.l.b16 %v87
  %v417 = vunpack.c.h.b16 %v87
  %v418 = vunpack.c.l.b16 %v88
  %v419 = vunpack.c.h.b16 %v88
  %v420 = vunpack.c.l.b16 %v89
  %v421 = vunpack.c.h.b16 %v89
  %v422 = vunpack.c.l.b16 %v90
  %v423 = vunpack.c.h.b16 %v90
  %v424 = vunpack.c.l.b16 %v91
  %v425 = vunpack.c.h.b16 %v91
  %v426 = vunpack.c.l.b16 %v92
  %v427 = vunpack.c.h.b16 %v92
  %v428 = vunpack.c.l.b16 %v93
  %v429 = vunpack.c.h.b16 %v93
  %v430 = vunpack.c.l.b16 %v94
  %v431 = vunpack.c.h.b16 %v94
  %v432 = vunpack.c.l.b16 %v95
  %v433 = vunpack.c.h.b16 %v95
  %v434 = vunpack.c.l.b16 %v96
  %v435 = vunpack.c.h.b16 %v96
  %v436 = vunpack.c.l.b16 %v97
  %v437 = vunpack.c.h.b16 %v97
  %v438 = vunpack.c.l.b16 %v98
  %v439 = vunpack.c.h.b16 %v98
  %v440 = vunpack.c.l.b16 %v99
  %v441 = vunpack.c.h.b16 %v99
  %v442 = vunpack.c.l.b16 %v100
  %v443 = vunpack.c.h.b16 %v100
  %v444 = vunpack.c.l.b16 %v101
  %v445 = vunpack.c.h.b16 %v101
  %v446 = vunpack.c.l.b16 %v102
  %v447 = vunpack.c.h.b16 %v102
  %v448 = vunpack.c.l.b16 %v103
  %v449 = vunpack.c.h.b16 %v103
  %v450 = vunpack.c.l.b16 %v104
  %v451 = vunpack.c.h.b16 %v104
  %v452 = vunpack.c.l.b16 %v105
  %v453 = vunpack.c.h.b16 %v105
  %v454 = vunpack.c.l.b16 %v106
  %v455 = vunpack.c.h.b16 %v106
  %v456 = vunpack.c.l.b16 %v107
  %v457 = vunpack.c.h.b16 %v107
  %v458 = vunpack.c.l.b16 %v108
  %v459 = vunpack.c.h.b16 %v108
  %v460 = vunpack.c.l.b16 %v109
  %v461 = vunpack.c.h.b16 %v109
  %v462 = vunpack.c.l.b16 %v110
  %v463 = vunpack.c.h.b16 %v110
  %v464 = vunpack.c.l.b16 %v111
  %v465 = vunpack.c.h.b16 %v111
  %v466 = vunpack.c.l.b16 %v112
  %v467 = vunpack.c.h.b16 %v112
  %v468 = vunpack.c.l.b16 %v113
  %v469 = vunpack.c.h.b16 %v113
  %v470 = vunpack.c.l.b16 %v114
  %v471 = vunpack.c.h.b16 %v114
  %v472 = vunpack.c.l.b16 %v115
  %v473 = vunpack.c.h.b16 %v115
  %v474 = vunpack.c.l.b16 %v116
  %v475 = vunpack.c.h.b16 %v116
  %v476 = vunpack.c.l.b16 %v117
  %v477 = vunpack.c.h.b16 %v117
  %v478 = vunpack.c.l.b16 %v118
  %v479 = vunpack.c.h.b16 %v118
  %v480 = vunpack.c.l.b16 %v119
  %v481 = vunpack.c.h.b16 %v119
  %v482 = vunpack.c.l.b16 %v120
  %v483 = vunpack.c.h.b16 %v120
  %v484 = vunpack.c.l.b16 %v121
  %v485 = vunpack.c.h.b16 %v121
  %v486 = vunpack.c.l.b16 %v122
  %v487 = vunpack.c.h.b16 %v122
  %v488 = vunpack.c.l.b16 %v123
  %v489 = vunpack.c.h.b16 %v123
  %v490 = vunpack.c.l.b16 %v124
  %v491 = vunpack.c.h.b16 %v124
  %v492 = vunpack.c.l.b16 %v125
  %v493 = vunpack.c.h.b16 %v125
  %v494 = vunpack.c.l.b16 %v126
  %v495 = vunpack.c.h.b16 %v126
  %v496 = vunpack.c.l.b16 %v127
  %v497 = vunpack.c.h.b16 %v127
  %v498 = vunpack.c.l.b16 %v128
  %v499 = vunpack.c.h.b16 %v128
  %v500 = vunpack.c.l.b16 %v129
  %v501 = vunpack.c.h.b16 %v129
  %v502 = vunpack.c.l.b16 %v130
  %v503 = vunpack.c.h.b16 %v130
  %v504 = vunpack.c.l.b16 %v131
  %v505 = vunpack.c.h.b16 %v131
  %v506 = vunpack.c.l.b16 %v132
  %v507 = vunpack.c.h.b16 %v132
  %v508 = vunpack.c.l.b16 %v133
  %v509 = vunpack.c.h.b16 %v133
  %v510 = vunpack.c.l.b16 %v134
  %v511 = vunpack.c.h.b16 %v134
  %v512 = vunpack.c.l.b16 %v135
  %v513 = vunpack.c.h.b16 %v135
  %v514 = vunpack.c.l.b16 %v136
  %v515 = vunpack.c.h.b16 %v136
  %v516 = vunpack.c.l.b16 %v137
  %v517 = vunpack.c.h.b16 %v137
  %v518 = vunpack.c.l.b16 %v138
  %v519 = vunpack.c.h.b16 %v138
  %v520 = vunpack.c.l.b16 %v139
  %v521 = vunpack.c.h.b16 %v139
  %v522 = vunpack.c.l.b16 %v140
  %v523 = vunpack.c.h.b16 %v140
  %v524 = vunpack.c.l.b16 %v141
  %v525 = vunpack.c.h.b16 %v141
  %v526 = vunpack.c.l.b16 %v142
  %v527 = vunpack.c.h.b16 %v142
  %v528 = vunpack.c.l.b16 %v143
  %v529 = vunpack.c.h.b16 %v143
  %v530 = vunpack.c.l.b16 %v144
  %v531 = vunpack.c.h.b16 %v144
  %v532 = vunpack.c.l.b16 %v145
  %v533 = vunpack.c.h.b16 %v145
  %v534 = vunpack.c.l.b16 %v146
  %v535 = vunpack.c.h.b16 %v146
  %v536 = vunpack.c.l.b16 %v147
  %v537 = vunpack.c.h.b16 %v147
  %v538 = vunpack.c.l.b16 %v148
  %v539 = vunpack.c.h.b16 %v148
  %v540 = vunpack.c.l.b16 %v149
  %v541 = vunpack.c.h.b16 %v149
  %v542 = vunpack.c.l.b16 %v150
  %v543 = vunpack.c.h.b16 %v150
  %v544 = vunpack.c.l.b16 %v151
  %v545 = vunpack.c.h.b16 %v151
  %v546 = vunpack.c.l.b16 %v152
  %v547 = vunpack.c.h.b16 %v152
  %v548 = vunpack.c.l.b16 %v153
  %v549 = vunpack.c.h.b16 %v153
  %v550 = vunpack.c.l.b16 %v154
  %v551 = vunpack.c.h.b16 %v154
  %v552 = vunpack.c.l.b16 %v155
  %v553 = vunpack.c.h.b16 %v155
  %v554 = vunpack.c.l.b16 %v156
  %v555 = vunpack.c.h.b16 %v156
  %v556 = vunpack.c.l.b16 %v157
  %v557 = vunpack.c.h.b16 %v157
  %v558 = vunpack.c.l.b16 %v158
  %v559 = vunpack.c.h.b16 %v158
  %v560 = vunpack.c.l.b16 %v159
  %v561 = vunpack.c.h.b16 %v159
  %v562 = vunpack.c.l.b16 %v160
  %v563 = vunpack.c.h.b16 %v160
  %v564 = vpack.c.b16 %v310, %v308
  %v565 = vpack.c.b16 %v311, %v309
  %v566 = vpack.c.b16 %v314, %v312
  %v567 = vpack.c.b16 %v315, %v313
  %v568 = vpack.c.b16 %v318, %v316
  %v569 = vpack.c.b16 %v319, %v317
  %v570 = vpack.c.b16 %v322, %v320
  %v571 = vpack.c.b16 %v323, %v321
  %v572 = vpack.c.b16 %v326, %v324
  %v573 = vpack.c.b16 %v327, %v325
  %v574 = vpack.c.b16 %v330, %v328
  %v575 = vpack.c.b16 %v331, %v329
  %v576 = vpack.c.b16 %v334, %v332
  %v577 = vpack.c.b16 %v335, %v333
  %v578 = vpack.c.b16 %v338, %v336
  %v579 = vpack.c.b16 %v339, %v337
  %v580 = vpack.c.b16 %v342, %v340
  %v581 = vpack.c.b16 %v343, %v341
  %v582 = vpack.c.b16 %v346, %v344
  %v583 = vpack.c.b16 %v347, %v345
  %v584 = vpack.c.b16 %v350, %v348
  %v585 = vpack.c.b16 %v351, %v349
  %v586 = vpack.c.b16 %v354, %v352
  %v587 = vpack.c.b16 %v355, %v353
  %v588 = vpack.c.b16 %v358, %v356
  %v589 = vpack.c.b16 %v359, %v357
  %v590 = vpack.c.b16 %v362, %v360
  %v591 = vpack.c.b16 %v363, %v361
  %v592 = vpack.c.b16 %v366, %v364
  %v593 = vpack.c.b16 %v367, %v365
  %v594 = vpack.c.b16 %v370, %v368
  %v595 = vpack.c.b16 %v371, %v369
  %v596 = vpack.c.b16 %v374, %v372
  %v597 = vpack.c.b16 %v375, %v373
  %v598 = vpack.c.b16 %v378, %v376
  %v599 = vpack.c.b16 %v379, %v377
  %v600 = vpack.c.b16 %v382, %v380
  %v601 = vpack.c.b16 %v383, %v381
  %v602 = vpack.c.b16 %v386, %v384
  %v603 = vpack.c.b16 %v387, %v385
  %v604 = vpack.c.b16 %v390, %v388
  %v605 = vpack.c.b16 %v391, %v389
  %v606 = vpack.c.b16 %v394, %v392
  %v607 = vpack.c.b16 %v395, %v393
  %v608 = vpack.c.b16 %v398, %v396
  %v609 = vpack.c.b16 %v399, %v397
  %v610 = vpack.c.b16 %v402, %v400
  %v611 = vpack.c.b16 %v403, %v401
  %v612 = vpack.c.b16 %v406, %v404
  %v613 = vpack.c.b16 %v407, %v405
  %v614 = vpack.c.b16 %v410, %v408
  %v615 = vpack.c.b16 %v411, %v409
  %v616 = vpack.c.b16 %v414, %v412
  %v617 = vpack.c.b16 %v415, %v413
  %v618 = vpack.c.b16 %v418, %v416
  %v619 = vpack.c.b16 %v419, %v417
  %v620 = vpack.c.b16 %v422, %v420
  %v621 = vpack.c.b16 %v423, %v421
  %v622 = vpack.c.b16 %v426, %v424
  %v623 = vpack.c.b16 %v427, %v425
  %v624 = vpack.c.b16 %v430, %v428
  %v625 = vpack.c.b16 %v431, %v429
  %v626 = vpack.c.b16 %v434, %v432
  %v627 = vpack.c.b16 %v435, %v433
  %v628 = vpack.c.b16 %v438, %v436
  %v629 = vpack.c.b16 %v439, %v437
  %v630 = vpack.c.b16 %v442, %v440
  %v631 = vpack.c.b16 %v443, %v441
  %v632 = vpack.c.b16 %v446, %v444
  %v633 = vpack.c.b16 %v447, %v445
  %v634 = vpack.c.b16 %v450, %v448
  %v635 = vpack.c.b16 %v451, %v449
  %v636 = vpack.c.b16 %v454, %v452
  %v637 = vpack.c.b16 %v455, %v453
  %v638 = vpack.c.b16 %v458, %v456
  %v639 = vpack.c.b16 %v459, %v457
  %v640 = vpack.c.b16 %v462, %v460
  %v641 = vpack.c.b16 %v463, %v461
  %v642 = vpack.c.b16 %v466, %v464
  %v643 = vpack.c.b16 %v467, %v465
  %v644 = vpack.c.b16 %v470, %v468
  %v645 = vpack.c.b16 %v471, %v469
  %v646 = vpack.c.b16 %v474, %v472
  %v647 = vpack.c.b16 %v475, %v473
  %v648 = vpack.c.b16 %v478, %v476
  %v649 = vpack.c.b16 %v479, %v477
  %v650 = vpack.c.b16 %v482, %v480
  %v651 = vpack.c.b16 %v483, %v481
  %v652 = vpack.c.b16 %v486, %v484
  %v653 = vpack.c.b16 %v487, %v485
  %v654 = vpack.c.b16 %v490, %v488
  %v655 = vpack.c.b16 %v491, %v489
  %v656 = vpack.c.b16 %v494, %v492
  %v657 = vpack.c.b16 %v495, %v493
  %v658 = vpack.c.b16 %v498, %v496
  %v659 = vpack.c.b16 %v499, %v497
  %v660 = vpack.c.b16 %v502, %v500
  %v661 = vpack.c.b16 %v503, %v501
  %v662 = vpack.c.b16 %v506, %v504
  %v663 = vpack.c.b16 %v507, %v505
  %v664 = vpack.c.b16 %v510, %v508
  %v665 = vpack.c.b16 %v511, %v509
  %v666 = vpack.c.b16 %v514, %v512
  %v667 = vpack.c.b16 %v515, %v513
  %v668 = vpack.c.b16 %v518, %v516
  %v669 = vpack.c.b16 %v519, %v517
  %v670 = vpack.c.b16 %v522, %v520
  %v671 = vpack.c.b16 %v523, %v521
  %v672 = vpack.c.b16 %v526, %v524
  %v673 = vpack.c.b16 %v527, %v525
  %v674 = vpack.c.b16 %v530, %v528
  %v675 = vpack.c.b16 %v531, %v529
  %v676 = vpack.c.b16 %v534, %v532
  %v677 = vpack.c.b16 %v535, %v533
  %v678 = vpack.c.b16 %v538, %v536
  %v679 = vpack.c.b16 %v539, %v537
  %v680 = vpack.c.b16 %v542, %v540
  %v681 = vpack.c.b16 %v543, %v541
  %v682 = vpack.c.b16 %v546, %v544
  %v683 = vpack.c.b16 %v547, %v545
  %v684 = vpack.c.b16 %v550, %v548
  %v685 = vpack.c.b16 %v551, %v549
  %v686 = vpack.c.b16 %v554, %v552
  %v687 = vpack.c.b16 %v555, %v553
  %v688 = vpack.c.b16 %v558, %v556
  %v689 = vpack.c.b16 %v559, %v557
  %v690 = vpack.c.b16 %v562, %v560
  %v691 = vpack.c.b16 %v563, %v561
  %v775 = vunpack.c.l.b16 %v161
  %v776 = vunpack.c.l.b16 %v162
  %v777 = vunpack.c.l.b16 %v163
  %v778 = vunpack.c.l.b16 %v164
  %v779 = vunpack.c.l.b16 %v165
  %v780 = vunpack.c.l.b16 %v166
  %v781 = vunpack.c.l.b16 %v167
  %v782 = vunpack.c.l.b16 %v168
  %v783 = vunpack.c.l.b16 %v169
  %v784 = vunpack.c.l.b16 %v170
  %v785 = vunpack.c.l.b16 %v171
  %v786 = vunpack.c.l.b16 %v172
  %v787 = vunpack.c.l.b16 %v173
  %v788 = vunpack.c.l.b16 %v174
  %v789 = vunpack.c.l.b16 %v175
  %v790 = vunpack.c.l.b16 %v176
  %v791 = vunpack.c.l.b16 %v177
  %v792 = vunpack.c.l.b16 %v178
  %v793 = vunpack.c.l.b16 %v179
  %v794 = vpack.c.b16 %v776, %v775
  %v795 = vpack.c.b16 %v778, %v777
  %v796 = vpack.c.b16 %v780, %v779
  %v797 = vpack.c.b16 %v782, %v781
  %v798 = vpack.c.b16 %v784, %v783
  %v799 = vpack.c.b16 %v786, %v785
  %v800 = vpack.c.b16 %v788, %v787
  %v801 = vpack.c.b16 %v790, %v789
  %v802 = vpack.c.b16 %v792, %v791
  %v803 = vpack.c.b16 %v793, %v793
  %vm813 = vcmask 179200
  %v815 = vsel %vm813, %v565, 0
  %v818 = vsel %vm813, %v567, 0
  %v821 = vsel %vm813, %v569, 0
  %v824 = vsel %vm813, %v571, 0
  %v827 = vsel %vm813, %v573, 0
  %v830 = vsel %vm813, %v575, 0
  %v833 = vsel %vm813, %v577, 0
  %v836 = vsel %vm813, %v579, 0
  %v839 = vsel %vm813, %v581, 0
  %v842 = vsel %vm813, %v583, 0
  %v845 = vsel %vm813, %v585, 0
  %v848 = vsel %vm813, %v587, 0
  %v851 = vsel %vm813, %v589, 0
  %v854 = vsel %vm813, %v591, 0
  %v857 = vsel %vm813, %v593, 0
  %v860 = vsel %vm813, %v595, 0
  %v863 = vsel %vm813, %v597, 0
  %v866 = vsel %vm813, %v599, 0
  %v869 = vsel %vm813, %v601, 0
  %v872 = vsel %vm813, %v603, 0
  %v875 = vsel %vm813, %v605, 0
  %v878 = vsel %vm813, %v607, 0
  %v881 = vsel %vm813, %v609, 0
  %v884 = vsel %vm813, %v611, 0
  %v887 = vsel %vm813, %v613, 0
  %v890 = vsel %vm813, %v615, 0
  %v893 = vsel %vm813, %v617, 0
  %v896 = vsel %vm813, %v619, 0
  %v899 = vsel %vm813, %v621, 0
  %v902 = vsel %vm813, %v623, 0
  %v905 = vsel %vm813, %v625, 0
  %v908 = vsel %vm813, %v627, 0
  %v911 = vsel %vm813, %v629, 0
  %v914 = vsel %vm813, %v631, 0
  %v917 = vsel %vm813, %v633, 0
  %v920 = vsel %vm813, %v635, 0
  %v923 = vsel %vm813, %v637, 0
  %v926 = vsel %vm813, %v639, 0
  %v929 = vsel %vm813, %v641, 0
  %v932 = vsel %vm813, %v643, 0
  %v935 = vsel %vm813, %v645, 0
  %v938 = vsel %vm813, %v647, 0
  %v941 = vsel %vm813, %v649, 0
  %v944 = vsel %vm813, %v651, 0
  %v947 = vsel %vm813, %v653, 0
  %v950 = vsel %vm813, %v655, 0
  %v953 = vsel %vm813, %v657, 0
  %v956 = vsel %vm813, %v659, 0
  %v959 = vsel %vm813, %v661, 0
  %v962 = vsel %vm813, %v663, 0
  %v965 = vsel %vm813, %v665, 0
  %v968 = vsel %vm813, %v667, 0
  %v971 = vsel %vm813, %v669, 0
  %v974 = vsel %vm813, %v671, 0
  %v977 = vsel %vm813, %v673, 0
  %v980 = vsel %vm813, %v675, 0
  %v983 = vsel %vm813, %v677, 0
  %v986 = vsel %vm813, %v679, 0
  %v989 = vsel %vm813, %v681, 0
  %v992 = vsel %vm813, %v683, 0
  %v995 = vsel %vm813, %v685, 0
  %v998 = vsel %vm813, %v687, 0
  %v1001 = vsel %vm813, %v689, 0
  %v1004 = vsel %vm813, %v691, 0
  %vm1006 = vcmask 1042432
  %v1008 = vsel %vm1006, %v803, 0
  %1010 = vmatpush.bf16.msra.mxu0 %v801
  %1011 = vmatpush.bf16.msra.mxu0 %v800
  %1012 = vmatpush.bf16.msra.mxu0 %v799
  %1013 = vmatpush.bf16.msra.mxu0 %v798
  %1014 = vmatpush.bf16.msra.mxu0 %v797
  %1015 = vmatpush.bf16.msra.mxu0 %v796
  %1016 = vmatpush.bf16.msra.mxu0 %v795
  %1017 = vmatpush.bf16.msra.mxu0 %v794
  %1018 = vmatmul.bf16.gmra.mxu0 %v564
  %v1019 = vpop.f32.mrf.mxu0
  %v1020 = vadd.f32 0.0, %v1019
  %v1021 = vpop.f32.mrf.mxu0
  %v1022 = vadd.f32 0.0, %v1021
  %1023 = vmatmul.bf16.gmra.mxu0 %v566
  %v1024 = vpop.f32.mrf.mxu0
  %v1025 = vadd.f32 0.0, %v1024
  %v1026 = vpop.f32.mrf.mxu0
  %v1027 = vadd.f32 0.0, %v1026
  %1028 = vmatmul.bf16.gmra.mxu0 %v568
  %v1029 = vpop.f32.mrf.mxu0
  %v1030 = vadd.f32 0.0, %v1029
  %v1031 = vpop.f32.mrf.mxu0
  %v1032 = vadd.f32 0.0, %v1031
  %1033 = vmatmul.bf16.gmra.mxu0 %v570
  %v1034 = vpop.f32.mrf.mxu0
  %v1035 = vadd.f32 0.0, %v1034
  %v1036 = vpop.f32.mrf.mxu0
  %v1037 = vadd.f32 0.0, %v1036
  %1038 = vmatmul.bf16.gmra.mxu0 %v572
  %v1039 = vpop.f32.mrf.mxu0
  %v1040 = vadd.f32 0.0, %v1039
  %v1041 = vpop.f32.mrf.mxu0
  %v1042 = vadd.f32 0.0, %v1041
  %1043 = vmatmul.bf16.gmra.mxu0 %v574
  %v1044 = vpop.f32.mrf.mxu0
  %v1045 = vadd.f32 0.0, %v1044
  %v1046 = vpop.f32.mrf.mxu0
  %v1047 = vadd.f32 0.0, %v1046
  %1048 = vmatmul.bf16.gmra.mxu0 %v576
  %v1049 = vpop.f32.mrf.mxu0
  %v1050 = vadd.f32 0.0, %v1049
  %v1051 = vpop.f32.mrf.mxu0
  %v1052 = vadd.f32 0.0, %v1051
  %1053 = vmatmul.bf16.gmra.mxu0 %v578
  %v1054 = vpop.f32.mrf.mxu0
  %v1055 = vadd.f32 0.0, %v1054
  %v1056 = vpop.f32.mrf.mxu0
  %v1057 = vadd.f32 0.0, %v1056
  %1058 = vmatmul.bf16.gmra.mxu0 %v580
  %v1059 = vpop.f32.mrf.mxu0
  %v1060 = vadd.f32 0.0, %v1059
  %v1061 = vpop.f32.mrf.mxu0
  %v1062 = vadd.f32 0.0, %v1061
  %1063 = vmatmul.bf16.gmra.mxu0 %v582
  %v1064 = vpop.f32.mrf.mxu0
  %v1065 = vadd.f32 0.0, %v1064
  %v1066 = vpop.f32.mrf.mxu0
  %v1067 = vadd.f32 0.0, %v1066
  %1068 = vmatmul.bf16.gmra.mxu0 %v584
  %v1069 = vpop.f32.mrf.mxu0
  %v1070 = vadd.f32 0.0, %v1069
  %v1071 = vpop.f32.mrf.mxu0
  %v1072 = vadd.f32 0.0, %v1071
  %1073 = vmatmul.bf16.gmra.mxu0 %v586
  %v1074 = vpop.f32.mrf.mxu0
  %v1075 = vadd.f32 0.0, %v1074
  %v1076 = vpop.f32.mrf.mxu0
  %v1077 = vadd.f32 0.0, %v1076
  %1078 = vmatmul.bf16.gmra.mxu0 %v588
  %v1079 = vpop.f32.mrf.mxu0
  %v1080 = vadd.f32 0.0, %v1079
  %v1081 = vpop.f32.mrf.mxu0
  %v1082 = vadd.f32 0.0, %v1081
  %1083 = vmatmul.bf16.gmra.mxu0 %v590
  %v1084 = vpop.f32.mrf.mxu0
  %v1085 = vadd.f32 0.0, %v1084
  %v1086 = vpop.f32.mrf.mxu0
  %v1087 = vadd.f32 0.0, %v1086
  %1088 = vmatmul.bf16.gmra.mxu0 %v592
  %v1089 = vpop.f32.mrf.mxu0
  %v1090 = vadd.f32 0.0, %v1089
  %v1091 = vpop.f32.mrf.mxu0
  %v1092 = vadd.f32 0.0, %v1091
  %1093 = vmatmul.bf16.gmra.mxu0 %v594
  %v1094 = vpop.f32.mrf.mxu0
  %v1095 = vadd.f32 0.0, %v1094
  %v1096 = vpop.f32.mrf.mxu0
  %v1097 = vadd.f32 0.0, %v1096
  %1098 = vmatmul.bf16.gmra.mxu0 %v596
  %v1099 = vpop.f32.mrf.mxu0
  %v1100 = vadd.f32 0.0, %v1099
  %v1101 = vpop.f32.mrf.mxu0
  %v1102 = vadd.f32 0.0, %v1101
  %1103 = vmatmul.bf16.gmra.mxu0 %v598
  %v1104 = vpop.f32.mrf.mxu0
  %v1105 = vadd.f32 0.0, %v1104
  %v1106 = vpop.f32.mrf.mxu0
  %v1107 = vadd.f32 0.0, %v1106
  %1108 = vmatmul.bf16.gmra.mxu0 %v600
  %v1109 = vpop.f32.mrf.mxu0
  %v1110 = vadd.f32 0.0, %v1109
  %v1111 = vpop.f32.mrf.mxu0
  %v1112 = vadd.f32 0.0, %v1111
  %1113 = vmatmul.bf16.gmra.mxu0 %v602
  %v1114 = vpop.f32.mrf.mxu0
  %v1115 = vadd.f32 0.0, %v1114
  %v1116 = vpop.f32.mrf.mxu0
  %v1117 = vadd.f32 0.0, %v1116
  %1118 = vmatmul.bf16.gmra.mxu0 %v604
  %v1119 = vpop.f32.mrf.mxu0
  %v1120 = vadd.f32 0.0, %v1119
  %v1121 = vpop.f32.mrf.mxu0
  %v1122 = vadd.f32 0.0, %v1121
  %1123 = vmatmul.bf16.gmra.mxu0 %v606
  %v1124 = vpop.f32.mrf.mxu0
  %v1125 = vadd.f32 0.0, %v1124
  %v1126 = vpop.f32.mrf.mxu0
  %v1127 = vadd.f32 0.0, %v1126
  %1128 = vmatmul.bf16.gmra.mxu0 %v608
  %v1129 = vpop.f32.mrf.mxu0
  %v1130 = vadd.f32 0.0, %v1129
  %v1131 = vpop.f32.mrf.mxu0
  %v1132 = vadd.f32 0.0, %v1131
  %1133 = vmatmul.bf16.gmra.mxu0 %v610
  %v1134 = vpop.f32.mrf.mxu0
  %v1135 = vadd.f32 0.0, %v1134
  %v1136 = vpop.f32.mrf.mxu0
  %v1137 = vadd.f32 0.0, %v1136
  %1138 = vmatmul.bf16.gmra.mxu0 %v612
  %v1139 = vpop.f32.mrf.mxu0
  %v1140 = vadd.f32 0.0, %v1139
  %v1141 = vpop.f32.mrf.mxu0
  %v1142 = vadd.f32 0.0, %v1141
  %1143 = vmatmul.bf16.gmra.mxu0 %v614
  %v1144 = vpop.f32.mrf.mxu0
  %v1145 = vadd.f32 0.0, %v1144
  %v1146 = vpop.f32.mrf.mxu0
  %v1147 = vadd.f32 0.0, %v1146
  %1148 = vmatmul.bf16.gmra.mxu0 %v616
  %v1149 = vpop.f32.mrf.mxu0
  %v1150 = vadd.f32 0.0, %v1149
  %v1151 = vpop.f32.mrf.mxu0
  %v1152 = vadd.f32 0.0, %v1151
  %1153 = vmatmul.bf16.gmra.mxu0 %v618
  %v1154 = vpop.f32.mrf.mxu0
  %v1155 = vadd.f32 0.0, %v1154
  %v1156 = vpop.f32.mrf.mxu0
  %v1157 = vadd.f32 0.0, %v1156
  %1158 = vmatmul.bf16.gmra.mxu0 %v620
  %v1159 = vpop.f32.mrf.mxu0
  %v1160 = vadd.f32 0.0, %v1159
  %v1161 = vpop.f32.mrf.mxu0
  %v1162 = vadd.f32 0.0, %v1161
  %1163 = vmatmul.bf16.gmra.mxu0 %v622
  %v1164 = vpop.f32.mrf.mxu0
  %v1165 = vadd.f32 0.0, %v1164
  %v1166 = vpop.f32.mrf.mxu0
  %v1167 = vadd.f32 0.0, %v1166
  %1168 = vmatmul.bf16.gmra.mxu0 %v624
  %v1169 = vpop.f32.mrf.mxu0
  %v1170 = vadd.f32 0.0, %v1169
  %v1171 = vpop.f32.mrf.mxu0
  %v1172 = vadd.f32 0.0, %v1171
  %1173 = vmatmul.bf16.gmra.mxu0 %v626
  %v1174 = vpop.f32.mrf.mxu0
  %v1175 = vadd.f32 0.0, %v1174
  %v1176 = vpop.f32.mrf.mxu0
  %v1177 = vadd.f32 0.0, %v1176
  %1178 = vmatmul.bf16.gmra.mxu0 %v628
  %v1179 = vpop.f32.mrf.mxu0
  %v1180 = vadd.f32 0.0, %v1179
  %v1181 = vpop.f32.mrf.mxu0
  %v1182 = vadd.f32 0.0, %v1181
  %1183 = vmatmul.bf16.gmra.mxu0 %v630
  %v1184 = vpop.f32.mrf.mxu0
  %v1185 = vadd.f32 0.0, %v1184
  %v1186 = vpop.f32.mrf.mxu0
  %v1187 = vadd.f32 0.0, %v1186
  %1188 = vmatmul.bf16.gmra.mxu0 %v632
  %v1189 = vpop.f32.mrf.mxu0
  %v1190 = vadd.f32 0.0, %v1189
  %v1191 = vpop.f32.mrf.mxu0
  %v1192 = vadd.f32 0.0, %v1191
  %1193 = vmatmul.bf16.gmra.mxu0 %v634
  %v1194 = vpop.f32.mrf.mxu0
  %v1195 = vadd.f32 0.0, %v1194
  %v1196 = vpop.f32.mrf.mxu0
  %v1197 = vadd.f32 0.0, %v1196
  %1198 = vmatmul.bf16.gmra.mxu0 %v636
  %v1199 = vpop.f32.mrf.mxu0
  %v1200 = vadd.f32 0.0, %v1199
  %v1201 = vpop.f32.mrf.mxu0
  %v1202 = vadd.f32 0.0, %v1201
  %1203 = vmatmul.bf16.gmra.mxu0 %v638
  %v1204 = vpop.f32.mrf.mxu0
  %v1205 = vadd.f32 0.0, %v1204
  %v1206 = vpop.f32.mrf.mxu0
  %v1207 = vadd.f32 0.0, %v1206
  %1208 = vmatmul.bf16.gmra.mxu0 %v640
  %v1209 = vpop.f32.mrf.mxu0
  %v1210 = vadd.f32 0.0, %v1209
  %v1211 = vpop.f32.mrf.mxu0
  %v1212 = vadd.f32 0.0, %v1211
  %1213 = vmatmul.bf16.gmra.mxu0 %v642
  %v1214 = vpop.f32.mrf.mxu0
  %v1215 = vadd.f32 0.0, %v1214
  %v1216 = vpop.f32.mrf.mxu0
  %v1217 = vadd.f32 0.0, %v1216
  %1218 = vmatmul.bf16.gmra.mxu0 %v644
  %v1219 = vpop.f32.mrf.mxu0
  %v1220 = vadd.f32 0.0, %v1219
  %v1221 = vpop.f32.mrf.mxu0
  %v1222 = vadd.f32 0.0, %v1221
  %1223 = vmatmul.bf16.gmra.mxu0 %v646
  %v1224 = vpop.f32.mrf.mxu0
  %v1225 = vadd.f32 0.0, %v1224
  %v1226 = vpop.f32.mrf.mxu0
  %v1227 = vadd.f32 0.0, %v1226
  %1228 = vmatmul.bf16.gmra.mxu0 %v648
  %v1229 = vpop.f32.mrf.mxu0
  %v1230 = vadd.f32 0.0, %v1229
  %v1231 = vpop.f32.mrf.mxu0
  %v1232 = vadd.f32 0.0, %v1231
  %1233 = vmatmul.bf16.gmra.mxu0 %v650
  %v1234 = vpop.f32.mrf.mxu0
  %v1235 = vadd.f32 0.0, %v1234
  %v1236 = vpop.f32.mrf.mxu0
  %v1237 = vadd.f32 0.0, %v1236
  %1238 = vmatmul.bf16.gmra.mxu0 %v652
  %v1239 = vpop.f32.mrf.mxu0
  %v1240 = vadd.f32 0.0, %v1239
  %v1241 = vpop.f32.mrf.mxu0
  %v1242 = vadd.f32 0.0, %v1241
  %1243 = vmatmul.bf16.gmra.mxu0 %v654
  %v1244 = vpop.f32.mrf.mxu0
  %v1245 = vadd.f32 0.0, %v1244
  %v1246 = vpop.f32.mrf.mxu0
  %v1247 = vadd.f32 0.0, %v1246
  %1248 = vmatmul.bf16.gmra.mxu0 %v656
  %v1249 = vpop.f32.mrf.mxu0
  %v1250 = vadd.f32 0.0, %v1249
  %v1251 = vpop.f32.mrf.mxu0
  %v1252 = vadd.f32 0.0, %v1251
  %1253 = vmatmul.bf16.gmra.mxu0 %v658
  %v1254 = vpop.f32.mrf.mxu0
  %v1255 = vadd.f32 0.0, %v1254
  %v1256 = vpop.f32.mrf.mxu0
  %v1257 = vadd.f32 0.0, %v1256
  %1258 = vmatmul.bf16.gmra.mxu0 %v660
  %v1259 = vpop.f32.mrf.mxu0
  %v1260 = vadd.f32 0.0, %v1259
  %v1261 = vpop.f32.mrf.mxu0
  %v1262 = vadd.f32 0.0, %v1261
  %1263 = vmatmul.bf16.gmra.mxu0 %v662
  %v1264 = vpop.f32.mrf.mxu0
  %v1265 = vadd.f32 0.0, %v1264
  %v1266 = vpop.f32.mrf.mxu0
  %v1267 = vadd.f32 0.0, %v1266
  %1268 = vmatmul.bf16.gmra.mxu0 %v664
  %v1269 = vpop.f32.mrf.mxu0
  %v1270 = vadd.f32 0.0, %v1269
  %v1271 = vpop.f32.mrf.mxu0
  %v1272 = vadd.f32 0.0, %v1271
  %1273 = vmatmul.bf16.gmra.mxu0 %v666
  %v1274 = vpop.f32.mrf.mxu0
  %v1275 = vadd.f32 0.0, %v1274
  %v1276 = vpop.f32.mrf.mxu0
  %v1277 = vadd.f32 0.0, %v1276
  %1278 = vmatmul.bf16.gmra.mxu0 %v668
  %v1279 = vpop.f32.mrf.mxu0
  %v1280 = vadd.f32 0.0, %v1279
  %v1281 = vpop.f32.mrf.mxu0
  %v1282 = vadd.f32 0.0, %v1281
  %1283 = vmatmul.bf16.gmra.mxu0 %v670
  %v1284 = vpop.f32.mrf.mxu0
  %v1285 = vadd.f32 0.0, %v1284
  %v1286 = vpop.f32.mrf.mxu0
  %v1287 = vadd.f32 0.0, %v1286
  %1288 = vmatmul.bf16.gmra.mxu0 %v672
  %v1289 = vpop.f32.mrf.mxu0
  %v1290 = vadd.f32 0.0, %v1289
  %v1291 = vpop.f32.mrf.mxu0
  %v1292 = vadd.f32 0.0, %v1291
  %1293 = vmatmul.bf16.gmra.mxu0 %v674
  %v1294 = vpop.f32.mrf.mxu0
  %v1295 = vadd.f32 0.0, %v1294
  %v1296 = vpop.f32.mrf.mxu0
  %v1297 = vadd.f32 0.0, %v1296
  %1298 = vmatmul.bf16.gmra.mxu0 %v676
  %v1299 = vpop.f32.mrf.mxu0
  %v1300 = vadd.f32 0.0, %v1299
  %v1301 = vpop.f32.mrf.mxu0
  %v1302 = vadd.f32 0.0, %v1301
  %1303 = vmatmul.bf16.gmra.mxu0 %v678
  %v1304 = vpop.f32.mrf.mxu0
  %v1305 = vadd.f32 0.0, %v1304
  %v1306 = vpop.f32.mrf.mxu0
  %v1307 = vadd.f32 0.0, %v1306
  %1308 = vmatmul.bf16.gmra.mxu0 %v680
  %v1309 = vpop.f32.mrf.mxu0
  %v1310 = vadd.f32 0.0, %v1309
  %v1311 = vpop.f32.mrf.mxu0
  %v1312 = vadd.f32 0.0, %v1311
  %1313 = vmatmul.bf16.gmra.mxu0 %v682
  %v1314 = vpop.f32.mrf.mxu0
  %v1315 = vadd.f32 0.0, %v1314
  %v1316 = vpop.f32.mrf.mxu0
  %v1317 = vadd.f32 0.0, %v1316
  %1318 = vmatmul.bf16.gmra.mxu0 %v684
  %v1319 = vpop.f32.mrf.mxu0
  %v1320 = vadd.f32 0.0, %v1319
  %v1321 = vpop.f32.mrf.mxu0
  %v1322 = vadd.f32 0.0, %v1321
  %1323 = vmatmul.bf16.gmra.mxu0 %v686
  %v1324 = vpop.f32.mrf.mxu0
  %v1325 = vadd.f32 0.0, %v1324
  %v1326 = vpop.f32.mrf.mxu0
  %v1327 = vadd.f32 0.0, %v1326
  %1328 = vmatmul.bf16.gmra.mxu0 %v688
  %v1329 = vpop.f32.mrf.mxu0
  %v1330 = vadd.f32 0.0, %v1329
  %v1331 = vpop.f32.mrf.mxu0
  %v1332 = vadd.f32 0.0, %v1331
  %1333 = vmatmul.bf16.gmra.mxu0 %v690
  %v1334 = vpop.f32.mrf.mxu0
  %v1335 = vadd.f32 0.0, %v1334
  %v1336 = vpop.f32.mrf.mxu0
  %v1337 = vadd.f32 0.0, %v1336
  %1338 = vdwg.mxu0
  %1339 = vmatpush.bf16.msra.mxu0 0
  %1340 = vmatpush.bf16.msra.mxu0 0
  %1341 = vmatpush.bf16.msra.mxu0 0
  %1342 = vmatpush.bf16.msra.mxu0 0
  %1343 = vmatpush.bf16.msra.mxu0 0
  %1344 = vmatpush.bf16.msra.mxu0 0
  %1345 = vmatpush.bf16.msra.mxu0 %v1008
  %1346 = vmatpush.bf16.msra.mxu0 %v802
  %1347 = vmatmul.bf16.gmra.mxu0 %v815
  %v1348 = vpop.f32.mrf.mxu0
  %v1349 = vadd.f32 %v1020, %v1348
  %v1350 = vpop.f32.mrf.mxu0
  %v1351 = vadd.f32 %v1022, %v1350
  %1352 = vmatmul.bf16.gmra.mxu0 %v818
  %v1353 = vpop.f32.mrf.mxu0
  %v1354 = vadd.f32 %v1025, %v1353
  %v1355 = vpop.f32.mrf.mxu0
  %v1356 = vadd.f32 %v1027, %v1355
  %1357 = vmatmul.bf16.gmra.mxu0 %v821
  %v1358 = vpop.f32.mrf.mxu0
  %v1359 = vadd.f32 %v1030, %v1358
  %v1360 = vpop.f32.mrf.mxu0
  %v1361 = vadd.f32 %v1032, %v1360
  %1362 = vmatmul.bf16.gmra.mxu0 %v824
  %v1363 = vpop.f32.mrf.mxu0
  %v1364 = vadd.f32 %v1035, %v1363
  %v1365 = vpop.f32.mrf.mxu0
  %v1366 = vadd.f32 %v1037, %v1365
  %1367 = vmatmul.bf16.gmra.mxu0 %v827
  %v1368 = vpop.f32.mrf.mxu0
  %v1369 = vadd.f32 %v1040, %v1368
  %v1370 = vpop.f32.mrf.mxu0
  %v1371 = vadd.f32 %v1042, %v1370
  %1372 = vmatmul.bf16.gmra.mxu0 %v830
  %v1373 = vpop.f32.mrf.mxu0
  %v1374 = vadd.f32 %v1045, %v1373
  %v1375 = vpop.f32.mrf.mxu0
  %v1376 = vadd.f32 %v1047, %v1375
  %1377 = vmatmul.bf16.gmra.mxu0 %v833
  %v1378 = vpop.f32.mrf.mxu0
  %v1379 = vadd.f32 %v1050, %v1378
  %v1380 = vpop.f32.mrf.mxu0
  %v1381 = vadd.f32 %v1052, %v1380
  %1382 = vmatmul.bf16.gmra.mxu0 %v836
  %v1383 = vpop.f32.mrf.mxu0
  %v1384 = vadd.f32 %v1055, %v1383
  %v1385 = vpop.f32.mrf.mxu0
  %v1386 = vadd.f32 %v1057, %v1385
  %1387 = vmatmul.bf16.gmra.mxu0 %v839
  %v1388 = vpop.f32.mrf.mxu0
  %v1389 = vadd.f32 %v1060, %v1388
  %v1390 = vpop.f32.mrf.mxu0
  %v1391 = vadd.f32 %v1062, %v1390
  %1392 = vmatmul.bf16.gmra.mxu0 %v842
  %v1393 = vpop.f32.mrf.mxu0
  %v1394 = vadd.f32 %v1065, %v1393
  %v1395 = vpop.f32.mrf.mxu0
  %v1396 = vadd.f32 %v1067, %v1395
  %1397 = vmatmul.bf16.gmra.mxu0 %v845
  %v1398 = vpop.f32.mrf.mxu0
  %v1399 = vadd.f32 %v1070, %v1398
  %v1400 = vpop.f32.mrf.mxu0
  %v1401 = vadd.f32 %v1072, %v1400
  %1402 = vmatmul.bf16.gmra.mxu0 %v848
  %v1403 = vpop.f32.mrf.mxu0
  %v1404 = vadd.f32 %v1075, %v1403
  %v1405 = vpop.f32.mrf.mxu0
  %v1406 = vadd.f32 %v1077, %v1405
  %1407 = vmatmul.bf16.gmra.mxu0 %v851
  %v1408 = vpop.f32.mrf.mxu0
  %v1409 = vadd.f32 %v1080, %v1408
  %v1410 = vpop.f32.mrf.mxu0
  %v1411 = vadd.f32 %v1082, %v1410
  %1412 = vmatmul.bf16.gmra.mxu0 %v854
  %v1413 = vpop.f32.mrf.mxu0
  %v1414 = vadd.f32 %v1085, %v1413
  %v1415 = vpop.f32.mrf.mxu0
  %v1416 = vadd.f32 %v1087, %v1415
  %1417 = vmatmul.bf16.gmra.mxu0 %v857
  %v1418 = vpop.f32.mrf.mxu0
  %v1419 = vadd.f32 %v1090, %v1418
  %v1420 = vpop.f32.mrf.mxu0
  %v1421 = vadd.f32 %v1092, %v1420
  %1422 = vmatmul.bf16.gmra.mxu0 %v860
  %v1423 = vpop.f32.mrf.mxu0
  %v1424 = vadd.f32 %v1095, %v1423
  %v1425 = vpop.f32.mrf.mxu0
  %v1426 = vadd.f32 %v1097, %v1425
  %1427 = vmatmul.bf16.gmra.mxu0 %v863
  %v1428 = vpop.f32.mrf.mxu0
  %v1429 = vadd.f32 %v1100, %v1428
  %v1430 = vpop.f32.mrf.mxu0
  %v1431 = vadd.f32 %v1102, %v1430
  %1432 = vmatmul.bf16.gmra.mxu0 %v866
  %v1433 = vpop.f32.mrf.mxu0
  %v1434 = vadd.f32 %v1105, %v1433
  %v1435 = vpop.f32.mrf.mxu0
  %v1436 = vadd.f32 %v1107, %v1435
  %1437 = vmatmul.bf16.gmra.mxu0 %v869
  %v1438 = vpop.f32.mrf.mxu0
  %v1439 = vadd.f32 %v1110, %v1438
  %v1440 = vpop.f32.mrf.mxu0
  %v1441 = vadd.f32 %v1112, %v1440
  %1442 = vmatmul.bf16.gmra.mxu0 %v872
  %v1443 = vpop.f32.mrf.mxu0
  %v1444 = vadd.f32 %v1115, %v1443
  %v1445 = vpop.f32.mrf.mxu0
  %v1446 = vadd.f32 %v1117, %v1445
  %1447 = vmatmul.bf16.gmra.mxu0 %v875
  %v1448 = vpop.f32.mrf.mxu0
  %v1449 = vadd.f32 %v1120, %v1448
  %v1450 = vpop.f32.mrf.mxu0
  %v1451 = vadd.f32 %v1122, %v1450
  %1452 = vmatmul.bf16.gmra.mxu0 %v878
  %v1453 = vpop.f32.mrf.mxu0
  %v1454 = vadd.f32 %v1125, %v1453
  %v1455 = vpop.f32.mrf.mxu0
  %v1456 = vadd.f32 %v1127, %v1455
  %1457 = vmatmul.bf16.gmra.mxu0 %v881
  %v1458 = vpop.f32.mrf.mxu0
  %v1459 = vadd.f32 %v1130, %v1458
  %v1460 = vpop.f32.mrf.mxu0
  %v1461 = vadd.f32 %v1132, %v1460
  %1462 = vmatmul.bf16.gmra.mxu0 %v884
  %v1463 = vpop.f32.mrf.mxu0
  %v1464 = vadd.f32 %v1135, %v1463
  %v1465 = vpop.f32.mrf.mxu0
  %v1466 = vadd.f32 %v1137, %v1465
  %1467 = vmatmul.bf16.gmra.mxu0 %v887
  %v1468 = vpop.f32.mrf.mxu0
  %v1469 = vadd.f32 %v1140, %v1468
  %v1470 = vpop.f32.mrf.mxu0
  %v1471 = vadd.f32 %v1142, %v1470
  %1472 = vmatmul.bf16.gmra.mxu0 %v890
  %v1473 = vpop.f32.mrf.mxu0
  %v1474 = vadd.f32 %v1145, %v1473
  %v1475 = vpop.f32.mrf.mxu0
  %v1476 = vadd.f32 %v1147, %v1475
  %1477 = vmatmul.bf16.gmra.mxu0 %v893
  %v1478 = vpop.f32.mrf.mxu0
  %v1479 = vadd.f32 %v1150, %v1478
  %v1480 = vpop.f32.mrf.mxu0
  %v1481 = vadd.f32 %v1152, %v1480
  %1482 = vmatmul.bf16.gmra.mxu0 %v896
  %v1483 = vpop.f32.mrf.mxu0
  %v1484 = vadd.f32 %v1155, %v1483
  %v1485 = vpop.f32.mrf.mxu0
  %v1486 = vadd.f32 %v1157, %v1485
  %1487 = vmatmul.bf16.gmra.mxu0 %v899
  %v1488 = vpop.f32.mrf.mxu0
  %v1489 = vadd.f32 %v1160, %v1488
  %v1490 = vpop.f32.mrf.mxu0
  %v1491 = vadd.f32 %v1162, %v1490
  %1492 = vmatmul.bf16.gmra.mxu0 %v902
  %v1493 = vpop.f32.mrf.mxu0
  %v1494 = vadd.f32 %v1165, %v1493
  %v1495 = vpop.f32.mrf.mxu0
  %v1496 = vadd.f32 %v1167, %v1495
  %1497 = vmatmul.bf16.gmra.mxu0 %v905
  %v1498 = vpop.f32.mrf.mxu0
  %v1499 = vadd.f32 %v1170, %v1498
  %v1500 = vpop.f32.mrf.mxu0
  %v1501 = vadd.f32 %v1172, %v1500
  %1502 = vmatmul.bf16.gmra.mxu0 %v908
  %v1503 = vpop.f32.mrf.mxu0
  %v1504 = vadd.f32 %v1175, %v1503
  %v1505 = vpop.f32.mrf.mxu0
  %v1506 = vadd.f32 %v1177, %v1505
  %1507 = vmatmul.bf16.gmra.mxu0 %v911
  %v1508 = vpop.f32.mrf.mxu0
  %v1509 = vadd.f32 %v1180, %v1508
  %v1510 = vpop.f32.mrf.mxu0
  %v1511 = vadd.f32 %v1182, %v1510
  %1512 = vmatmul.bf16.gmra.mxu0 %v914
  %v1513 = vpop.f32.mrf.mxu0
  %v1514 = vadd.f32 %v1185, %v1513
  %v1515 = vpop.f32.mrf.mxu0
  %v1516 = vadd.f32 %v1187, %v1515
  %1517 = vmatmul.bf16.gmra.mxu0 %v917
  %v1518 = vpop.f32.mrf.mxu0
  %v1519 = vadd.f32 %v1190, %v1518
  %v1520 = vpop.f32.mrf.mxu0
  %v1521 = vadd.f32 %v1192, %v1520
  %1522 = vmatmul.bf16.gmra.mxu0 %v920
  %v1523 = vpop.f32.mrf.mxu0
  %v1524 = vadd.f32 %v1195, %v1523
  %v1525 = vpop.f32.mrf.mxu0
  %v1526 = vadd.f32 %v1197, %v1525
  %1527 = vmatmul.bf16.gmra.mxu0 %v923
  %v1528 = vpop.f32.mrf.mxu0
  %v1529 = vadd.f32 %v1200, %v1528
  %v1530 = vpop.f32.mrf.mxu0
  %v1531 = vadd.f32 %v1202, %v1530
  %1532 = vmatmul.bf16.gmra.mxu0 %v926
  %v1533 = vpop.f32.mrf.mxu0
  %v1534 = vadd.f32 %v1205, %v1533
  %v1535 = vpop.f32.mrf.mxu0
  %v1536 = vadd.f32 %v1207, %v1535
  %1537 = vmatmul.bf16.gmra.mxu0 %v929
  %v1538 = vpop.f32.mrf.mxu0
  %v1539 = vadd.f32 %v1210, %v1538
  %v1540 = vpop.f32.mrf.mxu0
  %v1541 = vadd.f32 %v1212, %v1540
  %1542 = vmatmul.bf16.gmra.mxu0 %v932
  %v1543 = vpop.f32.mrf.mxu0
  %v1544 = vadd.f32 %v1215, %v1543
  %v1545 = vpop.f32.mrf.mxu0
  %v1546 = vadd.f32 %v1217, %v1545
  %1547 = vmatmul.bf16.gmra.mxu0 %v935
  %v1548 = vpop.f32.mrf.mxu0
  %v1549 = vadd.f32 %v1220, %v1548
  %v1550 = vpop.f32.mrf.mxu0
  %v1551 = vadd.f32 %v1222, %v1550
  %1552 = vmatmul.bf16.gmra.mxu0 %v938
  %v1553 = vpop.f32.mrf.mxu0
  %v1554 = vadd.f32 %v1225, %v1553
  %v1555 = vpop.f32.mrf.mxu0
  %v1556 = vadd.f32 %v1227, %v1555
  %1557 = vmatmul.bf16.gmra.mxu0 %v941
  %v1558 = vpop.f32.mrf.mxu0
  %v1559 = vadd.f32 %v1230, %v1558
  %v1560 = vpop.f32.mrf.mxu0
  %v1561 = vadd.f32 %v1232, %v1560
  %1562 = vmatmul.bf16.gmra.mxu0 %v944
  %v1563 = vpop.f32.mrf.mxu0
  %v1564 = vadd.f32 %v1235, %v1563
  %v1565 = vpop.f32.mrf.mxu0
  %v1566 = vadd.f32 %v1237, %v1565
  %1567 = vmatmul.bf16.gmra.mxu0 %v947
  %v1568 = vpop.f32.mrf.mxu0
  %v1569 = vadd.f32 %v1240, %v1568
  %v1570 = vpop.f32.mrf.mxu0
  %v1571 = vadd.f32 %v1242, %v1570
  %1572 = vmatmul.bf16.gmra.mxu0 %v950
  %v1573 = vpop.f32.mrf.mxu0
  %v1574 = vadd.f32 %v1245, %v1573
  %v1575 = vpop.f32.mrf.mxu0
  %v1576 = vadd.f32 %v1247, %v1575
  %1577 = vmatmul.bf16.gmra.mxu0 %v953
  %v1578 = vpop.f32.mrf.mxu0
  %v1579 = vadd.f32 %v1250, %v1578
  %v1580 = vpop.f32.mrf.mxu0
  %v1581 = vadd.f32 %v1252, %v1580
  %1582 = vmatmul.bf16.gmra.mxu0 %v956
  %v1583 = vpop.f32.mrf.mxu0
  %v1584 = vadd.f32 %v1255, %v1583
  %v1585 = vpop.f32.mrf.mxu0
  %v1586 = vadd.f32 %v1257, %v1585
  %1587 = vmatmul.bf16.gmra.mxu0 %v959
  %v1588 = vpop.f32.mrf.mxu0
  %v1589 = vadd.f32 %v1260, %v1588
  %v1590 = vpop.f32.mrf.mxu0
  %v1591 = vadd.f32 %v1262, %v1590
  %1592 = vmatmul.bf16.gmra.mxu0 %v962
  %v1593 = vpop.f32.mrf.mxu0
  %v1594 = vadd.f32 %v1265, %v1593
  %v1595 = vpop.f32.mrf.mxu0
  %v1596 = vadd.f32 %v1267, %v1595
  %1597 = vmatmul.bf16.gmra.mxu0 %v965
  %v1598 = vpop.f32.mrf.mxu0
  %v1599 = vadd.f32 %v1270, %v1598
  %v1600 = vpop.f32.mrf.mxu0
  %v1601 = vadd.f32 %v1272, %v1600
  %1602 = vmatmul.bf16.gmra.mxu0 %v968
  %v1603 = vpop.f32.mrf.mxu0
  %v1604 = vadd.f32 %v1275, %v1603
  %v1605 = vpop.f32.mrf.mxu0
  %v1606 = vadd.f32 %v1277, %v1605
  %1607 = vmatmul.bf16.gmra.mxu0 %v971
  %v1608 = vpop.f32.mrf.mxu0
  %v1609 = vadd.f32 %v1280, %v1608
  %v1610 = vpop.f32.mrf.mxu0
  %v1611 = vadd.f32 %v1282, %v1610
  %1612 = vmatmul.bf16.gmra.mxu0 %v974
  %v1613 = vpop.f32.mrf.mxu0
  %v1614 = vadd.f32 %v1285, %v1613
  %v1615 = vpop.f32.mrf.mxu0
  %v1616 = vadd.f32 %v1287, %v1615
  %1617 = vmatmul.bf16.gmra.mxu0 %v977
  %v1618 = vpop.f32.mrf.mxu0
  %v1619 = vadd.f32 %v1290, %v1618
  %v1620 = vpop.f32.mrf.mxu0
  %v1621 = vadd.f32 %v1292, %v1620
  %1622 = vmatmul.bf16.gmra.mxu0 %v980
  %v1623 = vpop.f32.mrf.mxu0
  %v1624 = vadd.f32 %v1295, %v1623
  %v1625 = vpop.f32.mrf.mxu0
  %v1626 = vadd.f32 %v1297, %v1625
  %1627 = vmatmul.bf16.gmra.mxu0 %v983
  %v1628 = vpop.f32.mrf.mxu0
  %v1629 = vadd.f32 %v1300, %v1628
  %v1630 = vpop.f32.mrf.mxu0
  %v1631 = vadd.f32 %v1302, %v1630
  %1632 = vmatmul.bf16.gmra.mxu0 %v986
  %v1633 = vpop.f32.mrf.mxu0
  %v1634 = vadd.f32 %v1305, %v1633
  %v1635 = vpop.f32.mrf.mxu0
  %v1636 = vadd.f32 %v1307, %v1635
  %1637 = vmatmul.bf16.gmra.mxu0 %v989
  %v1638 = vpop.f32.mrf.mxu0
  %v1639 = vadd.f32 %v1310, %v1638
  %v1640 = vpop.f32.mrf.mxu0
  %v1641 = vadd.f32 %v1312, %v1640
  %1642 = vmatmul.bf16.gmra.mxu0 %v992
  %v1643 = vpop.f32.mrf.mxu0
  %v1644 = vadd.f32 %v1315, %v1643
  %v1645 = vpop.f32.mrf.mxu0
  %v1646 = vadd.f32 %v1317, %v1645
  %1647 = vmatmul.bf16.gmra.mxu0 %v995
  %v1648 = vpop.f32.mrf.mxu0
  %v1649 = vadd.f32 %v1320, %v1648
  %v1650 = vpop.f32.mrf.mxu0
  %v1651 = vadd.f32 %v1322, %v1650
  %1652 = vmatmul.bf16.gmra.mxu0 %v998
  %v1653 = vpop.f32.mrf.mxu0
  %v1654 = vadd.f32 %v1325, %v1653
  %v1655 = vpop.f32.mrf.mxu0
  %v1656 = vadd.f32 %v1327, %v1655
  %1657 = vmatmul.bf16.gmra.mxu0 %v1001
  %v1658 = vpop.f32.mrf.mxu0
  %v1659 = vadd.f32 %v1330, %v1658
  %v1660 = vpop.f32.mrf.mxu0
  %v1661 = vadd.f32 %v1332, %v1660
  %1662 = vmatmul.bf16.gmra.mxu0 %v1004
  %v1663 = vpop.f32.mrf.mxu0
  %v1664 = vadd.f32 %v1335, %v1663
  %v1665 = vpop.f32.mrf.mxu0
  %v1666 = vadd.f32 %v1337, %v1665
  %1667 = vdwg.mxu0
  %v1668 = vmax.f32 %v1349, %v1429
  %v1669 = vmax.f32 %v1351, %v1431
  %v1670 = vmax.f32 %v1354, %v1434
  %v1671 = vmax.f32 %v1356, %v1436
  %v1672 = vmax.f32 %v1359, %v1439
  %v1673 = vmax.f32 %v1361, %v1441
  %v1674 = vmax.f32 %v1364, %v1444
  %v1675 = vmax.f32 %v1366, %v1446
  %v1676 = vmax.f32 %v1369, %v1449
  %v1677 = vmax.f32 %v1371, %v1451
  %v1678 = vmax.f32 %v1374, %v1454
  %v1679 = vmax.f32 %v1376, %v1456
  %v1680 = vmax.f32 %v1379, %v1459
  %v1681 = vmax.f32 %v1381, %v1461
  %v1682 = vmax.f32 %v1384, %v1464
  %v1683 = vmax.f32 %v1386, %v1466
  %v1684 = vmax.f32 %v1389, %v1469
  %v1685 = vmax.f32 %v1391, %v1471
  %v1686 = vmax.f32 %v1394, %v1474
  %v1687 = vmax.f32 %v1396, %v1476
  %v1688 = vmax.f32 %v1399, %v1479
  %v1689 = vmax.f32 %v1401, %v1481
  %v1690 = vmax.f32 %v1404, %v1484
  %v1691 = vmax.f32 %v1406, %v1486
  %v1692 = vmax.f32 %v1409, %v1489
  %v1693 = vmax.f32 %v1411, %v1491
  %v1694 = vmax.f32 %v1414, %v1494
  %v1695 = vmax.f32 %v1416, %v1496
  %v1696 = vmax.f32 %v1419, %v1499
  %v1697 = vmax.f32 %v1421, %v1501
  %v1698 = vmax.f32 %v1424, %v1504
  %v1699 = vmax.f32 %v1426, %v1506
  %v1700 = vmax.f32 %v1509, %v1589
  %v1701 = vmax.f32 %v1511, %v1591
  %v1702 = vmax.f32 %v1514, %v1594
  %v1703 = vmax.f32 %v1516, %v1596
  %v1704 = vmax.f32 %v1519, %v1599
  %v1705 = vmax.f32 %v1521, %v1601
  %v1706 = vmax.f32 %v1524, %v1604
  %v1707 = vmax.f32 %v1526, %v1606
  %v1708 = vmax.f32 %v1529, %v1609
  %v1709 = vmax.f32 %v1531, %v1611
  %v1710 = vmax.f32 %v1534, %v1614
  %v1711 = vmax.f32 %v1536, %v1616
  %v1712 = vmax.f32 %v1539, %v1619
  %v1713 = vmax.f32 %v1541, %v1621
  %v1714 = vmax.f32 %v1544, %v1624
  %v1715 = vmax.f32 %v1546, %v1626
  %v1716 = vmax.f32 %v1549, %v1629
  %v1717 = vmax.f32 %v1551, %v1631
  %v1718 = vmax.f32 %v1554, %v1634
  %v1719 = vmax.f32 %v1556, %v1636
  %v1720 = vmax.f32 %v1559, %v1639
  %v1721 = vmax.f32 %v1561, %v1641
  %v1722 = vmax.f32 %v1564, %v1644
  %v1723 = vmax.f32 %v1566, %v1646
  %v1724 = vmax.f32 %v1569, %v1649
  %v1725 = vmax.f32 %v1571, %v1651
  %v1726 = vmax.f32 %v1574, %v1654
  %v1727 = vmax.f32 %v1576, %v1656
  %v1728 = vmax.f32 %v1579, %v1659
  %v1729 = vmax.f32 %v1581, %v1661
  %v1730 = vmax.f32 %v1584, %v1664
  %v1731 = vmax.f32 %v1586, %v1666
  %v1732 = vmax.f32 %v1668, %v1700
  %v1733 = vmax.f32 %v1669, %v1701
  %v1734 = vmax.f32 %v1670, %v1702
  %v1735 = vmax.f32 %v1671, %v1703
  %v1736 = vmax.f32 %v1672, %v1704
  %v1737 = vmax.f32 %v1673, %v1705
  %v1738 = vmax.f32 %v1674, %v1706
  %v1739 = vmax.f32 %v1675, %v1707
  %v1740 = vmax.f32 %v1676, %v1708
  %v1741 = vmax.f32 %v1677, %v1709
  %v1742 = vmax.f32 %v1678, %v1710
  %v1743 = vmax.f32 %v1679, %v1711
  %v1744 = vmax.f32 %v1680, %v1712
  %v1745 = vmax.f32 %v1681, %v1713
  %v1746 = vmax.f32 %v1682, %v1714
  %v1747 = vmax.f32 %v1683, %v1715
  %v1748 = vmax.f32 %v1684, %v1716
  %v1749 = vmax.f32 %v1685, %v1717
  %v1750 = vmax.f32 %v1686, %v1718
  %v1751 = vmax.f32 %v1687, %v1719
  %v1752 = vmax.f32 %v1688, %v1720
  %v1753 = vmax.f32 %v1689, %v1721
  %v1754 = vmax.f32 %v1690, %v1722
  %v1755 = vmax.f32 %v1691, %v1723
  %v1756 = vmax.f32 %v1692, %v1724
  %v1757 = vmax.f32 %v1693, %v1725
  %v1758 = vmax.f32 %v1694, %v1726
  %v1759 = vmax.f32 %v1695, %v1727
  %v1760 = vmax.f32 %v1696, %v1728
  %v1761 = vmax.f32 %v1697, %v1729
  %v1762 = vmax.f32 %v1698, %v1730
  %v1763 = vmax.f32 %v1699, %v1731
  %v1764 = vld [vmem:[%s2] sm:$0x1]
  %v1766 = vperm.slane %v1764, 0
  %v1768 = vadd.f32 %v1732, %v1766
  %v1769 = vadd.f32 %v1733, %v1766
  %v1770 = vadd.f32 %v1734, %v1766
  %v1771 = vadd.f32 %v1735, %v1766
  %v1772 = vadd.f32 %v1736, %v1766
  %v1773 = vadd.f32 %v1737, %v1766
  %v1774 = vadd.f32 %v1738, %v1766
  %v1775 = vadd.f32 %v1739, %v1766
  %v1776 = vadd.f32 %v1740, %v1766
  %v1777 = vadd.f32 %v1741, %v1766
  %v1778 = vadd.f32 %v1742, %v1766
  %v1779 = vadd.f32 %v1743, %v1766
  %v1780 = vadd.f32 %v1744, %v1766
  %v1781 = vadd.f32 %v1745, %v1766
  %v1782 = vadd.f32 %v1746, %v1766
  %v1783 = vadd.f32 %v1747, %v1766
  %v1784 = vadd.f32 %v1748, %v1766
  %v1785 = vadd.f32 %v1749, %v1766
  %v1786 = vadd.f32 %v1750, %v1766
  %v1787 = vadd.f32 %v1751, %v1766
  %v1788 = vadd.f32 %v1752, %v1766
  %v1789 = vadd.f32 %v1753, %v1766
  %v1790 = vadd.f32 %v1754, %v1766
  %v1791 = vadd.f32 %v1755, %v1766
  %v1792 = vadd.f32 %v1756, %v1766
  %v1793 = vadd.f32 %v1757, %v1766
  %v1794 = vadd.f32 %v1758, %v1766
  %v1795 = vadd.f32 %v1759, %v1766
  %v1796 = vadd.f32 %v1760, %v1766
  %v1797 = vadd.f32 %v1761, %v1766
  %v1798 = vadd.f32 %v1762, %v1766
  %v1799 = vadd.f32 %v1763, %v1766
  %v1800 = vmax.f32 %v1768, 0.0
  %v1801 = vmax.f32 %v1769, 0.0
  %v1802 = vmax.f32 %v1770, 0.0
  %v1803 = vmax.f32 %v1771, 0.0
  %v1804 = vmax.f32 %v1772, 0.0
  %v1805 = vmax.f32 %v1773, 0.0
  %v1806 = vmax.f32 %v1774, 0.0
  %v1807 = vmax.f32 %v1775, 0.0
  %v1808 = vmax.f32 %v1776, 0.0
  %v1809 = vmax.f32 %v1777, 0.0
  %v1810 = vmax.f32 %v1778, 0.0
  %v1811 = vmax.f32 %v1779, 0.0
  %v1812 = vmax.f32 %v1780, 0.0
  %v1813 = vmax.f32 %v1781, 0.0
  %v1814 = vmax.f32 %v1782, 0.0
  %v1815 = vmax.f32 %v1783, 0.0
  %v1816 = vmax.f32 %v1784, 0.0
  %v1817 = vmax.f32 %v1785, 0.0
  %v1818 = vmax.f32 %v1786, 0.0
  %v1819 = vmax.f32 %v1787, 0.0
  %v1820 = vmax.f32 %v1788, 0.0
  %v1821 = vmax.f32 %v1789, 0.0
  %v1822 = vmax.f32 %v1790, 0.0
  %v1823 = vmax.f32 %v1791, 0.0
  %v1824 = vmax.f32 %v1792, 0.0
  %v1825 = vmax.f32 %v1793, 0.0
  %v1826 = vmax.f32 %v1794, 0.0
  %v1827 = vmax.f32 %v1795, 0.0
  %v1828 = vmax.f32 %v1796, 0.0
  %v1829 = vmax.f32 %v1797, 0.0
  %v1830 = vmax.f32 %v1798, 0.0
  %v1831 = vmax.f32 %v1799, 0.0
  %v1832 = vld [vmem:[%s3] sm:$0xff]
  %v1833 = vld [vmem:[%s3 + $0x8] sm:$0xff]
  %v1834 = vld [vmem:[%s3 + $0x10] sm:$0xff]
  %v1835 = vld [vmem:[%s3 + $0x18] sm:$0xff]
  %v1836 = vld [vmem:[%s3 + $0x20] sm:$0xff]
  %v1837 = vld [vmem:[%s3 + $0x28] sm:$0xff]
  %v1838 = vld [vmem:[%s3 + $0x30] sm:$0xff]
  %v1839 = vld [vmem:[%s3 + $0x38] sm:$0xff]
  %v1840 = vld [vmem:[%s3 + $0x40] sm:$0xff]
  %v1841 = vld [vmem:[%s3 + $0x48] sm:$0xff]
  %v1842 = vld [vmem:[%s3 + $0x50] sm:$0xff]
  %v1843 = vld [vmem:[%s3 + $0x58] sm:$0xff]
  %v1844 = vld [vmem:[%s3 + $0x60] sm:$0xff]
  %v1845 = vld [vmem:[%s3 + $0x68] sm:$0xff]
  %v1846 = vld [vmem:[%s3 + $0x70] sm:$0xff]
  %v1847 = vld [vmem:[%s3 + $0x78] sm:$0xff]
  %v1848 = vld [vmem:[%s3 + $0x80] sm:$0xff]
  %v1849 = vld [vmem:[%s3 + $0x88] sm:$0xff]
  %v1850 = vld [vmem:[%s3 + $0x90] sm:$0xff]
  %v1851 = vld [vmem:[%s3 + $0x98] sm:$0xff]
  %v1852 = vld [vmem:[%s3 + $0xa0] sm:$0xff]
  %v1853 = vld [vmem:[%s3 + $0xa8] sm:$0xff]
  %v1854 = vld [vmem:[%s3 + $0xb0] sm:$0xff]
  %v1855 = vld [vmem:[%s3 + $0xb8] sm:$0xff]
  %v1856 = vld [vmem:[%s3 + $0xc0] sm:$0xff]
  %v1857 = vld [vmem:[%s3 + $0xc8] sm:$0xff]
  %v1858 = vld [vmem:[%s3 + $0xd0] sm:$0xff]
  %v1859 = vld [vmem:[%s3 + $0xd8] sm:$0xff]
  %v1860 = vld [vmem:[%s3 + $0xe0] sm:$0xff]
  %v1861 = vld [vmem:[%s3 + $0xe8] sm:$0xff]
  %v1862 = vld [vmem:[%s3 + $0xf0] sm:$0xff]
  %v1863 = vld [vmem:[%s3 + $0xf8] sm:$0xff]
  %v1864 = vld [vmem:[%s3 + $0x100] sm:$0xff]
  %v1865 = vld [vmem:[%s3 + $0x108] sm:$0xff]
  %v1866 = vld [vmem:[%s3 + $0x110] sm:$0xff]
  %v1867 = vld [vmem:[%s3 + $0x118] sm:$0xff]
  %v1868 = vld [vmem:[%s3 + $0x120] sm:$0xff]
  %v1869 = vld [vmem:[%s3 + $0x128] sm:$0xff]
  %v1870 = vld [vmem:[%s3 + $0x130] sm:$0xff]
  %v1871 = vld [vmem:[%s3 + $0x138] sm:$0xff]
  %v1872 = vld [vmem:[%s3 + $0x140] sm:$0xff]
  %v1873 = vld [vmem:[%s3 + $0x148] sm:$0xff]
  %v1874 = vld [vmem:[%s3 + $0x150] sm:$0xff]
  %v1875 = vld [vmem:[%s3 + $0x158] sm:$0xff]
  %v1876 = vld [vmem:[%s3 + $0x160] sm:$0xff]
  %v1877 = vld [vmem:[%s3 + $0x168] sm:$0xff]
  %v1878 = vld [vmem:[%s3 + $0x170] sm:$0xff]
  %v1879 = vld [vmem:[%s3 + $0x178] sm:$0xff]
  %v1880 = vld [vmem:[%s3 + $0x180] sm:$0xff]
  %v1881 = vld [vmem:[%s3 + $0x188] sm:$0xff]
  %v1882 = vld [vmem:[%s3 + $0x190] sm:$0xff]
  %v1883 = vld [vmem:[%s3 + $0x198] sm:$0xff]
  %v1884 = vld [vmem:[%s3 + $0x1a0] sm:$0xff]
  %v1885 = vld [vmem:[%s3 + $0x1a8] sm:$0xff]
  %v1886 = vld [vmem:[%s3 + $0x1b0] sm:$0xff]
  %v1887 = vld [vmem:[%s3 + $0x1b8] sm:$0xff]
  %v1888 = vld [vmem:[%s3 + $0x1c0] sm:$0xff]
  %v1889 = vld [vmem:[%s3 + $0x1c8] sm:$0xff]
  %v1890 = vld [vmem:[%s3 + $0x1d0] sm:$0xff]
  %v1891 = vld [vmem:[%s3 + $0x1d8] sm:$0xff]
  %v1892 = vld [vmem:[%s3 + $0x1e0] sm:$0xff]
  %v1893 = vld [vmem:[%s3 + $0x1e8] sm:$0xff]
  %v1894 = vld [vmem:[%s3 + $0x1f0] sm:$0xff]
  %v1895 = vld [vmem:[%s3 + $0x1f8] sm:$0xff]
  %v1896 = vld [vmem:[%s3 + $0x200] sm:$0xff]
  %v1897 = vld [vmem:[%s3 + $0x208] sm:$0xff]
  %v1898 = vld [vmem:[%s3 + $0x210] sm:$0xff]
  %v1899 = vld [vmem:[%s3 + $0x218] sm:$0xff]
  %v1900 = vld [vmem:[%s3 + $0x220] sm:$0xff]
  %v1901 = vld [vmem:[%s3 + $0x228] sm:$0xff]
  %v1902 = vld [vmem:[%s3 + $0x230] sm:$0xff]
  %v1903 = vld [vmem:[%s3 + $0x238] sm:$0xff]
  %v1904 = vld [vmem:[%s3 + $0x240] sm:$0xff]
  %v1905 = vld [vmem:[%s3 + $0x248] sm:$0xff]
  %v1906 = vld [vmem:[%s3 + $0x250] sm:$0xff]
  %v1907 = vld [vmem:[%s3 + $0x258] sm:$0xff]
  %v1908 = vld [vmem:[%s3 + $0x260] sm:$0xff]
  %v1909 = vld [vmem:[%s3 + $0x268] sm:$0xff]
  %v1910 = vld [vmem:[%s3 + $0x270] sm:$0xff]
  %v1911 = vld [vmem:[%s3 + $0x278] sm:$0xff]
  %v1912 = vld [vmem:[%s3 + $0x280] sm:$0xff]
  %v1913 = vld [vmem:[%s3 + $0x288] sm:$0xff]
  %v1914 = vld [vmem:[%s3 + $0x290] sm:$0xff]
  %v1915 = vld [vmem:[%s3 + $0x298] sm:$0xff]
  %v1916 = vld [vmem:[%s3 + $0x2a0] sm:$0xff]
  %v1917 = vld [vmem:[%s3 + $0x2a8] sm:$0xff]
  %v1918 = vld [vmem:[%s3 + $0x2b0] sm:$0xff]
  %v1919 = vld [vmem:[%s3 + $0x2b8] sm:$0xff]
  %v1920 = vld [vmem:[%s3 + $0x2c0] sm:$0xff]
  %v1921 = vld [vmem:[%s3 + $0x2c8] sm:$0xff]
  %v1922 = vld [vmem:[%s3 + $0x2d0] sm:$0xff]
  %v1923 = vld [vmem:[%s3 + $0x2d8] sm:$0xff]
  %v1924 = vld [vmem:[%s3 + $0x2e0] sm:$0xff]
  %v1925 = vld [vmem:[%s3 + $0x2e8] sm:$0xff]
  %v1926 = vld [vmem:[%s3 + $0x2f0] sm:$0xff]
  %v1927 = vld [vmem:[%s3 + $0x2f8] sm:$0xff]
  %v1928 = vld [vmem:[%s3 + $0x300] sm:$0xff]
  %v1929 = vld [vmem:[%s3 + $0x308] sm:$0xff]
  %v1930 = vld [vmem:[%s3 + $0x310] sm:$0xff]
  %v1931 = vld [vmem:[%s3 + $0x318] sm:$0xff]
  %v1932 = vld [vmem:[%s3 + $0x320] sm:$0xff]
  %v1933 = vld [vmem:[%s3 + $0x328] sm:$0xff]
  %v1934 = vld [vmem:[%s3 + $0x330] sm:$0xff]
  %v1935 = vld [vmem:[%s3 + $0x338] sm:$0xff]
  %v1936 = vld [vmem:[%s3 + $0x340] sm:$0xff]
  %v1937 = vld [vmem:[%s3 + $0x348] sm:$0xff]
  %v1938 = vld [vmem:[%s3 + $0x350] sm:$0xff]
  %v1939 = vld [vmem:[%s3 + $0x358] sm:$0xff]
  %v1940 = vld [vmem:[%s3 + $0x360] sm:$0xff]
  %v1941 = vld [vmem:[%s3 + $0x368] sm:$0xff]
  %v1942 = vld [vmem:[%s3 + $0x370] sm:$0xff]
  %v1943 = vld [vmem:[%s3 + $0x378] sm:$0xff]
  %v1944 = vld [vmem:[%s3 + $0x380] sm:$0xff]
  %v1945 = vld [vmem:[%s3 + $0x388] sm:$0xff]
  %v1946 = vld [vmem:[%s3 + $0x390] sm:$0xff]
  %v1947 = vld [vmem:[%s3 + $0x398] sm:$0xff]
  %v1948 = vld [vmem:[%s3 + $0x3a0] sm:$0xff]
  %v1949 = vld [vmem:[%s3 + $0x3a8] sm:$0xff]
  %v1950 = vld [vmem:[%s3 + $0x3b0] sm:$0xff]
  %v1951 = vld [vmem:[%s3 + $0x3b8] sm:$0xff]
  %v1952 = vld [vmem:[%s3 + $0x3c0] sm:$0xff]
  %v1953 = vld [vmem:[%s3 + $0x3c8] sm:$0xff]
  %v1954 = vld [vmem:[%s3 + $0x3d0] sm:$0xff]
  %v1955 = vld [vmem:[%s3 + $0x3d8] sm:$0xff]
  %v1956 = vld [vmem:[%s3 + $0x3e0] sm:$0xff]
  %v1957 = vld [vmem:[%s3 + $0x3e8] sm:$0xff]
  %v1958 = vld [vmem:[%s3 + $0x3f0] sm:$0xff]
  %v1959 = vld [vmem:[%s3 + $0x3f8] sm:$0xff]
  %v1960 = vld [vmem:[%s3 + $0x400] sm:$0xff]
  %v1961 = vld [vmem:[%s3 + $0x408] sm:$0xff]
  %v1962 = vld [vmem:[%s3 + $0x410] sm:$0xff]
  %v1963 = vld [vmem:[%s3 + $0x418] sm:$0xff]
  %v1964 = vld [vmem:[%s3 + $0x420] sm:$0xff]
  %v1965 = vld [vmem:[%s3 + $0x428] sm:$0xff]
  %v1966 = vld [vmem:[%s3 + $0x430] sm:$0xff]
  %v1967 = vld [vmem:[%s3 + $0x438] sm:$0xff]
  %v1968 = vld [vmem:[%s3 + $0x440] sm:$0xff]
  %v1969 = vld [vmem:[%s3 + $0x448] sm:$0xff]
  %v1970 = vld [vmem:[%s3 + $0x450] sm:$0xff]
  %v1971 = vld [vmem:[%s3 + $0x458] sm:$0xff]
  %v1972 = vld [vmem:[%s3 + $0x460] sm:$0xff]
  %v1973 = vld [vmem:[%s3 + $0x468] sm:$0xff]
  %v1974 = vld [vmem:[%s3 + $0x470] sm:$0xff]
  %v1975 = vld [vmem:[%s3 + $0x478] sm:$0xff]
  %v1976 = vld [vmem:[%s3 + $0x480] sm:$0xff]
  %v1977 = vld [vmem:[%s3 + $0x488] sm:$0xff]
  %v1978 = vld [vmem:[%s3 + $0x490] sm:$0xff]
  %v1979 = vld [vmem:[%s3 + $0x498] sm:$0xff]
  %v1980 = vld [vmem:[%s3 + $0x4a0] sm:$0xff]
  %v1981 = vld [vmem:[%s3 + $0x4a8] sm:$0xff]
  %v1982 = vld [vmem:[%s3 + $0x4b0] sm:$0xff]
  %v1983 = vld [vmem:[%s3 + $0x4b8] sm:$0xff]
  %v1984 = vld [vmem:[%s3 + $0x4c0] sm:$0xff]
  %v1985 = vld [vmem:[%s3 + $0x4c8] sm:$0xff]
  %v1986 = vld [vmem:[%s3 + $0x4d0] sm:$0xff]
  %v1987 = vld [vmem:[%s3 + $0x4d8] sm:$0xff]
  %v1988 = vld [vmem:[%s3 + $0x4e0] sm:$0xff]
  %v1989 = vld [vmem:[%s3 + $0x4e8] sm:$0xff]
  %v1990 = vld [vmem:[%s3 + $0x4f0] sm:$0xff]
  %v1991 = vld [vmem:[%s3 + $0x4f8] sm:$0xff]
  %v1992 = vld [vmem:[%s3 + $0x500] sm:$0xff]
  %v1993 = vld [vmem:[%s3 + $0x508] sm:$0xff]
  %v1994 = vld [vmem:[%s3 + $0x510] sm:$0xff]
  %v1995 = vld [vmem:[%s3 + $0x518] sm:$0xff]
  %v1996 = vld [vmem:[%s3 + $0x520] sm:$0xff]
  %v1997 = vld [vmem:[%s3 + $0x528] sm:$0xff]
  %v1998 = vld [vmem:[%s3 + $0x530] sm:$0xff]
  %v1999 = vld [vmem:[%s3 + $0x538] sm:$0xff]
  %v2000 = vld [vmem:[%s3 + $0x540] sm:$0xff]
  %v2001 = vld [vmem:[%s3 + $0x548] sm:$0xff]
  %v2002 = vld [vmem:[%s3 + $0x550] sm:$0xff]
  %v2003 = vld [vmem:[%s3 + $0x558] sm:$0xff]
  %v2004 = vld [vmem:[%s3 + $0x560] sm:$0xff]
  %v2005 = vld [vmem:[%s3 + $0x568] sm:$0xff]
  %v2006 = vld [vmem:[%s3 + $0x570] sm:$0xff]
  %v2007 = vld [vmem:[%s3 + $0x578] sm:$0xff]
  %v2008 = vld [vmem:[%s3 + $0x580] sm:$0xff]
  %v2009 = vld [vmem:[%s3 + $0x588] sm:$0xff]
  %v2010 = vld [vmem:[%s3 + $0x590] sm:$0xff]
  %v2011 = vld [vmem:[%s3 + $0x598] sm:$0xff]
  %v2012 = vld [vmem:[%s3 + $0x5a0] sm:$0xff]
  %v2013 = vld [vmem:[%s3 + $0x5a8] sm:$0xff]
  %v2014 = vld [vmem:[%s3 + $0x5b0] sm:$0xff]
  %v2015 = vld [vmem:[%s3 + $0x5b8] sm:$0xff]
  %v2016 = vld [vmem:[%s3 + $0x5c0] sm:$0xff]
  %v2017 = vld [vmem:[%s3 + $0x5c8] sm:$0xff]
  %v2018 = vld [vmem:[%s3 + $0x5d0] sm:$0xff]
  %v2019 = vld [vmem:[%s3 + $0x5d8] sm:$0xff]
  %v2020 = vld [vmem:[%s3 + $0x5e0] sm:$0xff]
  %v2021 = vld [vmem:[%s3 + $0x5e8] sm:$0xff]
  %v2022 = vld [vmem:[%s3 + $0x5f0] sm:$0xff]
  %v2023 = vld [vmem:[%s3 + $0x5f8] sm:$0xff]
  %v2024 = vld [vmem:[%s3 + $0x600] sm:$0xff]
  %v2025 = vld [vmem:[%s3 + $0x608] sm:$0xff]
  %v2026 = vld [vmem:[%s3 + $0x610] sm:$0xff]
  %v2027 = vld [vmem:[%s3 + $0x618] sm:$0xff]
  %v2028 = vld [vmem:[%s3 + $0x620] sm:$0xff]
  %v2029 = vld [vmem:[%s3 + $0x628] sm:$0xff]
  %v2030 = vld [vmem:[%s3 + $0x630] sm:$0xff]
  %v2031 = vld [vmem:[%s3 + $0x638] sm:$0xff]
  %v2032 = vld [vmem:[%s3 + $0x640] sm:$0xff]
  %v2033 = vld [vmem:[%s3 + $0x648] sm:$0xff]
  %v2034 = vld [vmem:[%s3 + $0x650] sm:$0xff]
  %v2035 = vld [vmem:[%s3 + $0x658] sm:$0xff]
  %v2036 = vld [vmem:[%s3 + $0x660] sm:$0xff]
  %v2037 = vld [vmem:[%s3 + $0x668] sm:$0xff]
  %v2038 = vld [vmem:[%s3 + $0x670] sm:$0xff]
  %v2039 = vld [vmem:[%s3 + $0x678] sm:$0xff]
  %v2040 = vld [vmem:[%s3 + $0x680] sm:$0xff]
  %v2041 = vld [vmem:[%s3 + $0x688] sm:$0xff]
  %v2042 = vld [vmem:[%s3 + $0x690] sm:$0xff]
  %v2043 = vld [vmem:[%s3 + $0x698] sm:$0xff]
  %v2044 = vld [vmem:[%s3 + $0x6a0] sm:$0xff]
  %v2045 = vld [vmem:[%s3 + $0x6a8] sm:$0xff]
  %v2046 = vld [vmem:[%s3 + $0x6b0] sm:$0xff]
  %v2047 = vld [vmem:[%s3 + $0x6b8] sm:$0xff]
  %v2048 = vld [vmem:[%s3 + $0x6c0] sm:$0xff]
  %v2049 = vld [vmem:[%s3 + $0x6c8] sm:$0xff]
  %v2050 = vld [vmem:[%s3 + $0x6d0] sm:$0xff]
  %v2051 = vld [vmem:[%s3 + $0x6d8] sm:$0xff]
  %v2052 = vld [vmem:[%s3 + $0x6e0] sm:$0xff]
  %v2053 = vld [vmem:[%s3 + $0x6e8] sm:$0xff]
  %v2054 = vld [vmem:[%s3 + $0x6f0] sm:$0xff]
  %v2055 = vld [vmem:[%s3 + $0x6f8] sm:$0xff]
  %v2056 = vld [vmem:[%s3 + $0x700] sm:$0xff]
  %v2057 = vld [vmem:[%s3 + $0x708] sm:$0xff]
  %v2058 = vld [vmem:[%s3 + $0x710] sm:$0xff]
  %v2059 = vld [vmem:[%s3 + $0x718] sm:$0xff]
  %v2060 = vld [vmem:[%s3 + $0x720] sm:$0xff]
  %v2061 = vld [vmem:[%s3 + $0x728] sm:$0xff]
  %v2062 = vld [vmem:[%s3 + $0x730] sm:$0xff]
  %v2063 = vld [vmem:[%s3 + $0x738] sm:$0xff]
  %v2064 = vld [vmem:[%s3 + $0x740] sm:$0xff]
  %v2065 = vld [vmem:[%s3 + $0x748] sm:$0xff]
  %v2066 = vld [vmem:[%s3 + $0x750] sm:$0xff]
  %v2067 = vld [vmem:[%s3 + $0x758] sm:$0xff]
  %v2068 = vld [vmem:[%s3 + $0x760] sm:$0xff]
  %v2069 = vld [vmem:[%s3 + $0x768] sm:$0xff]
  %v2070 = vld [vmem:[%s3 + $0x770] sm:$0xff]
  %v2071 = vld [vmem:[%s3 + $0x778] sm:$0xff]
  %v2072 = vld [vmem:[%s3 + $0x780] sm:$0xff]
  %v2073 = vld [vmem:[%s3 + $0x788] sm:$0xff]
  %v2074 = vld [vmem:[%s3 + $0x790] sm:$0xff]
  %v2075 = vld [vmem:[%s3 + $0x798] sm:$0xff]
  %v2076 = vld [vmem:[%s3 + $0x7a0] sm:$0xff]
  %v2077 = vld [vmem:[%s3 + $0x7a8] sm:$0xff]
  %v2078 = vld [vmem:[%s3 + $0x7b0] sm:$0xff]
  %v2079 = vld [vmem:[%s3 + $0x7b8] sm:$0xff]
  %v2080 = vld [vmem:[%s3 + $0x7c0] sm:$0xff]
  %v2081 = vld [vmem:[%s3 + $0x7c8] sm:$0xff]
  %v2082 = vld [vmem:[%s3 + $0x7d0] sm:$0xff]
  %v2083 = vld [vmem:[%s3 + $0x7d8] sm:$0xff]
  %v2084 = vld [vmem:[%s3 + $0x7e0] sm:$0xff]
  %v2085 = vld [vmem:[%s3 + $0x7e8] sm:$0xff]
  %v2086 = vld [vmem:[%s3 + $0x7f0] sm:$0xff]
  %v2087 = vld [vmem:[%s3 + $0x7f8] sm:$0xff]
  %v2088 = vld [vmem:[%s3 + $0x800] sm:$0xff]
  %v2089 = vld [vmem:[%s3 + $0x808] sm:$0xff]
  %v2090 = vld [vmem:[%s3 + $0x810] sm:$0xff]
  %v2091 = vld [vmem:[%s3 + $0x818] sm:$0xff]
  %v2092 = vld [vmem:[%s3 + $0x820] sm:$0xff]
  %v2093 = vld [vmem:[%s3 + $0x828] sm:$0xff]
  %v2094 = vld [vmem:[%s3 + $0x830] sm:$0xff]
  %v2095 = vld [vmem:[%s3 + $0x838] sm:$0xff]
  %v2096 = vld [vmem:[%s3 + $0x840] sm:$0xff]
  %v2097 = vld [vmem:[%s3 + $0x848] sm:$0xff]
  %v2098 = vld [vmem:[%s3 + $0x850] sm:$0xff]
  %v2099 = vld [vmem:[%s3 + $0x858] sm:$0xff]
  %v2100 = vld [vmem:[%s3 + $0x860] sm:$0xff]
  %v2101 = vld [vmem:[%s3 + $0x868] sm:$0xff]
  %v2102 = vld [vmem:[%s3 + $0x870] sm:$0xff]
  %v2103 = vld [vmem:[%s3 + $0x878] sm:$0xff]
  %v2104 = vld [vmem:[%s3 + $0x880] sm:$0xff]
  %v2105 = vld [vmem:[%s3 + $0x888] sm:$0xff]
  %v2106 = vld [vmem:[%s3 + $0x890] sm:$0xff]
  %v2107 = vld [vmem:[%s3 + $0x898] sm:$0xff]
  %v2108 = vld [vmem:[%s3 + $0x8a0] sm:$0xff]
  %v2109 = vld [vmem:[%s3 + $0x8a8] sm:$0xff]
  %v2110 = vld [vmem:[%s3 + $0x8b0] sm:$0xff]
  %v2111 = vld [vmem:[%s3 + $0x8b8] sm:$0xff]
  %v2112 = vld [vmem:[%s3 + $0x8c0] sm:$0xff]
  %v2113 = vld [vmem:[%s3 + $0x8c8] sm:$0xff]
  %v2114 = vld [vmem:[%s3 + $0x8d0] sm:$0xff]
  %v2115 = vld [vmem:[%s3 + $0x8d8] sm:$0xff]
  %v2116 = vld [vmem:[%s3 + $0x8e0] sm:$0xff]
  %v2117 = vld [vmem:[%s3 + $0x8e8] sm:$0xff]
  %v2118 = vld [vmem:[%s3 + $0x8f0] sm:$0xff]
  %v2119 = vld [vmem:[%s3 + $0x8f8] sm:$0xff]
  %v2120 = vld [vmem:[%s3 + $0x900] sm:$0xff]
  %v2121 = vld [vmem:[%s3 + $0x908] sm:$0xff]
  %v2122 = vld [vmem:[%s3 + $0x910] sm:$0xff]
  %v2123 = vld [vmem:[%s3 + $0x918] sm:$0xff]
  %v2124 = vld [vmem:[%s3 + $0x920] sm:$0xff]
  %v2125 = vld [vmem:[%s3 + $0x928] sm:$0xff]
  %v2126 = vld [vmem:[%s3 + $0x930] sm:$0xff]
  %v2127 = vld [vmem:[%s3 + $0x938] sm:$0xff]
  %v2128 = vld [vmem:[%s3 + $0x940] sm:$0xff]
  %v2129 = vld [vmem:[%s3 + $0x948] sm:$0xff]
  %v2130 = vld [vmem:[%s3 + $0x950] sm:$0xff]
  %v2131 = vld [vmem:[%s3 + $0x958] sm:$0xff]
  %v2132 = vld [vmem:[%s3 + $0x960] sm:$0xff]
  %v2133 = vld [vmem:[%s3 + $0x968] sm:$0xff]
  %v2134 = vld [vmem:[%s3 + $0x970] sm:$0xff]
  %v2135 = vld [vmem:[%s3 + $0x978] sm:$0xff]
  %v2136 = vld [vmem:[%s3 + $0x980] sm:$0xff]
  %v2137 = vld [vmem:[%s3 + $0x988] sm:$0xff]
  %v2138 = vld [vmem:[%s3 + $0x990] sm:$0xff]
  %v2139 = vld [vmem:[%s3 + $0x998] sm:$0xff]
  %v2140 = vld [vmem:[%s3 + $0x9a0] sm:$0xff]
  %v2141 = vld [vmem:[%s3 + $0x9a8] sm:$0xff]
  %v2142 = vld [vmem:[%s3 + $0x9b0] sm:$0xff]
  %v2143 = vld [vmem:[%s3 + $0x9b8] sm:$0xff]
  %v2144 = vld [vmem:[%s3 + $0x9c0] sm:$0xff]
  %v2145 = vld [vmem:[%s3 + $0x9c8] sm:$0xff]
  %v2146 = vld [vmem:[%s3 + $0x9d0] sm:$0xff]
  %v2147 = vld [vmem:[%s3 + $0x9d8] sm:$0xff]
  %v2148 = vld [vmem:[%s3 + $0x9e0] sm:$0xff]
  %v2149 = vld [vmem:[%s3 + $0x9e8] sm:$0xff]
  %v2150 = vld [vmem:[%s3 + $0x9f0] sm:$0xff]
  %v2151 = vld [vmem:[%s3 + $0x9f8] sm:$0xff]
  %v2152 = vld [vmem:[%s3 + $0xa00] sm:$0xff]
  %v2153 = vld [vmem:[%s3 + $0xa08] sm:$0xff]
  %v2154 = vld [vmem:[%s3 + $0xa10] sm:$0xff]
  %v2155 = vld [vmem:[%s3 + $0xa18] sm:$0xff]
  %v2156 = vld [vmem:[%s3 + $0xa20] sm:$0xff]
  %v2157 = vld [vmem:[%s3 + $0xa28] sm:$0xff]
  %v2158 = vld [vmem:[%s3 + $0xa30] sm:$0xff]
  %v2159 = vld [vmem:[%s3 + $0xa38] sm:$0xff]
  %v2160 = vld [vmem:[%s3 + $0xa40] sm:$0xff]
  %v2161 = vld [vmem:[%s3 + $0xa48] sm:$0xff]
  %v2162 = vld [vmem:[%s3 + $0xa50] sm:$0xff]
  %v2163 = vld [vmem:[%s3 + $0xa58] sm:$0xff]
  %v2164 = vld [vmem:[%s3 + $0xa60] sm:$0xff]
  %v2165 = vld [vmem:[%s3 + $0xa68] sm:$0xff]
  %v2166 = vld [vmem:[%s3 + $0xa70] sm:$0xff]
  %v2167 = vld [vmem:[%s3 + $0xa78] sm:$0xff]
  %v2168 = vld [vmem:[%s3 + $0xa80] sm:$0xff]
  %v2169 = vld [vmem:[%s3 + $0xa88] sm:$0xff]
  %v2170 = vld [vmem:[%s3 + $0xa90] sm:$0xff]
  %v2171 = vld [vmem:[%s3 + $0xa98] sm:$0xff]
  %v2172 = vld [vmem:[%s3 + $0xaa0] sm:$0xff]
  %v2173 = vld [vmem:[%s3 + $0xaa8] sm:$0xff]
  %v2174 = vld [vmem:[%s3 + $0xab0] sm:$0xff]
  %v2175 = vld [vmem:[%s3 + $0xab8] sm:$0xff]
  %v2176 = vld [vmem:[%s3 + $0xac0] sm:$0xff]
  %v2177 = vld [vmem:[%s3 + $0xac8] sm:$0xff]
  %v2178 = vld [vmem:[%s3 + $0xad0] sm:$0xff]
  %v2179 = vld [vmem:[%s3 + $0xad8] sm:$0xff]
  %v2180 = vld [vmem:[%s3 + $0xae0] sm:$0xff]
  %v2181 = vld [vmem:[%s3 + $0xae8] sm:$0xff]
  %v2182 = vld [vmem:[%s3 + $0xaf0] sm:$0xff]
  %v2183 = vld [vmem:[%s3 + $0xaf8] sm:$0xff]
  %v2184 = vld [vmem:[%s3 + $0xb00] sm:$0xff]
  %v2185 = vld [vmem:[%s3 + $0xb08] sm:$0xff]
  %v2186 = vld [vmem:[%s3 + $0xb10] sm:$0xff]
  %v2187 = vld [vmem:[%s3 + $0xb18] sm:$0xff]
  %v2188 = vld [vmem:[%s3 + $0xb20] sm:$0xff]
  %v2189 = vld [vmem:[%s3 + $0xb28] sm:$0xff]
  %v2190 = vld [vmem:[%s3 + $0xb30] sm:$0xff]
  %v2191 = vld [vmem:[%s3 + $0xb38] sm:$0xff]
  %v2192 = vld [vmem:[%s3 + $0xb40] sm:$0xff]
  %v2193 = vld [vmem:[%s3 + $0xb48] sm:$0xff]
  %v2194 = vld [vmem:[%s3 + $0xb50] sm:$0xff]
  %v2195 = vld [vmem:[%s3 + $0xb58] sm:$0xff]
  %v2196 = vld [vmem:[%s3 + $0xb60] sm:$0xff]
  %v2197 = vld [vmem:[%s3 + $0xb68] sm:$0xff]
  %v2198 = vld [vmem:[%s3 + $0xb70] sm:$0xff]
  %v2199 = vld [vmem:[%s3 + $0xb78] sm:$0xff]
  %v2200 = vld [vmem:[%s3 + $0xb80] sm:$0xff]
  %v2201 = vld [vmem:[%s3 + $0xb88] sm:$0xff]
  %v2202 = vld [vmem:[%s3 + $0xb90] sm:$0xff]
  %v2203 = vld [vmem:[%s3 + $0xb98] sm:$0xff]
  %v2204 = vld [vmem:[%s3 + $0xba0] sm:$0xff]
  %v2205 = vld [vmem:[%s3 + $0xba8] sm:$0xff]
  %v2206 = vld [vmem:[%s3 + $0xbb0] sm:$0xff]
  %v2207 = vld [vmem:[%s3 + $0xbb8] sm:$0xff]
  %v2208 = vld [vmem:[%s3 + $0xbc0] sm:$0xff]
  %v2209 = vld [vmem:[%s3 + $0xbc8] sm:$0xff]
  %v2210 = vld [vmem:[%s3 + $0xbd0] sm:$0xff]
  %v2211 = vld [vmem:[%s3 + $0xbd8] sm:$0xff]
  %v2212 = vld [vmem:[%s3 + $0xbe0] sm:$0xff]
  %v2213 = vld [vmem:[%s3 + $0xbe8] sm:$0xff]
  %v2214 = vld [vmem:[%s3 + $0xbf0] sm:$0xff]
  %v2215 = vld [vmem:[%s3 + $0xbf8] sm:$0xff]
  %v2216 = vld [vmem:[%s3 + $0xc00] sm:$0xff]
  %v2217 = vld [vmem:[%s3 + $0xc08] sm:$0xff]
  %v2218 = vld [vmem:[%s3 + $0xc10] sm:$0xff]
  %v2219 = vld [vmem:[%s3 + $0xc18] sm:$0xff]
  %v2220 = vld [vmem:[%s3 + $0xc20] sm:$0xff]
  %v2221 = vld [vmem:[%s3 + $0xc28] sm:$0xff]
  %v2222 = vld [vmem:[%s3 + $0xc30] sm:$0xff]
  %v2223 = vld [vmem:[%s3 + $0xc38] sm:$0xff]
  %v2224 = vld [vmem:[%s3 + $0xc40] sm:$0xff]
  %v2225 = vld [vmem:[%s3 + $0xc48] sm:$0xff]
  %v2226 = vld [vmem:[%s3 + $0xc50] sm:$0xff]
  %v2227 = vld [vmem:[%s3 + $0xc58] sm:$0xff]
  %v2228 = vld [vmem:[%s3 + $0xc60] sm:$0xff]
  %v2229 = vld [vmem:[%s3 + $0xc68] sm:$0xff]
  %v2230 = vld [vmem:[%s3 + $0xc70] sm:$0xff]
  %v2231 = vld [vmem:[%s3 + $0xc78] sm:$0xff]
  %v2232 = vld [vmem:[%s3 + $0xc80] sm:$0xff]
  %v2233 = vld [vmem:[%s3 + $0xc88] sm:$0xff]
  %v2234 = vld [vmem:[%s3 + $0xc90] sm:$0xff]
  %v2235 = vld [vmem:[%s3 + $0xc98] sm:$0xff]
  %v2236 = vld [vmem:[%s3 + $0xca0] sm:$0xff]
  %v2237 = vld [vmem:[%s3 + $0xca8] sm:$0xff]
  %v2238 = vld [vmem:[%s3 + $0xcb0] sm:$0xff]
  %v2239 = vld [vmem:[%s3 + $0xcb8] sm:$0xff]
  %v2240 = vld [vmem:[%s3 + $0xcc0] sm:$0xff]
  %v2241 = vld [vmem:[%s3 + $0xcc8] sm:$0xff]
  %v2242 = vld [vmem:[%s3 + $0xcd0] sm:$0xff]
  %v2243 = vld [vmem:[%s3 + $0xcd8] sm:$0xff]
  %v2244 = vld [vmem:[%s3 + $0xce0] sm:$0xff]
  %v2245 = vld [vmem:[%s3 + $0xce8] sm:$0xff]
  %v2246 = vld [vmem:[%s3 + $0xcf0] sm:$0xff]
  %v2247 = vld [vmem:[%s3 + $0xcf8] sm:$0xff]
  %v2248 = vld [vmem:[%s3 + $0xd00] sm:$0xff]
  %v2249 = vld [vmem:[%s3 + $0xd08] sm:$0xff]
  %v2250 = vld [vmem:[%s3 + $0xd10] sm:$0xff]
  %v2251 = vld [vmem:[%s3 + $0xd18] sm:$0xff]
  %v2252 = vld [vmem:[%s3 + $0xd20] sm:$0xff]
  %v2253 = vld [vmem:[%s3 + $0xd28] sm:$0xff]
  %v2254 = vld [vmem:[%s3 + $0xd30] sm:$0xff]
  %v2255 = vld [vmem:[%s3 + $0xd38] sm:$0xff]
  %v2256 = vld [vmem:[%s3 + $0xd40] sm:$0xff]
  %v2257 = vld [vmem:[%s3 + $0xd48] sm:$0xff]
  %v2258 = vld [vmem:[%s3 + $0xd50] sm:$0xff]
  %v2259 = vld [vmem:[%s3 + $0xd58] sm:$0xff]
  %v2260 = vld [vmem:[%s3 + $0xd60] sm:$0xff]
  %v2261 = vld [vmem:[%s3 + $0xd68] sm:$0xff]
  %v2262 = vld [vmem:[%s3 + $0xd70] sm:$0xff]
  %v2263 = vld [vmem:[%s3 + $0xd78] sm:$0xff]
  %v2264 = vld [vmem:[%s3 + $0xd80] sm:$0xff]
  %v2265 = vld [vmem:[%s3 + $0xd88] sm:$0xff]
  %v2266 = vld [vmem:[%s3 + $0xd90] sm:$0xff]
  %v2267 = vld [vmem:[%s3 + $0xd98] sm:$0xff]
  %v2268 = vld [vmem:[%s3 + $0xda0] sm:$0xff]
  %v2269 = vld [vmem:[%s3 + $0xda8] sm:$0xff]
  %v2270 = vld [vmem:[%s3 + $0xdb0] sm:$0xff]
  %v2271 = vld [vmem:[%s3 + $0xdb8] sm:$0xff]
  %v2272 = vld [vmem:[%s3 + $0xdc0] sm:$0xff]
  %v2273 = vld [vmem:[%s3 + $0xdc8] sm:$0xff]
  %v2274 = vld [vmem:[%s3 + $0xdd0] sm:$0xff]
  %v2275 = vld [vmem:[%s3 + $0xdd8] sm:$0xff]
  %v2276 = vld [vmem:[%s3 + $0xde0] sm:$0xff]
  %v2277 = vld [vmem:[%s3 + $0xde8] sm:$0xff]
  %v2278 = vld [vmem:[%s3 + $0xdf0] sm:$0xff]
  %v2279 = vld [vmem:[%s3 + $0xdf8] sm:$0xff]
  %v2280 = vld [vmem:[%s3 + $0xe00] sm:$0xff]
  %v2281 = vld [vmem:[%s3 + $0xe08] sm:$0xff]
  %v2282 = vld [vmem:[%s3 + $0xe10] sm:$0xff]
  %v2283 = vld [vmem:[%s3 + $0xe18] sm:$0xff]
  %v2284 = vld [vmem:[%s3 + $0xe20] sm:$0xff]
  %v2285 = vld [vmem:[%s3 + $0xe28] sm:$0xff]
  %v2286 = vld [vmem:[%s3 + $0xe30] sm:$0xff]
  %v2287 = vld [vmem:[%s3 + $0xe38] sm:$0xff]
  %v2288 = vld [vmem:[%s3 + $0xe40] sm:$0xff]
  %v2289 = vld [vmem:[%s3 + $0xe48] sm:$0xff]
  %v2290 = vld [vmem:[%s3 + $0xe50] sm:$0xff]
  %v2291 = vld [vmem:[%s3 + $0xe58] sm:$0xff]
  %v2292 = vld [vmem:[%s3 + $0xe60] sm:$0xff]
  %v2293 = vld [vmem:[%s3 + $0xe68] sm:$0xff]
  %v2294 = vld [vmem:[%s3 + $0xe70] sm:$0xff]
  %v2295 = vld [vmem:[%s3 + $0xe78] sm:$0xff]
  %v2296 = vld [vmem:[%s3 + $0xe80] sm:$0xff]
  %v2297 = vld [vmem:[%s3 + $0xe88] sm:$0xff]
  %v2298 = vld [vmem:[%s3 + $0xe90] sm:$0xff]
  %v2299 = vld [vmem:[%s3 + $0xe98] sm:$0xff]
  %v2300 = vld [vmem:[%s3 + $0xea0] sm:$0xff]
  %v2301 = vld [vmem:[%s3 + $0xea8] sm:$0xff]
  %v2302 = vld [vmem:[%s3 + $0xeb0] sm:$0xff]
  %v2303 = vld [vmem:[%s3 + $0xeb8] sm:$0xff]
  %v2304 = vld [vmem:[%s3 + $0xec0] sm:$0xff]
  %v2305 = vld [vmem:[%s3 + $0xec8] sm:$0xff]
  %v2306 = vld [vmem:[%s3 + $0xed0] sm:$0xff]
  %v2307 = vld [vmem:[%s3 + $0xed8] sm:$0xff]
  %v2308 = vld [vmem:[%s3 + $0xee0] sm:$0xff]
  %v2309 = vld [vmem:[%s3 + $0xee8] sm:$0xff]
  %v2310 = vld [vmem:[%s3 + $0xef0] sm:$0xff]
  %v2311 = vld [vmem:[%s3 + $0xef8] sm:$0xff]
  %vm2312 = vcmask 130048
  %v2314 = vsel %vm2312, %v1800, 0
  %v2317 = vsel %vm2312, %v1832, 0
  %v2320 = vsel %vm2312, %v1833, 0
  %v2323 = vsel %vm2312, %v1834, 0
  %v2326 = vsel %vm2312, %v1835, 0
  %v2329 = vsel %vm2312, %v1836, 0
  %v2332 = vsel %vm2312, %v1837, 0
  %v2335 = vsel %vm2312, %v1838, 0
  %v2338 = vsel %vm2312, %v1839, 0
  %v2341 = vsel %vm2312, %v1840, 0
  %v2344 = vsel %vm2312, %v1841, 0
  %v2347 = vsel %vm2312, %v1842, 0
  %v2350 = vsel %vm2312, %v1843, 0
  %v2353 = vsel %vm2312, %v1844, 0
  %v2356 = vsel %vm2312, %v1845, 0
  %v2359 = vsel %vm2312, %v1846, 0
  %2361 = vmatpush.xpose.msra.mxu0 0.0
  %2362 = vmatpush.xpose.msra.mxu0 %v2359
  %2363 = vmatpush.xpose.msra.mxu0 %v2356
  %2364 = vmatpush.xpose.msra.mxu0 %v2353
  %2365 = vmatpush.xpose.msra.mxu0 %v2350
  %2366 = vmatpush.xpose.msra.mxu0 %v2347
  %2367 = vmatpush.xpose.msra.mxu0 %v2344
  %2368 = vmatpush.xpose.msra.mxu0 %v2341
  %2369 = vmatpush.xpose.msra.mxu0 %v2338
  %2370 = vmatpush.xpose.msra.mxu0 %v2335
  %2371 = vmatpush.xpose.msra.mxu0 %v2332
  %2372 = vmatpush.xpose.msra.mxu0 %v2329
  %2373 = vmatpush.xpose.msra.mxu0 %v2326
  %2374 = vmatpush.xpose.msra.mxu0 %v2323
  %2375 = vmatpush.xpose.msra.mxu0 %v2320
  %2376 = vmatpush.xpose.msra.mxu0 %v2317
  %2377 = vmatmul.f32.gmra.mxu0 %v2314
  %v2378 = vpop.f32.mrf.mxu0
  %v2379 = vadd.f32 0.0, %v2378
  %2380 = vdwg.mxu0
  %v2382 = vsel %vm2312, %v1801, 0
  %v2385 = vsel %vm2312, %v1847, 0
  %v2388 = vsel %vm2312, %v1848, 0
  %v2391 = vsel %vm2312, %v1849, 0
  %v2394 = vsel %vm2312, %v1850, 0
  %v2397 = vsel %vm2312, %v1851, 0
  %v2400 = vsel %vm2312, %v1852, 0
  %v2403 = vsel %vm2312, %v1853, 0
  %v2406 = vsel %vm2312, %v1854, 0
  %v2409 = vsel %vm2312, %v1855, 0
  %v2412 = vsel %vm2312, %v1856, 0
  %v2415 = vsel %vm2312, %v1857, 0
  %v2418 = vsel %vm2312, %v1858, 0
  %v2421 = vsel %vm2312, %v1859, 0
  %v2424 = vsel %vm2312, %v1860, 0
  %v2427 = vsel %vm2312, %v1861, 0
  %2429 = vmatpush.xpose.msra.mxu0 0.0
  %2430 = vmatpush.xpose.msra.mxu0 %v2427
  %2431 = vmatpush.xpose.msra.mxu0 %v2424
  %2432 = vmatpush.xpose.msra.mxu0 %v2421
  %2433 = vmatpush.xpose.msra.mxu0 %v2418
  %2434 = vmatpush.xpose.msra.mxu0 %v2415
  %2435 = vmatpush.xpose.msra.mxu0 %v2412
  %2436 = vmatpush.xpose.msra.mxu0 %v2409
  %2437 = vmatpush.xpose.msra.mxu0 %v2406
  %2438 = vmatpush.xpose.msra.mxu0 %v2403
  %2439 = vmatpush.xpose.msra.mxu0 %v2400
  %2440 = vmatpush.xpose.msra.mxu0 %v2397
  %2441 = vmatpush.xpose.msra.mxu0 %v2394
  %2442 = vmatpush.xpose.msra.mxu0 %v2391
  %2443 = vmatpush.xpose.msra.mxu0 %v2388
  %2444 = vmatpush.xpose.msra.mxu0 %v2385
  %2445 = vmatmul.f32.gmra.mxu0 %v2382
  %v2446 = vpop.f32.mrf.mxu0
  %v2447 = vadd.f32 0.0, %v2446
  %2448 = vdwg.mxu0
  %v2450 = vsel %vm2312, %v1802, 0
  %v2453 = vsel %vm2312, %v1862, 0
  %v2456 = vsel %vm2312, %v1863, 0
  %v2459 = vsel %vm2312, %v1864, 0
  %v2462 = vsel %vm2312, %v1865, 0
  %v2465 = vsel %vm2312, %v1866, 0
  %v2468 = vsel %vm2312, %v1867, 0
  %v2471 = vsel %vm2312, %v1868, 0
  %v2474 = vsel %vm2312, %v1869, 0
  %v2477 = vsel %vm2312, %v1870, 0
  %v2480 = vsel %vm2312, %v1871, 0
  %v2483 = vsel %vm2312, %v1872, 0
  %v2486 = vsel %vm2312, %v1873, 0
  %v2489 = vsel %vm2312, %v1874, 0
  %v2492 = vsel %vm2312, %v1875, 0
  %v2495 = vsel %vm2312, %v1876, 0
  %2497 = vmatpush.xpose.msra.mxu0 0.0
  %2498 = vmatpush.xpose.msra.mxu0 %v2495
  %2499 = vmatpush.xpose.msra.mxu0 %v2492
  %2500 = vmatpush.xpose.msra.mxu0 %v2489
  %2501 = vmatpush.xpose.msra.mxu0 %v2486
  %2502 = vmatpush.xpose.msra.mxu0 %v2483
  %2503 = vmatpush.xpose.msra.mxu0 %v2480
  %2504 = vmatpush.xpose.msra.mxu0 %v2477
  %2505 = vmatpush.xpose.msra.mxu0 %v2474
  %2506 = vmatpush.xpose.msra.mxu0 %v2471
  %2507 = vmatpush.xpose.msra.mxu0 %v2468
  %2508 = vmatpush.xpose.msra.mxu0 %v2465
  %2509 = vmatpush.xpose.msra.mxu0 %v2462
  %2510 = vmatpush.xpose.msra.mxu0 %v2459
  %2511 = vmatpush.xpose.msra.mxu0 %v2456
  %2512 = vmatpush.xpose.msra.mxu0 %v2453
  %2513 = vmatmul.f32.gmra.mxu0 %v2450
  %v2514 = vpop.f32.mrf.mxu0
  %v2515 = vadd.f32 0.0, %v2514
  %2516 = vdwg.mxu0
  %v2518 = vsel %vm2312, %v1803, 0
  %v2521 = vsel %vm2312, %v1877, 0
  %v2524 = vsel %vm2312, %v1878, 0
  %v2527 = vsel %vm2312, %v1879, 0
  %v2530 = vsel %vm2312, %v1880, 0
  %v2533 = vsel %vm2312, %v1881, 0
  %v2536 = vsel %vm2312, %v1882, 0
  %v2539 = vsel %vm2312, %v1883, 0
  %v2542 = vsel %vm2312, %v1884, 0
  %v2545 = vsel %vm2312, %v1885, 0
  %v2548 = vsel %vm2312, %v1886, 0
  %v2551 = vsel %vm2312, %v1887, 0
  %v2554 = vsel %vm2312, %v1888, 0
  %v2557 = vsel %vm2312, %v1889, 0
  %v2560 = vsel %vm2312, %v1890, 0
  %v2563 = vsel %vm2312, %v1891, 0
  %2565 = vmatpush.xpose.msra.mxu0 0.0
  %2566 = vmatpush.xpose.msra.mxu0 %v2563
  %2567 = vmatpush.xpose.msra.mxu0 %v2560
  %2568 = vmatpush.xpose.msra.mxu0 %v2557
  %2569 = vmatpush.xpose.msra.mxu0 %v2554
  %2570 = vmatpush.xpose.msra.mxu0 %v2551
  %2571 = vmatpush.xpose.msra.mxu0 %v2548
  %2572 = vmatpush.xpose.msra.mxu0 %v2545
  %2573 = vmatpush.xpose.msra.mxu0 %v2542
  %2574 = vmatpush.xpose.msra.mxu0 %v2539
  %2575 = vmatpush.xpose.msra.mxu0 %v2536
  %2576 = vmatpush.xpose.msra.mxu0 %v2533
  %2577 = vmatpush.xpose.msra.mxu0 %v2530
  %2578 = vmatpush.xpose.msra.mxu0 %v2527
  %2579 = vmatpush.xpose.msra.mxu0 %v2524
  %2580 = vmatpush.xpose.msra.mxu0 %v2521
  %2581 = vmatmul.f32.gmra.mxu0 %v2518
  %v2582 = vpop.f32.mrf.mxu0
  %v2583 = vadd.f32 0.0, %v2582
  %2584 = vdwg.mxu0
  %v2586 = vsel %vm2312, %v1804, 0
  %v2589 = vsel %vm2312, %v1892, 0
  %v2592 = vsel %vm2312, %v1893, 0
  %v2595 = vsel %vm2312, %v1894, 0
  %v2598 = vsel %vm2312, %v1895, 0
  %v2601 = vsel %vm2312, %v1896, 0
  %v2604 = vsel %vm2312, %v1897, 0
  %v2607 = vsel %vm2312, %v1898, 0
  %v2610 = vsel %vm2312, %v1899, 0
  %v2613 = vsel %vm2312, %v1900, 0
  %v2616 = vsel %vm2312, %v1901, 0
  %v2619 = vsel %vm2312, %v1902, 0
  %v2622 = vsel %vm2312, %v1903, 0
  %v2625 = vsel %vm2312, %v1904, 0
  %v2628 = vsel %vm2312, %v1905, 0
  %v2631 = vsel %vm2312, %v1906, 0
  %2633 = vmatpush.xpose.msra.mxu0 0.0
  %2634 = vmatpush.xpose.msra.mxu0 %v2631
  %2635 = vmatpush.xpose.msra.mxu0 %v2628
  %2636 = vmatpush.xpose.msra.mxu0 %v2625
  %2637 = vmatpush.xpose.msra.mxu0 %v2622
  %2638 = vmatpush.xpose.msra.mxu0 %v2619
  %2639 = vmatpush.xpose.msra.mxu0 %v2616
  %2640 = vmatpush.xpose.msra.mxu0 %v2613
  %2641 = vmatpush.xpose.msra.mxu0 %v2610
  %2642 = vmatpush.xpose.msra.mxu0 %v2607
  %2643 = vmatpush.xpose.msra.mxu0 %v2604
  %2644 = vmatpush.xpose.msra.mxu0 %v2601
  %2645 = vmatpush.xpose.msra.mxu0 %v2598
  %2646 = vmatpush.xpose.msra.mxu0 %v2595
  %2647 = vmatpush.xpose.msra.mxu0 %v2592
  %2648 = vmatpush.xpose.msra.mxu0 %v2589
  %2649 = vmatmul.f32.gmra.mxu0 %v2586
  %v2650 = vpop.f32.mrf.mxu0
  %v2651 = vadd.f32 0.0, %v2650
  %2652 = vdwg.mxu0
  %v2654 = vsel %vm2312, %v1805, 0
  %v2657 = vsel %vm2312, %v1907, 0
  %v2660 = vsel %vm2312, %v1908, 0
  %v2663 = vsel %vm2312, %v1909, 0
  %v2666 = vsel %vm2312, %v1910, 0
  %v2669 = vsel %vm2312, %v1911, 0
  %v2672 = vsel %vm2312, %v1912, 0
  %v2675 = vsel %vm2312, %v1913, 0
  %v2678 = vsel %vm2312, %v1914, 0
  %v2681 = vsel %vm2312, %v1915, 0
  %v2684 = vsel %vm2312, %v1916, 0
  %v2687 = vsel %vm2312, %v1917, 0
  %v2690 = vsel %vm2312, %v1918, 0
  %v2693 = vsel %vm2312, %v1919, 0
  %v2696 = vsel %vm2312, %v1920, 0
  %v2699 = vsel %vm2312, %v1921, 0
  %2701 = vmatpush.xpose.msra.mxu0 0.0
  %2702 = vmatpush.xpose.msra.mxu0 %v2699
  %2703 = vmatpush.xpose.msra.mxu0 %v2696
  %2704 = vmatpush.xpose.msra.mxu0 %v2693
  %2705 = vmatpush.xpose.msra.mxu0 %v2690
  %2706 = vmatpush.xpose.msra.mxu0 %v2687
  %2707 = vmatpush.xpose.msra.mxu0 %v2684
  %2708 = vmatpush.xpose.msra.mxu0 %v2681
  %2709 = vmatpush.xpose.msra.mxu0 %v2678
  %2710 = vmatpush.xpose.msra.mxu0 %v2675
  %2711 = vmatpush.xpose.msra.mxu0 %v2672
  %2712 = vmatpush.xpose.msra.mxu0 %v2669
  %2713 = vmatpush.xpose.msra.mxu0 %v2666
  %2714 = vmatpush.xpose.msra.mxu0 %v2663
  %2715 = vmatpush.xpose.msra.mxu0 %v2660
  %2716 = vmatpush.xpose.msra.mxu0 %v2657
  %2717 = vmatmul.f32.gmra.mxu0 %v2654
  %v2718 = vpop.f32.mrf.mxu0
  %v2719 = vadd.f32 0.0, %v2718
  %2720 = vdwg.mxu0
  %v2722 = vsel %vm2312, %v1806, 0
  %v2725 = vsel %vm2312, %v1922, 0
  %v2728 = vsel %vm2312, %v1923, 0
  %v2731 = vsel %vm2312, %v1924, 0
  %v2734 = vsel %vm2312, %v1925, 0
  %v2737 = vsel %vm2312, %v1926, 0
  %v2740 = vsel %vm2312, %v1927, 0
  %v2743 = vsel %vm2312, %v1928, 0
  %v2746 = vsel %vm2312, %v1929, 0
  %v2749 = vsel %vm2312, %v1930, 0
  %v2752 = vsel %vm2312, %v1931, 0
  %v2755 = vsel %vm2312, %v1932, 0
  %v2758 = vsel %vm2312, %v1933, 0
  %v2761 = vsel %vm2312, %v1934, 0
  %v2764 = vsel %vm2312, %v1935, 0
  %v2767 = vsel %vm2312, %v1936, 0
  %2769 = vmatpush.xpose.msra.mxu0 0.0
  %2770 = vmatpush.xpose.msra.mxu0 %v2767
  %2771 = vmatpush.xpose.msra.mxu0 %v2764
  %2772 = vmatpush.xpose.msra.mxu0 %v2761
  %2773 = vmatpush.xpose.msra.mxu0 %v2758
  %2774 = vmatpush.xpose.msra.mxu0 %v2755
  %2775 = vmatpush.xpose.msra.mxu0 %v2752
  %2776 = vmatpush.xpose.msra.mxu0 %v2749
  %2777 = vmatpush.xpose.msra.mxu0 %v2746
  %2778 = vmatpush.xpose.msra.mxu0 %v2743
  %2779 = vmatpush.xpose.msra.mxu0 %v2740
  %2780 = vmatpush.xpose.msra.mxu0 %v2737
  %2781 = vmatpush.xpose.msra.mxu0 %v2734
  %2782 = vmatpush.xpose.msra.mxu0 %v2731
  %2783 = vmatpush.xpose.msra.mxu0 %v2728
  %2784 = vmatpush.xpose.msra.mxu0 %v2725
  %2785 = vmatmul.f32.gmra.mxu0 %v2722
  %v2786 = vpop.f32.mrf.mxu0
  %v2787 = vadd.f32 0.0, %v2786
  %2788 = vdwg.mxu0
  %v2790 = vsel %vm2312, %v1807, 0
  %v2793 = vsel %vm2312, %v1937, 0
  %v2796 = vsel %vm2312, %v1938, 0
  %v2799 = vsel %vm2312, %v1939, 0
  %v2802 = vsel %vm2312, %v1940, 0
  %v2805 = vsel %vm2312, %v1941, 0
  %v2808 = vsel %vm2312, %v1942, 0
  %v2811 = vsel %vm2312, %v1943, 0
  %v2814 = vsel %vm2312, %v1944, 0
  %v2817 = vsel %vm2312, %v1945, 0
  %v2820 = vsel %vm2312, %v1946, 0
  %v2823 = vsel %vm2312, %v1947, 0
  %v2826 = vsel %vm2312, %v1948, 0
  %v2829 = vsel %vm2312, %v1949, 0
  %v2832 = vsel %vm2312, %v1950, 0
  %v2835 = vsel %vm2312, %v1951, 0
  %2837 = vmatpush.xpose.msra.mxu0 0.0
  %2838 = vmatpush.xpose.msra.mxu0 %v2835
  %2839 = vmatpush.xpose.msra.mxu0 %v2832
  %2840 = vmatpush.xpose.msra.mxu0 %v2829
  %2841 = vmatpush.xpose.msra.mxu0 %v2826
  %2842 = vmatpush.xpose.msra.mxu0 %v2823
  %2843 = vmatpush.xpose.msra.mxu0 %v2820
  %2844 = vmatpush.xpose.msra.mxu0 %v2817
  %2845 = vmatpush.xpose.msra.mxu0 %v2814
  %2846 = vmatpush.xpose.msra.mxu0 %v2811
  %2847 = vmatpush.xpose.msra.mxu0 %v2808
  %2848 = vmatpush.xpose.msra.mxu0 %v2805
  %2849 = vmatpush.xpose.msra.mxu0 %v2802
  %2850 = vmatpush.xpose.msra.mxu0 %v2799
  %2851 = vmatpush.xpose.msra.mxu0 %v2796
  %2852 = vmatpush.xpose.msra.mxu0 %v2793
  %2853 = vmatmul.f32.gmra.mxu0 %v2790
  %v2854 = vpop.f32.mrf.mxu0
  %v2855 = vadd.f32 0.0, %v2854
  %2856 = vdwg.mxu0
  %v2858 = vsel %vm2312, %v1808, 0
  %v2861 = vsel %vm2312, %v1952, 0
  %v2864 = vsel %vm2312, %v1953, 0
  %v2867 = vsel %vm2312, %v1954, 0
  %v2870 = vsel %vm2312, %v1955, 0
  %v2873 = vsel %vm2312, %v1956, 0
  %v2876 = vsel %vm2312, %v1957, 0
  %v2879 = vsel %vm2312, %v1958, 0
  %v2882 = vsel %vm2312, %v1959, 0
  %v2885 = vsel %vm2312, %v1960, 0
  %v2888 = vsel %vm2312, %v1961, 0
  %v2891 = vsel %vm2312, %v1962, 0
  %v2894 = vsel %vm2312, %v1963, 0
  %v2897 = vsel %vm2312, %v1964, 0
  %v2900 = vsel %vm2312, %v1965, 0
  %v2903 = vsel %vm2312, %v1966, 0
  %2905 = vmatpush.xpose.msra.mxu0 0.0
  %2906 = vmatpush.xpose.msra.mxu0 %v2903
  %2907 = vmatpush.xpose.msra.mxu0 %v2900
  %2908 = vmatpush.xpose.msra.mxu0 %v2897
  %2909 = vmatpush.xpose.msra.mxu0 %v2894
  %2910 = vmatpush.xpose.msra.mxu0 %v2891
  %2911 = vmatpush.xpose.msra.mxu0 %v2888
  %2912 = vmatpush.xpose.msra.mxu0 %v2885
  %2913 = vmatpush.xpose.msra.mxu0 %v2882
  %2914 = vmatpush.xpose.msra.mxu0 %v2879
  %2915 = vmatpush.xpose.msra.mxu0 %v2876
  %2916 = vmatpush.xpose.msra.mxu0 %v2873
  %2917 = vmatpush.xpose.msra.mxu0 %v2870
  %2918 = vmatpush.xpose.msra.mxu0 %v2867
  %2919 = vmatpush.xpose.msra.mxu0 %v2864
  %2920 = vmatpush.xpose.msra.mxu0 %v2861
  %2921 = vmatmul.f32.gmra.mxu0 %v2858
  %v2922 = vpop.f32.mrf.mxu0
  %v2923 = vadd.f32 0.0, %v2922
  %2924 = vdwg.mxu0
  %v2926 = vsel %vm2312, %v1809, 0
  %v2929 = vsel %vm2312, %v1967, 0
  %v2932 = vsel %vm2312, %v1968, 0
  %v2935 = vsel %vm2312, %v1969, 0
  %v2938 = vsel %vm2312, %v1970, 0
  %v2941 = vsel %vm2312, %v1971, 0
  %v2944 = vsel %vm2312, %v1972, 0
  %v2947 = vsel %vm2312, %v1973, 0
  %v2950 = vsel %vm2312, %v1974, 0
  %v2953 = vsel %vm2312, %v1975, 0
  %v2956 = vsel %vm2312, %v1976, 0
  %v2959 = vsel %vm2312, %v1977, 0
  %v2962 = vsel %vm2312, %v1978, 0
  %v2965 = vsel %vm2312, %v1979, 0
  %v2968 = vsel %vm2312, %v1980, 0
  %v2971 = vsel %vm2312, %v1981, 0
  %2973 = vmatpush.xpose.msra.mxu0 0.0
  %2974 = vmatpush.xpose.msra.mxu0 %v2971
  %2975 = vmatpush.xpose.msra.mxu0 %v2968
  %2976 = vmatpush.xpose.msra.mxu0 %v2965
  %2977 = vmatpush.xpose.msra.mxu0 %v2962
  %2978 = vmatpush.xpose.msra.mxu0 %v2959
  %2979 = vmatpush.xpose.msra.mxu0 %v2956
  %2980 = vmatpush.xpose.msra.mxu0 %v2953
  %2981 = vmatpush.xpose.msra.mxu0 %v2950
  %2982 = vmatpush.xpose.msra.mxu0 %v2947
  %2983 = vmatpush.xpose.msra.mxu0 %v2944
  %2984 = vmatpush.xpose.msra.mxu0 %v2941
  %2985 = vmatpush.xpose.msra.mxu0 %v2938
  %2986 = vmatpush.xpose.msra.mxu0 %v2935
  %2987 = vmatpush.xpose.msra.mxu0 %v2932
  %2988 = vmatpush.xpose.msra.mxu0 %v2929
  %2989 = vmatmul.f32.gmra.mxu0 %v2926
  %v2990 = vpop.f32.mrf.mxu0
  %v2991 = vadd.f32 0.0, %v2990
  %2992 = vdwg.mxu0
  %v2994 = vsel %vm2312, %v1810, 0
  %v2997 = vsel %vm2312, %v1982, 0
  %v3000 = vsel %vm2312, %v1983, 0
  %v3003 = vsel %vm2312, %v1984, 0
  %v3006 = vsel %vm2312, %v1985, 0
  %v3009 = vsel %vm2312, %v1986, 0
  %v3012 = vsel %vm2312, %v1987, 0
  %v3015 = vsel %vm2312, %v1988, 0
  %v3018 = vsel %vm2312, %v1989, 0
  %v3021 = vsel %vm2312, %v1990, 0
  %v3024 = vsel %vm2312, %v1991, 0
  %v3027 = vsel %vm2312, %v1992, 0
  %v3030 = vsel %vm2312, %v1993, 0
  %v3033 = vsel %vm2312, %v1994, 0
  %v3036 = vsel %vm2312, %v1995, 0
  %v3039 = vsel %vm2312, %v1996, 0
  %3041 = vmatpush.xpose.msra.mxu0 0.0
  %3042 = vmatpush.xpose.msra.mxu0 %v3039
  %3043 = vmatpush.xpose.msra.mxu0 %v3036
  %3044 = vmatpush.xpose.msra.mxu0 %v3033
  %3045 = vmatpush.xpose.msra.mxu0 %v3030
  %3046 = vmatpush.xpose.msra.mxu0 %v3027
  %3047 = vmatpush.xpose.msra.mxu0 %v3024
  %3048 = vmatpush.xpose.msra.mxu0 %v3021
  %3049 = vmatpush.xpose.msra.mxu0 %v3018
  %3050 = vmatpush.xpose.msra.mxu0 %v3015
  %3051 = vmatpush.xpose.msra.mxu0 %v3012
  %3052 = vmatpush.xpose.msra.mxu0 %v3009
  %3053 = vmatpush.xpose.msra.mxu0 %v3006
  %3054 = vmatpush.xpose.msra.mxu0 %v3003
  %3055 = vmatpush.xpose.msra.mxu0 %v3000
  %3056 = vmatpush.xpose.msra.mxu0 %v2997
  %3057 = vmatmul.f32.gmra.mxu0 %v2994
  %v3058 = vpop.f32.mrf.mxu0
  %v3059 = vadd.f32 0.0, %v3058
  %3060 = vdwg.mxu0
  %v3062 = vsel %vm2312, %v1811, 0
  %v3065 = vsel %vm2312, %v1997, 0
  %v3068 = vsel %vm2312, %v1998, 0
  %v3071 = vsel %vm2312, %v1999, 0
  %v3074 = vsel %vm2312, %v2000, 0
  %v3077 = vsel %vm2312, %v2001, 0
  %v3080 = vsel %vm2312, %v2002, 0
  %v3083 = vsel %vm2312, %v2003, 0
  %v3086 = vsel %vm2312, %v2004, 0
  %v3089 = vsel %vm2312, %v2005, 0
  %v3092 = vsel %vm2312, %v2006, 0
  %v3095 = vsel %vm2312, %v2007, 0
  %v3098 = vsel %vm2312, %v2008, 0
  %v3101 = vsel %vm2312, %v2009, 0
  %v3104 = vsel %vm2312, %v2010, 0
  %v3107 = vsel %vm2312, %v2011, 0
  %3109 = vmatpush.xpose.msra.mxu0 0.0
  %3110 = vmatpush.xpose.msra.mxu0 %v3107
  %3111 = vmatpush.xpose.msra.mxu0 %v3104
  %3112 = vmatpush.xpose.msra.mxu0 %v3101
  %3113 = vmatpush.xpose.msra.mxu0 %v3098
  %3114 = vmatpush.xpose.msra.mxu0 %v3095
  %3115 = vmatpush.xpose.msra.mxu0 %v3092
  %3116 = vmatpush.xpose.msra.mxu0 %v3089
  %3117 = vmatpush.xpose.msra.mxu0 %v3086
  %3118 = vmatpush.xpose.msra.mxu0 %v3083
  %3119 = vmatpush.xpose.msra.mxu0 %v3080
  %3120 = vmatpush.xpose.msra.mxu0 %v3077
  %3121 = vmatpush.xpose.msra.mxu0 %v3074
  %3122 = vmatpush.xpose.msra.mxu0 %v3071
  %3123 = vmatpush.xpose.msra.mxu0 %v3068
  %3124 = vmatpush.xpose.msra.mxu0 %v3065
  %3125 = vmatmul.f32.gmra.mxu0 %v3062
  %v3126 = vpop.f32.mrf.mxu0
  %v3127 = vadd.f32 0.0, %v3126
  %3128 = vdwg.mxu0
  %v3130 = vsel %vm2312, %v1812, 0
  %v3133 = vsel %vm2312, %v2012, 0
  %v3136 = vsel %vm2312, %v2013, 0
  %v3139 = vsel %vm2312, %v2014, 0
  %v3142 = vsel %vm2312, %v2015, 0
  %v3145 = vsel %vm2312, %v2016, 0
  %v3148 = vsel %vm2312, %v2017, 0
  %v3151 = vsel %vm2312, %v2018, 0
  %v3154 = vsel %vm2312, %v2019, 0
  %v3157 = vsel %vm2312, %v2020, 0
  %v3160 = vsel %vm2312, %v2021, 0
  %v3163 = vsel %vm2312, %v2022, 0
  %v3166 = vsel %vm2312, %v2023, 0
  %v3169 = vsel %vm2312, %v2024, 0
  %v3172 = vsel %vm2312, %v2025, 0
  %v3175 = vsel %vm2312, %v2026, 0
  %3177 = vmatpush.xpose.msra.mxu0 0.0
  %3178 = vmatpush.xpose.msra.mxu0 %v3175
  %3179 = vmatpush.xpose.msra.mxu0 %v3172
  %3180 = vmatpush.xpose.msra.mxu0 %v3169
  %3181 = vmatpush.xpose.msra.mxu0 %v3166
  %3182 = vmatpush.xpose.msra.mxu0 %v3163
  %3183 = vmatpush.xpose.msra.mxu0 %v3160
  %3184 = vmatpush.xpose.msra.mxu0 %v3157
  %3185 = vmatpush.xpose.msra.mxu0 %v3154
  %3186 = vmatpush.xpose.msra.mxu0 %v3151
  %3187 = vmatpush.xpose.msra.mxu0 %v3148
  %3188 = vmatpush.xpose.msra.mxu0 %v3145
  %3189 = vmatpush.xpose.msra.mxu0 %v3142
  %3190 = vmatpush.xpose.msra.mxu0 %v3139
  %3191 = vmatpush.xpose.msra.mxu0 %v3136
  %3192 = vmatpush.xpose.msra.mxu0 %v3133
  %3193 = vmatmul.f32.gmra.mxu0 %v3130
  %v3194 = vpop.f32.mrf.mxu0
  %v3195 = vadd.f32 0.0, %v3194
  %3196 = vdwg.mxu0
  %v3198 = vsel %vm2312, %v1813, 0
  %v3201 = vsel %vm2312, %v2027, 0
  %v3204 = vsel %vm2312, %v2028, 0
  %v3207 = vsel %vm2312, %v2029, 0
  %v3210 = vsel %vm2312, %v2030, 0
  %v3213 = vsel %vm2312, %v2031, 0
  %v3216 = vsel %vm2312, %v2032, 0
  %v3219 = vsel %vm2312, %v2033, 0
  %v3222 = vsel %vm2312, %v2034, 0
  %v3225 = vsel %vm2312, %v2035, 0
  %v3228 = vsel %vm2312, %v2036, 0
  %v3231 = vsel %vm2312, %v2037, 0
  %v3234 = vsel %vm2312, %v2038, 0
  %v3237 = vsel %vm2312, %v2039, 0
  %v3240 = vsel %vm2312, %v2040, 0
  %v3243 = vsel %vm2312, %v2041, 0
  %3245 = vmatpush.xpose.msra.mxu0 0.0
  %3246 = vmatpush.xpose.msra.mxu0 %v3243
  %3247 = vmatpush.xpose.msra.mxu0 %v3240
  %3248 = vmatpush.xpose.msra.mxu0 %v3237
  %3249 = vmatpush.xpose.msra.mxu0 %v3234
  %3250 = vmatpush.xpose.msra.mxu0 %v3231
  %3251 = vmatpush.xpose.msra.mxu0 %v3228
  %3252 = vmatpush.xpose.msra.mxu0 %v3225
  %3253 = vmatpush.xpose.msra.mxu0 %v3222
  %3254 = vmatpush.xpose.msra.mxu0 %v3219
  %3255 = vmatpush.xpose.msra.mxu0 %v3216
  %3256 = vmatpush.xpose.msra.mxu0 %v3213
  %3257 = vmatpush.xpose.msra.mxu0 %v3210
  %3258 = vmatpush.xpose.msra.mxu0 %v3207
  %3259 = vmatpush.xpose.msra.mxu0 %v3204
  %3260 = vmatpush.xpose.msra.mxu0 %v3201
  %3261 = vmatmul.f32.gmra.mxu0 %v3198
  %v3262 = vpop.f32.mrf.mxu0
  %v3263 = vadd.f32 0.0, %v3262
  %3264 = vdwg.mxu0
  %v3266 = vsel %vm2312, %v1814, 0
  %v3269 = vsel %vm2312, %v2042, 0
  %v3272 = vsel %vm2312, %v2043, 0
  %v3275 = vsel %vm2312, %v2044, 0
  %v3278 = vsel %vm2312, %v2045, 0
  %v3281 = vsel %vm2312, %v2046, 0
  %v3284 = vsel %vm2312, %v2047, 0
  %v3287 = vsel %vm2312, %v2048, 0
  %v3290 = vsel %vm2312, %v2049, 0
  %v3293 = vsel %vm2312, %v2050, 0
  %v3296 = vsel %vm2312, %v2051, 0
  %v3299 = vsel %vm2312, %v2052, 0
  %v3302 = vsel %vm2312, %v2053, 0
  %v3305 = vsel %vm2312, %v2054, 0
  %v3308 = vsel %vm2312, %v2055, 0
  %v3311 = vsel %vm2312, %v2056, 0
  %3313 = vmatpush.xpose.msra.mxu0 0.0
  %3314 = vmatpush.xpose.msra.mxu0 %v3311
  %3315 = vmatpush.xpose.msra.mxu0 %v3308
  %3316 = vmatpush.xpose.msra.mxu0 %v3305
  %3317 = vmatpush.xpose.msra.mxu0 %v3302
  %3318 = vmatpush.xpose.msra.mxu0 %v3299
  %3319 = vmatpush.xpose.msra.mxu0 %v3296
  %3320 = vmatpush.xpose.msra.mxu0 %v3293
  %3321 = vmatpush.xpose.msra.mxu0 %v3290
  %3322 = vmatpush.xpose.msra.mxu0 %v3287
  %3323 = vmatpush.xpose.msra.mxu0 %v3284
  %3324 = vmatpush.xpose.msra.mxu0 %v3281
  %3325 = vmatpush.xpose.msra.mxu0 %v3278
  %3326 = vmatpush.xpose.msra.mxu0 %v3275
  %3327 = vmatpush.xpose.msra.mxu0 %v3272
  %3328 = vmatpush.xpose.msra.mxu0 %v3269
  %3329 = vmatmul.f32.gmra.mxu0 %v3266
  %v3330 = vpop.f32.mrf.mxu0
  %v3331 = vadd.f32 0.0, %v3330
  %3332 = vdwg.mxu0
  %v3334 = vsel %vm2312, %v1815, 0
  %v3337 = vsel %vm2312, %v2057, 0
  %v3340 = vsel %vm2312, %v2058, 0
  %v3343 = vsel %vm2312, %v2059, 0
  %v3346 = vsel %vm2312, %v2060, 0
  %v3349 = vsel %vm2312, %v2061, 0
  %v3352 = vsel %vm2312, %v2062, 0
  %v3355 = vsel %vm2312, %v2063, 0
  %v3358 = vsel %vm2312, %v2064, 0
  %v3361 = vsel %vm2312, %v2065, 0
  %v3364 = vsel %vm2312, %v2066, 0
  %v3367 = vsel %vm2312, %v2067, 0
  %v3370 = vsel %vm2312, %v2068, 0
  %v3373 = vsel %vm2312, %v2069, 0
  %v3376 = vsel %vm2312, %v2070, 0
  %v3379 = vsel %vm2312, %v2071, 0
  %3381 = vmatpush.xpose.msra.mxu0 0.0
  %3382 = vmatpush.xpose.msra.mxu0 %v3379
  %3383 = vmatpush.xpose.msra.mxu0 %v3376
  %3384 = vmatpush.xpose.msra.mxu0 %v3373
  %3385 = vmatpush.xpose.msra.mxu0 %v3370
  %3386 = vmatpush.xpose.msra.mxu0 %v3367
  %3387 = vmatpush.xpose.msra.mxu0 %v3364
  %3388 = vmatpush.xpose.msra.mxu0 %v3361
  %3389 = vmatpush.xpose.msra.mxu0 %v3358
  %3390 = vmatpush.xpose.msra.mxu0 %v3355
  %3391 = vmatpush.xpose.msra.mxu0 %v3352
  %3392 = vmatpush.xpose.msra.mxu0 %v3349
  %3393 = vmatpush.xpose.msra.mxu0 %v3346
  %3394 = vmatpush.xpose.msra.mxu0 %v3343
  %3395 = vmatpush.xpose.msra.mxu0 %v3340
  %3396 = vmatpush.xpose.msra.mxu0 %v3337
  %3397 = vmatmul.f32.gmra.mxu0 %v3334
  %v3398 = vpop.f32.mrf.mxu0
  %v3399 = vadd.f32 0.0, %v3398
  %3400 = vdwg.mxu0
  %v3402 = vsel %vm2312, %v1816, 0
  %v3405 = vsel %vm2312, %v2072, 0
  %v3408 = vsel %vm2312, %v2073, 0
  %v3411 = vsel %vm2312, %v2074, 0
  %v3414 = vsel %vm2312, %v2075, 0
  %v3417 = vsel %vm2312, %v2076, 0
  %v3420 = vsel %vm2312, %v2077, 0
  %v3423 = vsel %vm2312, %v2078, 0
  %v3426 = vsel %vm2312, %v2079, 0
  %v3429 = vsel %vm2312, %v2080, 0
  %v3432 = vsel %vm2312, %v2081, 0
  %v3435 = vsel %vm2312, %v2082, 0
  %v3438 = vsel %vm2312, %v2083, 0
  %v3441 = vsel %vm2312, %v2084, 0
  %v3444 = vsel %vm2312, %v2085, 0
  %v3447 = vsel %vm2312, %v2086, 0
  %3449 = vmatpush.xpose.msra.mxu0 0.0
  %3450 = vmatpush.xpose.msra.mxu0 %v3447
  %3451 = vmatpush.xpose.msra.mxu0 %v3444
  %3452 = vmatpush.xpose.msra.mxu0 %v3441
  %3453 = vmatpush.xpose.msra.mxu0 %v3438
  %3454 = vmatpush.xpose.msra.mxu0 %v3435
  %3455 = vmatpush.xpose.msra.mxu0 %v3432
  %3456 = vmatpush.xpose.msra.mxu0 %v3429
  %3457 = vmatpush.xpose.msra.mxu0 %v3426
  %3458 = vmatpush.xpose.msra.mxu0 %v3423
  %3459 = vmatpush.xpose.msra.mxu0 %v3420
  %3460 = vmatpush.xpose.msra.mxu0 %v3417
  %3461 = vmatpush.xpose.msra.mxu0 %v3414
  %3462 = vmatpush.xpose.msra.mxu0 %v3411
  %3463 = vmatpush.xpose.msra.mxu0 %v3408
  %3464 = vmatpush.xpose.msra.mxu0 %v3405
  %3465 = vmatmul.f32.gmra.mxu0 %v3402
  %v3466 = vpop.f32.mrf.mxu0
  %v3467 = vadd.f32 0.0, %v3466
  %3468 = vdwg.mxu0
  %v3470 = vsel %vm2312, %v1817, 0
  %v3473 = vsel %vm2312, %v2087, 0
  %v3476 = vsel %vm2312, %v2088, 0
  %v3479 = vsel %vm2312, %v2089, 0
  %v3482 = vsel %vm2312, %v2090, 0
  %v3485 = vsel %vm2312, %v2091, 0
  %v3488 = vsel %vm2312, %v2092, 0
  %v3491 = vsel %vm2312, %v2093, 0
  %v3494 = vsel %vm2312, %v2094, 0
  %v3497 = vsel %vm2312, %v2095, 0
  %v3500 = vsel %vm2312, %v2096, 0
  %v3503 = vsel %vm2312, %v2097, 0
  %v3506 = vsel %vm2312, %v2098, 0
  %v3509 = vsel %vm2312, %v2099, 0
  %v3512 = vsel %vm2312, %v2100, 0
  %v3515 = vsel %vm2312, %v2101, 0
  %3517 = vmatpush.xpose.msra.mxu0 0.0
  %3518 = vmatpush.xpose.msra.mxu0 %v3515
  %3519 = vmatpush.xpose.msra.mxu0 %v3512
  %3520 = vmatpush.xpose.msra.mxu0 %v3509
  %3521 = vmatpush.xpose.msra.mxu0 %v3506
  %3522 = vmatpush.xpose.msra.mxu0 %v3503
  %3523 = vmatpush.xpose.msra.mxu0 %v3500
  %3524 = vmatpush.xpose.msra.mxu0 %v3497
  %3525 = vmatpush.xpose.msra.mxu0 %v3494
  %3526 = vmatpush.xpose.msra.mxu0 %v3491
  %3527 = vmatpush.xpose.msra.mxu0 %v3488
  %3528 = vmatpush.xpose.msra.mxu0 %v3485
  %3529 = vmatpush.xpose.msra.mxu0 %v3482
  %3530 = vmatpush.xpose.msra.mxu0 %v3479
  %3531 = vmatpush.xpose.msra.mxu0 %v3476
  %3532 = vmatpush.xpose.msra.mxu0 %v3473
  %3533 = vmatmul.f32.gmra.mxu0 %v3470
  %v3534 = vpop.f32.mrf.mxu0
  %v3535 = vadd.f32 0.0, %v3534
  %3536 = vdwg.mxu0
  %v3538 = vsel %vm2312, %v1818, 0
  %v3541 = vsel %vm2312, %v2102, 0
  %v3544 = vsel %vm2312, %v2103, 0
  %v3547 = vsel %vm2312, %v2104, 0
  %v3550 = vsel %vm2312, %v2105, 0
  %v3553 = vsel %vm2312, %v2106, 0
  %v3556 = vsel %vm2312, %v2107, 0
  %v3559 = vsel %vm2312, %v2108, 0
  %v3562 = vsel %vm2312, %v2109, 0
  %v3565 = vsel %vm2312, %v2110, 0
  %v3568 = vsel %vm2312, %v2111, 0
  %v3571 = vsel %vm2312, %v2112, 0
  %v3574 = vsel %vm2312, %v2113, 0
  %v3577 = vsel %vm2312, %v2114, 0
  %v3580 = vsel %vm2312, %v2115, 0
  %v3583 = vsel %vm2312, %v2116, 0
  %3585 = vmatpush.xpose.msra.mxu0 0.0
  %3586 = vmatpush.xpose.msra.mxu0 %v3583
  %3587 = vmatpush.xpose.msra.mxu0 %v3580
  %3588 = vmatpush.xpose.msra.mxu0 %v3577
  %3589 = vmatpush.xpose.msra.mxu0 %v3574
  %3590 = vmatpush.xpose.msra.mxu0 %v3571
  %3591 = vmatpush.xpose.msra.mxu0 %v3568
  %3592 = vmatpush.xpose.msra.mxu0 %v3565
  %3593 = vmatpush.xpose.msra.mxu0 %v3562
  %3594 = vmatpush.xpose.msra.mxu0 %v3559
  %3595 = vmatpush.xpose.msra.mxu0 %v3556
  %3596 = vmatpush.xpose.msra.mxu0 %v3553
  %3597 = vmatpush.xpose.msra.mxu0 %v3550
  %3598 = vmatpush.xpose.msra.mxu0 %v3547
  %3599 = vmatpush.xpose.msra.mxu0 %v3544
  %3600 = vmatpush.xpose.msra.mxu0 %v3541
  %3601 = vmatmul.f32.gmra.mxu0 %v3538
  %v3602 = vpop.f32.mrf.mxu0
  %v3603 = vadd.f32 0.0, %v3602
  %3604 = vdwg.mxu0
  %v3606 = vsel %vm2312, %v1819, 0
  %v3609 = vsel %vm2312, %v2117, 0
  %v3612 = vsel %vm2312, %v2118, 0
  %v3615 = vsel %vm2312, %v2119, 0
  %v3618 = vsel %vm2312, %v2120, 0
  %v3621 = vsel %vm2312, %v2121, 0
  %v3624 = vsel %vm2312, %v2122, 0
  %v3627 = vsel %vm2312, %v2123, 0
  %v3630 = vsel %vm2312, %v2124, 0
  %v3633 = vsel %vm2312, %v2125, 0
  %v3636 = vsel %vm2312, %v2126, 0
  %v3639 = vsel %vm2312, %v2127, 0
  %v3642 = vsel %vm2312, %v2128, 0
  %v3645 = vsel %vm2312, %v2129, 0
  %v3648 = vsel %vm2312, %v2130, 0
  %v3651 = vsel %vm2312, %v2131, 0
  %3653 = vmatpush.xpose.msra.mxu0 0.0
  %3654 = vmatpush.xpose.msra.mxu0 %v3651
  %3655 = vmatpush.xpose.msra.mxu0 %v3648
  %3656 = vmatpush.xpose.msra.mxu0 %v3645
  %3657 = vmatpush.xpose.msra.mxu0 %v3642
  %3658 = vmatpush.xpose.msra.mxu0 %v3639
  %3659 = vmatpush.xpose.msra.mxu0 %v3636
  %3660 = vmatpush.xpose.msra.mxu0 %v3633
  %3661 = vmatpush.xpose.msra.mxu0 %v3630
  %3662 = vmatpush.xpose.msra.mxu0 %v3627
  %3663 = vmatpush.xpose.msra.mxu0 %v3624
  %3664 = vmatpush.xpose.msra.mxu0 %v3621
  %3665 = vmatpush.xpose.msra.mxu0 %v3618
  %3666 = vmatpush.xpose.msra.mxu0 %v3615
  %3667 = vmatpush.xpose.msra.mxu0 %v3612
  %3668 = vmatpush.xpose.msra.mxu0 %v3609
  %3669 = vmatmul.f32.gmra.mxu0 %v3606
  %v3670 = vpop.f32.mrf.mxu0
  %v3671 = vadd.f32 0.0, %v3670
  %3672 = vdwg.mxu0
  %v3674 = vsel %vm2312, %v1820, 0
  %v3677 = vsel %vm2312, %v2132, 0
  %v3680 = vsel %vm2312, %v2133, 0
  %v3683 = vsel %vm2312, %v2134, 0
  %v3686 = vsel %vm2312, %v2135, 0
  %v3689 = vsel %vm2312, %v2136, 0
  %v3692 = vsel %vm2312, %v2137, 0
  %v3695 = vsel %vm2312, %v2138, 0
  %v3698 = vsel %vm2312, %v2139, 0
  %v3701 = vsel %vm2312, %v2140, 0
  %v3704 = vsel %vm2312, %v2141, 0
  %v3707 = vsel %vm2312, %v2142, 0
  %v3710 = vsel %vm2312, %v2143, 0
  %v3713 = vsel %vm2312, %v2144, 0
  %v3716 = vsel %vm2312, %v2145, 0
  %v3719 = vsel %vm2312, %v2146, 0
  %3721 = vmatpush.xpose.msra.mxu0 0.0
  %3722 = vmatpush.xpose.msra.mxu0 %v3719
  %3723 = vmatpush.xpose.msra.mxu0 %v3716
  %3724 = vmatpush.xpose.msra.mxu0 %v3713
  %3725 = vmatpush.xpose.msra.mxu0 %v3710
  %3726 = vmatpush.xpose.msra.mxu0 %v3707
  %3727 = vmatpush.xpose.msra.mxu0 %v3704
  %3728 = vmatpush.xpose.msra.mxu0 %v3701
  %3729 = vmatpush.xpose.msra.mxu0 %v3698
  %3730 = vmatpush.xpose.msra.mxu0 %v3695
  %3731 = vmatpush.xpose.msra.mxu0 %v3692
  %3732 = vmatpush.xpose.msra.mxu0 %v3689
  %3733 = vmatpush.xpose.msra.mxu0 %v3686
  %3734 = vmatpush.xpose.msra.mxu0 %v3683
  %3735 = vmatpush.xpose.msra.mxu0 %v3680
  %3736 = vmatpush.xpose.msra.mxu0 %v3677
  %3737 = vmatmul.f32.gmra.mxu0 %v3674
  %v3738 = vpop.f32.mrf.mxu0
  %v3739 = vadd.f32 0.0, %v3738
  %3740 = vdwg.mxu0
  %v3742 = vsel %vm2312, %v1821, 0
  %v3745 = vsel %vm2312, %v2147, 0
  %v3748 = vsel %vm2312, %v2148, 0
  %v3751 = vsel %vm2312, %v2149, 0
  %v3754 = vsel %vm2312, %v2150, 0
  %v3757 = vsel %vm2312, %v2151, 0
  %v3760 = vsel %vm2312, %v2152, 0
  %v3763 = vsel %vm2312, %v2153, 0
  %v3766 = vsel %vm2312, %v2154, 0
  %v3769 = vsel %vm2312, %v2155, 0
  %v3772 = vsel %vm2312, %v2156, 0
  %v3775 = vsel %vm2312, %v2157, 0
  %v3778 = vsel %vm2312, %v2158, 0
  %v3781 = vsel %vm2312, %v2159, 0
  %v3784 = vsel %vm2312, %v2160, 0
  %v3787 = vsel %vm2312, %v2161, 0
  %3789 = vmatpush.xpose.msra.mxu0 0.0
  %3790 = vmatpush.xpose.msra.mxu0 %v3787
  %3791 = vmatpush.xpose.msra.mxu0 %v3784
  %3792 = vmatpush.xpose.msra.mxu0 %v3781
  %3793 = vmatpush.xpose.msra.mxu0 %v3778
  %3794 = vmatpush.xpose.msra.mxu0 %v3775
  %3795 = vmatpush.xpose.msra.mxu0 %v3772
  %3796 = vmatpush.xpose.msra.mxu0 %v3769
  %3797 = vmatpush.xpose.msra.mxu0 %v3766
  %3798 = vmatpush.xpose.msra.mxu0 %v3763
  %3799 = vmatpush.xpose.msra.mxu0 %v3760
  %3800 = vmatpush.xpose.msra.mxu0 %v3757
  %3801 = vmatpush.xpose.msra.mxu0 %v3754
  %3802 = vmatpush.xpose.msra.mxu0 %v3751
  %3803 = vmatpush.xpose.msra.mxu0 %v3748
  %3804 = vmatpush.xpose.msra.mxu0 %v3745
  %3805 = vmatmul.f32.gmra.mxu0 %v3742
  %v3806 = vpop.f32.mrf.mxu0
  %v3807 = vadd.f32 0.0, %v3806
  %3808 = vdwg.mxu0
  %v3810 = vsel %vm2312, %v1822, 0
  %v3813 = vsel %vm2312, %v2162, 0
  %v3816 = vsel %vm2312, %v2163, 0
  %v3819 = vsel %vm2312, %v2164, 0
  %v3822 = vsel %vm2312, %v2165, 0
  %v3825 = vsel %vm2312, %v2166, 0
  %v3828 = vsel %vm2312, %v2167, 0
  %v3831 = vsel %vm2312, %v2168, 0
  %v3834 = vsel %vm2312, %v2169, 0
  %v3837 = vsel %vm2312, %v2170, 0
  %v3840 = vsel %vm2312, %v2171, 0
  %v3843 = vsel %vm2312, %v2172, 0
  %v3846 = vsel %vm2312, %v2173, 0
  %v3849 = vsel %vm2312, %v2174, 0
  %v3852 = vsel %vm2312, %v2175, 0
  %v3855 = vsel %vm2312, %v2176, 0
  %3857 = vmatpush.xpose.msra.mxu0 0.0
  %3858 = vmatpush.xpose.msra.mxu0 %v3855
  %3859 = vmatpush.xpose.msra.mxu0 %v3852
  %3860 = vmatpush.xpose.msra.mxu0 %v3849
  %3861 = vmatpush.xpose.msra.mxu0 %v3846
  %3862 = vmatpush.xpose.msra.mxu0 %v3843
  %3863 = vmatpush.xpose.msra.mxu0 %v3840
  %3864 = vmatpush.xpose.msra.mxu0 %v3837
  %3865 = vmatpush.xpose.msra.mxu0 %v3834
  %3866 = vmatpush.xpose.msra.mxu0 %v3831
  %3867 = vmatpush.xpose.msra.mxu0 %v3828
  %3868 = vmatpush.xpose.msra.mxu0 %v3825
  %3869 = vmatpush.xpose.msra.mxu0 %v3822
  %3870 = vmatpush.xpose.msra.mxu0 %v3819
  %3871 = vmatpush.xpose.msra.mxu0 %v3816
  %3872 = vmatpush.xpose.msra.mxu0 %v3813
  %3873 = vmatmul.f32.gmra.mxu0 %v3810
  %v3874 = vpop.f32.mrf.mxu0
  %v3875 = vadd.f32 0.0, %v3874
  %3876 = vdwg.mxu0
  %v3878 = vsel %vm2312, %v1823, 0
  %v3881 = vsel %vm2312, %v2177, 0
  %v3884 = vsel %vm2312, %v2178, 0
  %v3887 = vsel %vm2312, %v2179, 0
  %v3890 = vsel %vm2312, %v2180, 0
  %v3893 = vsel %vm2312, %v2181, 0
  %v3896 = vsel %vm2312, %v2182, 0
  %v3899 = vsel %vm2312, %v2183, 0
  %v3902 = vsel %vm2312, %v2184, 0
  %v3905 = vsel %vm2312, %v2185, 0
  %v3908 = vsel %vm2312, %v2186, 0
  %v3911 = vsel %vm2312, %v2187, 0
  %v3914 = vsel %vm2312, %v2188, 0
  %v3917 = vsel %vm2312, %v2189, 0
  %v3920 = vsel %vm2312, %v2190, 0
  %v3923 = vsel %vm2312, %v2191, 0
  %3925 = vmatpush.xpose.msra.mxu0 0.0
  %3926 = vmatpush.xpose.msra.mxu0 %v3923
  %3927 = vmatpush.xpose.msra.mxu0 %v3920
  %3928 = vmatpush.xpose.msra.mxu0 %v3917
  %3929 = vmatpush.xpose.msra.mxu0 %v3914
  %3930 = vmatpush.xpose.msra.mxu0 %v3911
  %3931 = vmatpush.xpose.msra.mxu0 %v3908
  %3932 = vmatpush.xpose.msra.mxu0 %v3905
  %3933 = vmatpush.xpose.msra.mxu0 %v3902
  %3934 = vmatpush.xpose.msra.mxu0 %v3899
  %3935 = vmatpush.xpose.msra.mxu0 %v3896
  %3936 = vmatpush.xpose.msra.mxu0 %v3893
  %3937 = vmatpush.xpose.msra.mxu0 %v3890
  %3938 = vmatpush.xpose.msra.mxu0 %v3887
  %3939 = vmatpush.xpose.msra.mxu0 %v3884
  %3940 = vmatpush.xpose.msra.mxu0 %v3881
  %3941 = vmatmul.f32.gmra.mxu0 %v3878
  %v3942 = vpop.f32.mrf.mxu0
  %v3943 = vadd.f32 0.0, %v3942
  %3944 = vdwg.mxu0
  %v3946 = vsel %vm2312, %v1824, 0
  %v3949 = vsel %vm2312, %v2192, 0
  %v3952 = vsel %vm2312, %v2193, 0
  %v3955 = vsel %vm2312, %v2194, 0
  %v3958 = vsel %vm2312, %v2195, 0
  %v3961 = vsel %vm2312, %v2196, 0
  %v3964 = vsel %vm2312, %v2197, 0
  %v3967 = vsel %vm2312, %v2198, 0
  %v3970 = vsel %vm2312, %v2199, 0
  %v3973 = vsel %vm2312, %v2200, 0
  %v3976 = vsel %vm2312, %v2201, 0
  %v3979 = vsel %vm2312, %v2202, 0
  %v3982 = vsel %vm2312, %v2203, 0
  %v3985 = vsel %vm2312, %v2204, 0
  %v3988 = vsel %vm2312, %v2205, 0
  %v3991 = vsel %vm2312, %v2206, 0
  %3993 = vmatpush.xpose.msra.mxu0 0.0
  %3994 = vmatpush.xpose.msra.mxu0 %v3991
  %3995 = vmatpush.xpose.msra.mxu0 %v3988
  %3996 = vmatpush.xpose.msra.mxu0 %v3985
  %3997 = vmatpush.xpose.msra.mxu0 %v3982
  %3998 = vmatpush.xpose.msra.mxu0 %v3979
  %3999 = vmatpush.xpose.msra.mxu0 %v3976
  %4000 = vmatpush.xpose.msra.mxu0 %v3973
  %4001 = vmatpush.xpose.msra.mxu0 %v3970
  %4002 = vmatpush.xpose.msra.mxu0 %v3967
  %4003 = vmatpush.xpose.msra.mxu0 %v3964
  %4004 = vmatpush.xpose.msra.mxu0 %v3961
  %4005 = vmatpush.xpose.msra.mxu0 %v3958
  %4006 = vmatpush.xpose.msra.mxu0 %v3955
  %4007 = vmatpush.xpose.msra.mxu0 %v3952
  %4008 = vmatpush.xpose.msra.mxu0 %v3949
  %4009 = vmatmul.f32.gmra.mxu0 %v3946
  %v4010 = vpop.f32.mrf.mxu0
  %v4011 = vadd.f32 0.0, %v4010
  %4012 = vdwg.mxu0
  %v4014 = vsel %vm2312, %v1825, 0
  %v4017 = vsel %vm2312, %v2207, 0
  %v4020 = vsel %vm2312, %v2208, 0
  %v4023 = vsel %vm2312, %v2209, 0
  %v4026 = vsel %vm2312, %v2210, 0
  %v4029 = vsel %vm2312, %v2211, 0
  %v4032 = vsel %vm2312, %v2212, 0
  %v4035 = vsel %vm2312, %v2213, 0
  %v4038 = vsel %vm2312, %v2214, 0
  %v4041 = vsel %vm2312, %v2215, 0
  %v4044 = vsel %vm2312, %v2216, 0
  %v4047 = vsel %vm2312, %v2217, 0
  %v4050 = vsel %vm2312, %v2218, 0
  %v4053 = vsel %vm2312, %v2219, 0
  %v4056 = vsel %vm2312, %v2220, 0
  %v4059 = vsel %vm2312, %v2221, 0
  %4061 = vmatpush.xpose.msra.mxu0 0.0
  %4062 = vmatpush.xpose.msra.mxu0 %v4059
  %4063 = vmatpush.xpose.msra.mxu0 %v4056
  %4064 = vmatpush.xpose.msra.mxu0 %v4053
  %4065 = vmatpush.xpose.msra.mxu0 %v4050
  %4066 = vmatpush.xpose.msra.mxu0 %v4047
  %4067 = vmatpush.xpose.msra.mxu0 %v4044
  %4068 = vmatpush.xpose.msra.mxu0 %v4041
  %4069 = vmatpush.xpose.msra.mxu0 %v4038
  %4070 = vmatpush.xpose.msra.mxu0 %v4035
  %4071 = vmatpush.xpose.msra.mxu0 %v4032
  %4072 = vmatpush.xpose.msra.mxu0 %v4029
  %4073 = vmatpush.xpose.msra.mxu0 %v4026
  %4074 = vmatpush.xpose.msra.mxu0 %v4023
  %4075 = vmatpush.xpose.msra.mxu0 %v4020
  %4076 = vmatpush.xpose.msra.mxu0 %v4017
  %4077 = vmatmul.f32.gmra.mxu0 %v4014
  %v4078 = vpop.f32.mrf.mxu0
  %v4079 = vadd.f32 0.0, %v4078
  %4080 = vdwg.mxu0
  %v4082 = vsel %vm2312, %v1826, 0
  %v4085 = vsel %vm2312, %v2222, 0
  %v4088 = vsel %vm2312, %v2223, 0
  %v4091 = vsel %vm2312, %v2224, 0
  %v4094 = vsel %vm2312, %v2225, 0
  %v4097 = vsel %vm2312, %v2226, 0
  %v4100 = vsel %vm2312, %v2227, 0
  %v4103 = vsel %vm2312, %v2228, 0
  %v4106 = vsel %vm2312, %v2229, 0
  %v4109 = vsel %vm2312, %v2230, 0
  %v4112 = vsel %vm2312, %v2231, 0
  %v4115 = vsel %vm2312, %v2232, 0
  %v4118 = vsel %vm2312, %v2233, 0
  %v4121 = vsel %vm2312, %v2234, 0
  %v4124 = vsel %vm2312, %v2235, 0
  %v4127 = vsel %vm2312, %v2236, 0
  %4129 = vmatpush.xpose.msra.mxu0 0.0
  %4130 = vmatpush.xpose.msra.mxu0 %v4127
  %4131 = vmatpush.xpose.msra.mxu0 %v4124
  %4132 = vmatpush.xpose.msra.mxu0 %v4121
  %4133 = vmatpush.xpose.msra.mxu0 %v4118
  %4134 = vmatpush.xpose.msra.mxu0 %v4115
  %4135 = vmatpush.xpose.msra.mxu0 %v4112
  %4136 = vmatpush.xpose.msra.mxu0 %v4109
  %4137 = vmatpush.xpose.msra.mxu0 %v4106
  %4138 = vmatpush.xpose.msra.mxu0 %v4103
  %4139 = vmatpush.xpose.msra.mxu0 %v4100
  %4140 = vmatpush.xpose.msra.mxu0 %v4097
  %4141 = vmatpush.xpose.msra.mxu0 %v4094
  %4142 = vmatpush.xpose.msra.mxu0 %v4091
  %4143 = vmatpush.xpose.msra.mxu0 %v4088
  %4144 = vmatpush.xpose.msra.mxu0 %v4085
  %4145 = vmatmul.f32.gmra.mxu0 %v4082
  %v4146 = vpop.f32.mrf.mxu0
  %v4147 = vadd.f32 0.0, %v4146
  %4148 = vdwg.mxu0
  %v4150 = vsel %vm2312, %v1827, 0
  %v4153 = vsel %vm2312, %v2237, 0
  %v4156 = vsel %vm2312, %v2238, 0
  %v4159 = vsel %vm2312, %v2239, 0
  %v4162 = vsel %vm2312, %v2240, 0
  %v4165 = vsel %vm2312, %v2241, 0
  %v4168 = vsel %vm2312, %v2242, 0
  %v4171 = vsel %vm2312, %v2243, 0
  %v4174 = vsel %vm2312, %v2244, 0
  %v4177 = vsel %vm2312, %v2245, 0
  %v4180 = vsel %vm2312, %v2246, 0
  %v4183 = vsel %vm2312, %v2247, 0
  %v4186 = vsel %vm2312, %v2248, 0
  %v4189 = vsel %vm2312, %v2249, 0
  %v4192 = vsel %vm2312, %v2250, 0
  %v4195 = vsel %vm2312, %v2251, 0
  %4197 = vmatpush.xpose.msra.mxu0 0.0
  %4198 = vmatpush.xpose.msra.mxu0 %v4195
  %4199 = vmatpush.xpose.msra.mxu0 %v4192
  %4200 = vmatpush.xpose.msra.mxu0 %v4189
  %4201 = vmatpush.xpose.msra.mxu0 %v4186
  %4202 = vmatpush.xpose.msra.mxu0 %v4183
  %4203 = vmatpush.xpose.msra.mxu0 %v4180
  %4204 = vmatpush.xpose.msra.mxu0 %v4177
  %4205 = vmatpush.xpose.msra.mxu0 %v4174
  %4206 = vmatpush.xpose.msra.mxu0 %v4171
  %4207 = vmatpush.xpose.msra.mxu0 %v4168
  %4208 = vmatpush.xpose.msra.mxu0 %v4165
  %4209 = vmatpush.xpose.msra.mxu0 %v4162
  %4210 = vmatpush.xpose.msra.mxu0 %v4159
  %4211 = vmatpush.xpose.msra.mxu0 %v4156
  %4212 = vmatpush.xpose.msra.mxu0 %v4153
  %4213 = vmatmul.f32.gmra.mxu0 %v4150
  %v4214 = vpop.f32.mrf.mxu0
  %v4215 = vadd.f32 0.0, %v4214
  %4216 = vdwg.mxu0
  %v4218 = vsel %vm2312, %v1828, 0
  %v4221 = vsel %vm2312, %v2252, 0
  %v4224 = vsel %vm2312, %v2253, 0
  %v4227 = vsel %vm2312, %v2254, 0
  %v4230 = vsel %vm2312, %v2255, 0
  %v4233 = vsel %vm2312, %v2256, 0
  %v4236 = vsel %vm2312, %v2257, 0
  %v4239 = vsel %vm2312, %v2258, 0
  %v4242 = vsel %vm2312, %v2259, 0
  %v4245 = vsel %vm2312, %v2260, 0
  %v4248 = vsel %vm2312, %v2261, 0
  %v4251 = vsel %vm2312, %v2262, 0
  %v4254 = vsel %vm2312, %v2263, 0
  %v4257 = vsel %vm2312, %v2264, 0
  %v4260 = vsel %vm2312, %v2265, 0
  %v4263 = vsel %vm2312, %v2266, 0
  %4265 = vmatpush.xpose.msra.mxu0 0.0
  %4266 = vmatpush.xpose.msra.mxu0 %v4263
  %4267 = vmatpush.xpose.msra.mxu0 %v4260
  %4268 = vmatpush.xpose.msra.mxu0 %v4257
  %4269 = vmatpush.xpose.msra.mxu0 %v4254
  %4270 = vmatpush.xpose.msra.mxu0 %v4251
  %4271 = vmatpush.xpose.msra.mxu0 %v4248
  %4272 = vmatpush.xpose.msra.mxu0 %v4245
  %4273 = vmatpush.xpose.msra.mxu0 %v4242
  %4274 = vmatpush.xpose.msra.mxu0 %v4239
  %4275 = vmatpush.xpose.msra.mxu0 %v4236
  %4276 = vmatpush.xpose.msra.mxu0 %v4233
  %4277 = vmatpush.xpose.msra.mxu0 %v4230
  %4278 = vmatpush.xpose.msra.mxu0 %v4227
  %4279 = vmatpush.xpose.msra.mxu0 %v4224
  %4280 = vmatpush.xpose.msra.mxu0 %v4221
  %4281 = vmatmul.f32.gmra.mxu0 %v4218
  %v4282 = vpop.f32.mrf.mxu0
  %v4283 = vadd.f32 0.0, %v4282
  %4284 = vdwg.mxu0
  %v4286 = vsel %vm2312, %v1829, 0
  %v4289 = vsel %vm2312, %v2267, 0
  %v4292 = vsel %vm2312, %v2268, 0
  %v4295 = vsel %vm2312, %v2269, 0
  %v4298 = vsel %vm2312, %v2270, 0
  %v4301 = vsel %vm2312, %v2271, 0
  %v4304 = vsel %vm2312, %v2272, 0
  %v4307 = vsel %vm2312, %v2273, 0
  %v4310 = vsel %vm2312, %v2274, 0
  %v4313 = vsel %vm2312, %v2275, 0
  %v4316 = vsel %vm2312, %v2276, 0
  %v4319 = vsel %vm2312, %v2277, 0
  %v4322 = vsel %vm2312, %v2278, 0
  %v4325 = vsel %vm2312, %v2279, 0
  %v4328 = vsel %vm2312, %v2280, 0
  %v4331 = vsel %vm2312, %v2281, 0
  %4333 = vmatpush.xpose.msra.mxu0 0.0
  %4334 = vmatpush.xpose.msra.mxu0 %v4331
  %4335 = vmatpush.xpose.msra.mxu0 %v4328
  %4336 = vmatpush.xpose.msra.mxu0 %v4325
  %4337 = vmatpush.xpose.msra.mxu0 %v4322
  %4338 = vmatpush.xpose.msra.mxu0 %v4319
  %4339 = vmatpush.xpose.msra.mxu0 %v4316
  %4340 = vmatpush.xpose.msra.mxu0 %v4313
  %4341 = vmatpush.xpose.msra.mxu0 %v4310
  %4342 = vmatpush.xpose.msra.mxu0 %v4307
  %4343 = vmatpush.xpose.msra.mxu0 %v4304
  %4344 = vmatpush.xpose.msra.mxu0 %v4301
  %4345 = vmatpush.xpose.msra.mxu0 %v4298
  %4346 = vmatpush.xpose.msra.mxu0 %v4295
  %4347 = vmatpush.xpose.msra.mxu0 %v4292
  %4348 = vmatpush.xpose.msra.mxu0 %v4289
  %4349 = vmatmul.f32.gmra.mxu0 %v4286
  %v4350 = vpop.f32.mrf.mxu0
  %v4351 = vadd.f32 0.0, %v4350
  %4352 = vdwg.mxu0
  %v4354 = vsel %vm2312, %v1830, 0
  %v4357 = vsel %vm2312, %v2282, 0
  %v4360 = vsel %vm2312, %v2283, 0
  %v4363 = vsel %vm2312, %v2284, 0
  %v4366 = vsel %vm2312, %v2285, 0
  %v4369 = vsel %vm2312, %v2286, 0
  %v4372 = vsel %vm2312, %v2287, 0
  %v4375 = vsel %vm2312, %v2288, 0
  %v4378 = vsel %vm2312, %v2289, 0
  %v4381 = vsel %vm2312, %v2290, 0
  %v4384 = vsel %vm2312, %v2291, 0
  %v4387 = vsel %vm2312, %v2292, 0
  %v4390 = vsel %vm2312, %v2293, 0
  %v4393 = vsel %vm2312, %v2294, 0
  %v4396 = vsel %vm2312, %v2295, 0
  %v4399 = vsel %vm2312, %v2296, 0
  %4401 = vmatpush.xpose.msra.mxu0 0.0
  %4402 = vmatpush.xpose.msra.mxu0 %v4399
  %4403 = vmatpush.xpose.msra.mxu0 %v4396
  %4404 = vmatpush.xpose.msra.mxu0 %v4393
  %4405 = vmatpush.xpose.msra.mxu0 %v4390
  %4406 = vmatpush.xpose.msra.mxu0 %v4387
  %4407 = vmatpush.xpose.msra.mxu0 %v4384
  %4408 = vmatpush.xpose.msra.mxu0 %v4381
  %4409 = vmatpush.xpose.msra.mxu0 %v4378
  %4410 = vmatpush.xpose.msra.mxu0 %v4375
  %4411 = vmatpush.xpose.msra.mxu0 %v4372
  %4412 = vmatpush.xpose.msra.mxu0 %v4369
  %4413 = vmatpush.xpose.msra.mxu0 %v4366
  %4414 = vmatpush.xpose.msra.mxu0 %v4363
  %4415 = vmatpush.xpose.msra.mxu0 %v4360
  %4416 = vmatpush.xpose.msra.mxu0 %v4357
  %4417 = vmatmul.f32.gmra.mxu0 %v4354
  %v4418 = vpop.f32.mrf.mxu0
  %v4419 = vadd.f32 0.0, %v4418
  %4420 = vdwg.mxu0
  %v4422 = vsel %vm2312, %v1831, 0
  %v4425 = vsel %vm2312, %v2297, 0
  %v4428 = vsel %vm2312, %v2298, 0
  %v4431 = vsel %vm2312, %v2299, 0
  %v4434 = vsel %vm2312, %v2300, 0
  %v4437 = vsel %vm2312, %v2301, 0
  %v4440 = vsel %vm2312, %v2302, 0
  %v4443 = vsel %vm2312, %v2303, 0
  %v4446 = vsel %vm2312, %v2304, 0
  %v4449 = vsel %vm2312, %v2305, 0
  %v4452 = vsel %vm2312, %v2306, 0
  %v4455 = vsel %vm2312, %v2307, 0
  %v4458 = vsel %vm2312, %v2308, 0
  %v4461 = vsel %vm2312, %v2309, 0
  %v4464 = vsel %vm2312, %v2310, 0
  %v4467 = vsel %vm2312, %v2311, 0
  %4469 = vmatpush.xpose.msra.mxu0 0.0
  %4470 = vmatpush.xpose.msra.mxu0 %v4467
  %4471 = vmatpush.xpose.msra.mxu0 %v4464
  %4472 = vmatpush.xpose.msra.mxu0 %v4461
  %4473 = vmatpush.xpose.msra.mxu0 %v4458
  %4474 = vmatpush.xpose.msra.mxu0 %v4455
  %4475 = vmatpush.xpose.msra.mxu0 %v4452
  %4476 = vmatpush.xpose.msra.mxu0 %v4449
  %4477 = vmatpush.xpose.msra.mxu0 %v4446
  %4478 = vmatpush.xpose.msra.mxu0 %v4443
  %4479 = vmatpush.xpose.msra.mxu0 %v4440
  %4480 = vmatpush.xpose.msra.mxu0 %v4437
  %4481 = vmatpush.xpose.msra.mxu0 %v4434
  %4482 = vmatpush.xpose.msra.mxu0 %v4431
  %4483 = vmatpush.xpose.msra.mxu0 %v4428
  %4484 = vmatpush.xpose.msra.mxu0 %v4425
  %4485 = vmatmul.f32.gmra.mxu0 %v4422
  %v4486 = vpop.f32.mrf.mxu0
  %v4487 = vadd.f32 0.0, %v4486
  %4488 = vdwg.mxu0
  %vm4489 = vcmask 982016
  %v4490 = vsel %vm4489, %v2379, 0.0
  %v4491 = vsel %vm4489, %v2447, 0.0
  %v4492 = vadd.f32 %v4490, %v4491
  %v4493 = vsel %vm4489, %v2515, 0.0
  %v4494 = vadd.f32 %v4492, %v4493
  %v4495 = vsel %vm4489, %v2583, 0.0
  %v4496 = vadd.f32 %v4494, %v4495
  %v4497 = vsel %vm4489, %v2651, 0.0
  %v4498 = vadd.f32 %v4496, %v4497
  %v4499 = vsel %vm4489, %v2719, 0.0
  %v4500 = vadd.f32 %v4498, %v4499
  %v4501 = vsel %vm4489, %v2787, 0.0
  %v4502 = vadd.f32 %v4500, %v4501
  %v4503 = vsel %vm4489, %v2855, 0.0
  %v4504 = vadd.f32 %v4502, %v4503
  %v4505 = vsel %vm4489, %v2923, 0.0
  %v4506 = vadd.f32 %v4504, %v4505
  %v4507 = vsel %vm4489, %v2991, 0.0
  %v4508 = vadd.f32 %v4506, %v4507
  %v4509 = vsel %vm4489, %v3059, 0.0
  %v4510 = vadd.f32 %v4508, %v4509
  %v4511 = vsel %vm4489, %v3127, 0.0
  %v4512 = vadd.f32 %v4510, %v4511
  %v4513 = vsel %vm4489, %v3195, 0.0
  %v4514 = vadd.f32 %v4512, %v4513
  %v4515 = vsel %vm4489, %v3263, 0.0
  %v4516 = vadd.f32 %v4514, %v4515
  %v4517 = vsel %vm4489, %v3331, 0.0
  %v4518 = vadd.f32 %v4516, %v4517
  %v4519 = vsel %vm4489, %v3399, 0.0
  %v4520 = vadd.f32 %v4518, %v4519
  %v4521 = vsel %vm4489, %v3467, 0.0
  %v4522 = vadd.f32 %v4520, %v4521
  %v4523 = vsel %vm4489, %v3535, 0.0
  %v4524 = vadd.f32 %v4522, %v4523
  %v4525 = vsel %vm4489, %v3603, 0.0
  %v4526 = vadd.f32 %v4524, %v4525
  %v4527 = vsel %vm4489, %v3671, 0.0
  %v4528 = vadd.f32 %v4526, %v4527
  %v4529 = vsel %vm4489, %v3739, 0.0
  %v4530 = vadd.f32 %v4528, %v4529
  %v4531 = vsel %vm4489, %v3807, 0.0
  %v4532 = vadd.f32 %v4530, %v4531
  %v4533 = vsel %vm4489, %v3875, 0.0
  %v4534 = vadd.f32 %v4532, %v4533
  %v4535 = vsel %vm4489, %v3943, 0.0
  %v4536 = vadd.f32 %v4534, %v4535
  %v4537 = vsel %vm4489, %v4011, 0.0
  %v4538 = vadd.f32 %v4536, %v4537
  %v4539 = vsel %vm4489, %v4079, 0.0
  %v4540 = vadd.f32 %v4538, %v4539
  %v4541 = vsel %vm4489, %v4147, 0.0
  %v4542 = vadd.f32 %v4540, %v4541
  %v4543 = vsel %vm4489, %v4215, 0.0
  %v4544 = vadd.f32 %v4542, %v4543
  %v4545 = vsel %vm4489, %v4283, 0.0
  %v4546 = vadd.f32 %v4544, %v4545
  %v4547 = vsel %vm4489, %v4351, 0.0
  %v4548 = vadd.f32 %v4546, %v4547
  %v4549 = vsel %vm4489, %v4419, 0.0
  %v4550 = vadd.f32 %v4548, %v4549
  %v4551 = vsel %vm4489, %v4487, 0.0
  %v4552 = vadd.f32 %v4550, %v4551
  %v4553 = vld [vmem:[%s4] sm:$0x1]
  %v4555 = vperm.slane %v4553, 0
  %v4557 = vadd.f32 %v4552, %v4555
  %v4558 = vmax.f32 %v4557, 0.0
  %v4559 = vld [vmem:[%s5] sm:$0xff]
  %v4560 = vld [vmem:[%s5 + $0x8] sm:$0xff]
  %v4561 = vld [vmem:[%s5 + $0x10] sm:$0xff]
  %v4562 = vld [vmem:[%s5 + $0x18] sm:$0xff]
  %v4563 = vld [vmem:[%s5 + $0x20] sm:$0xff]
  %v4564 = vld [vmem:[%s5 + $0x28] sm:$0xff]
  %v4565 = vld [vmem:[%s5 + $0x30] sm:$0xff]
  %v4566 = vld [vmem:[%s5 + $0x38] sm:$0xff]
  %v4567 = vld [vmem:[%s5 + $0x40] sm:$0xff]
  %v4568 = vld [vmem:[%s5 + $0x48] sm:$0xff]
  %v4569 = vld [vmem:[%s5 + $0x50] sm:$0xff]
  %v4570 = vld [vmem:[%s5 + $0x58] sm:$0xff]
  %v4571 = vld [vmem:[%s5 + $0x60] sm:$0xff]
  %v4572 = vld [vmem:[%s5 + $0x68] sm:$0xff]
  %v4573 = vld [vmem:[%s5 + $0x70] sm:$0xff]
  %v4574 = vld [vmem:[%s6] sm:$0x1]
  %v4576 = vperm.slane %v4574, 0
  %v4579 = vsel %vm4489, %v4558, 0
  %4581 = vmatpush.msra.mxu0 0.0
  %4582 = vmatpush.msra.mxu0 %v4573
  %4583 = vmatpush.msra.mxu0 %v4572
  %4584 = vmatpush.msra.mxu0 %v4571
  %4585 = vmatpush.msra.mxu0 %v4570
  %4586 = vmatpush.msra.mxu0 %v4569
  %4587 = vmatpush.msra.mxu0 %v4568
  %4588 = vmatpush.msra.mxu0 %v4567
  %4589 = vmatpush.msra.mxu0 %v4566
  %4590 = vmatpush.msra.mxu0 %v4565
  %4591 = vmatpush.msra.mxu0 %v4564
  %4592 = vmatpush.msra.mxu0 %v4563
  %4593 = vmatpush.msra.mxu0 %v4562
  %4594 = vmatpush.msra.mxu0 %v4561
  %4595 = vmatpush.msra.mxu0 %v4560
  %4596 = vmatpush.msra.mxu0 %v4559
  %4597 = vmatmul.f32.gmra.mxu0 %v4579
  %v4598 = vpop.f32.mrf.mxu0
  %v4599 = vadd.f32 %v4576, %v4598
  %4600 = vdwg.mxu0
  %v4601 = vmax.f32 %v4599, 0.0
  %v4602 = vld [vmem:[%s7] sm:$0xff]
  %v4603 = vld [vmem:[%s7 + $0x8] sm:$0xff]
  %v4604 = vld [vmem:[%s7 + $0x10] sm:$0xff]
  %v4605 = vld [vmem:[%s7 + $0x18] sm:$0xff]
  %v4606 = vld [vmem:[%s7 + $0x20] sm:$0xff]
  %v4607 = vld [vmem:[%s7 + $0x28] sm:$0xff]
  %v4608 = vld [vmem:[%s7 + $0x30] sm:$0xff]
  %v4609 = vld [vmem:[%s7 + $0x38] sm:$0xff]
  %v4610 = vld [vmem:[%s7 + $0x40] sm:$0xff]
  %v4611 = vld [vmem:[%s7 + $0x48] sm:$0xff]
  %v4612 = vld [vmem:[%s7 + $0x50] sm:$0xf]
  %v4613 = vld [vmem:[%s8] sm:$0x1]
  %v4615 = vperm.slane %v4613, 0
  %vm4617 = vcmask 687104
  %v4619 = vsel %vm4617, %v4601, 0
  %vm4621 = vcmask 1043456
  %v4623 = vsel %vm4621, %v4612, 0
  %4625 = vmatpush.msra.mxu0 0.0
  %4626 = vmatpush.msra.mxu0 0.0
  %4627 = vmatpush.msra.mxu0 0.0
  %4628 = vmatpush.msra.mxu0 0.0
  %4629 = vmatpush.msra.mxu0 0.0
  %4630 = vmatpush.msra.mxu0 %v4623
  %4631 = vmatpush.msra.mxu0 %v4611
  %4632 = vmatpush.msra.mxu0 %v4610
  %4633 = vmatpush.msra.mxu0 %v4609
  %4634 = vmatpush.msra.mxu0 %v4608
  %4635 = vmatpush.msra.mxu0 %v4607
  %4636 = vmatpush.msra.mxu0 %v4606
  %4637 = vmatpush.msra.mxu0 %v4605
  %4638 = vmatpush.msra.mxu0 %v4604
  %4639 = vmatpush.msra.mxu0 %v4603
  %4640 = vmatpush.msra.mxu0 %v4602
  %4641 = vmatmul.f32.gmra.mxu0 %v4619
  %v4642 = vpop.f32.mrf.mxu0
  %v4643 = vadd.f32 %v4615, %v4642
  %4644 = vdwg.mxu0
  %vm4645 = vcmask 80896
  %4646 = vst.msk [vmem:[%s9] sm:$0xff] %vm4645, %v4643
  // Predicated region
  $region38: #{net_forward.3} parent=0 // pred_check
    _
  $region39: #{net_forward.3} parent=0 // pred_check_branch
    %4648 = sbr.rel (0) target = $region41
  $region40: #{net_forward.3} parent=0 // pred_region
    _
  $region41: #{net_forward.3} parent=0 // pred_fallthru
    _
  // Predicated region
  $region42: #{net_forward.3} parent=0 // pred_check
    _
  $region43: #{net_forward.3} parent=0 // pred_check_branch
    %4650 = sbr.rel (0) target = $region45
  $region44: #{net_forward.3} parent=0 // pred_region
    _
  $region45: #{net_forward.3} parent=0 // pred_fallthru
    _

</llo_original>
